<compile_context>
chip_gen: v7x
topology: tpu7x:2x2x1
jax: 0.10.0
libtpu: 0.0.40
codegen_flags: <defaults>
</compile_context>

<pallas_src>
import numpy as np
import jax
import jax.numpy as jnp
from jax.experimental import pallas as pl
from jax.experimental.pallas import tpu as pltpu

EPS = 1e-5


def _vmem_limit_bytes():
    """Generation-aware scoped-VMEM budget (3/4 of physical, capped)."""
    try:
        cap = int(pltpu.get_tpu_info().vmem_capacity_bytes)
        return min((cap * 3) // 4, 112 * 1024 * 1024)
    except Exception:
        return 48 * 1024 * 1024


# ---------------------------------------------------------------------------
# Fused (prologue affine+ReLU[+residual]) -> 3x3 conv (+ BN-stats epilogue)
# ---------------------------------------------------------------------------
def _conv_layer(a, w_pck, masks, h, w, scale=None, shift=None, residual=None):
    """a: (N, Cin, H*W) bf16, w_pck: (P, Cout, 9*Cin) bf16, masks: (9, H*W) f32.

    scale/shift (Cin, 1) f32 are the *previous* layer's BN affine, fused into
    this conv's input stage (None for the first conv); residual (N, Cin, H*W)
    bf16 is added before the ReLU (BasicBlock tail).  P=1 for a plain conv,
    P=4 for the upsample-folded conv (output parities).

    Returns (y: (N[, P], Cout, H*W) bf16, stats: (N, Cout, 2) f32) where stats
    hold per-image [sum, sum_sq] of the f32 conv output (BN batch statistics).
    """
    n, cin, hw = a.shape
    p, cout, kdim = w_pck.shape
    assert kdim == 9 * cin and hw == h * w
    has_aff = scale is not None
    has_res = residual is not None

    def kernel(*refs):
        idx = 0
        a_ref = refs[idx]; idx += 1
        if has_aff:
            sc_ref, sh_ref = refs[idx], refs[idx + 1]; idx += 2
        if has_res:
            r_ref = refs[idx]; idx += 1
        m_ref, w_ref = refs[idx], refs[idx + 1]
        y_ref, st_ref = refs[idx + 2], refs[idx + 3]

        # ---- fused input stage: previous layer's BN affine + ReLU (+residual)
        act = a_ref[0].astype(jnp.float32)                      # (Cin, HW)
        if has_aff:
            act = act * sc_ref[...] + sh_ref[...]
            if has_res:
                act = act + r_ref[0].astype(jnp.float32)
            act = jnp.maximum(act, 0.0)

        # ---- fused im2col: build the (9*Cin, HW) patch matrix once.
        # Tap (ky, kx) reads the activation at flat offset s = (ky-1)*W+(kx-1);
        # a lane roll (XLU) + a precomputed border mask implements the shift
        # and the conv's zero padding without ever materializing a padded image.
        taps = []
        for ky in range(3):
            for kx in range(3):
                s = (ky - 1) * w + (kx - 1)
                t = act if s == 0 else pltpu.roll(act, shift=(-s) % hw, axis=1)
                k = 3 * ky + kx
                taps.append((t * m_ref[k:k + 1, :]).astype(jnp.bfloat16))
        patches = jnp.concatenate(taps, axis=0)                 # (9*Cin, HW)

        # ---- one K = 9*Cin MXU matmul per output parity + BN stats epilogue.
        ssum = jnp.zeros((cout, 1), jnp.float32)
        ssq = jnp.zeros((cout, 1), jnp.float32)
        for pi in range(p):
            acc = jnp.dot(w_ref[pi], patches,
                          preferred_element_type=jnp.float32)   # (Cout, HW)
            if p == 1:
                y_ref[0] = acc.astype(y_ref.dtype)
            else:
                y_ref[0, pi] = acc.astype(y_ref.dtype)
            ssum = ssum + jnp.sum(acc, axis=1, keepdims=True)
            ssq = ssq + jnp.sum(acc * acc, axis=1, keepdims=True)
        st_ref[0, :, 0:1] = ssum
        st_ref[0, :, 1:2] = ssq

    act_spec = pl.BlockSpec((1, cin, hw), lambda ni: (ni, 0, 0))
    vec_spec = pl.BlockSpec((cin, 1), lambda ni: (0, 0))
    in_specs = [act_spec]
    args = [a]
    if has_aff:
        in_specs += [vec_spec, vec_spec]
        args += [scale, shift]
    if has_res:
        in_specs.append(act_spec)
        args.append(residual)
    in_specs += [pl.BlockSpec((9, hw), lambda ni: (0, 0)),
                 pl.BlockSpec((p, cout, 9 * cin), lambda ni: (0, 0, 0))]
    args += [masks, w_pck]

    if p == 1:
        y_shape = (n, cout, hw)
        y_spec = pl.BlockSpec((1, cout, hw), lambda ni: (ni, 0, 0))
    else:
        y_shape = (n, p, cout, hw)
        y_spec = pl.BlockSpec((1, p, cout, hw), lambda ni: (ni, 0, 0, 0))

    # TODO(synk): for large images, additionally tile H*W (row tiles with a
    # 1-row halo via manual make_async_copy) so per-step VMEM stays ~1-4 MiB
    # per buffer on v7x's 64 MiB VMEM; whole-image blocks are used here.
    return pl.pallas_call(
        kernel,
        out_shape=(jax.ShapeDtypeStruct(y_shape, jnp.bfloat16),
                   jax.ShapeDtypeStruct((n, cout, 2), jnp.float32)),
        grid=(n,),
        in_specs=in_specs,
        out_specs=(y_spec, pl.BlockSpec((1, cout, 2), lambda ni: (ni, 0, 0))),
        compiler_params=pltpu.CompilerParams(
            dimension_semantics=("parallel",),
            vmem_limit_bytes=_vmem_limit_bytes()),
    )(*args)


# ---------------------------------------------------------------------------
# Final BN affine + ReLU (lane-dense elementwise pass over conv3's output)
# ---------------------------------------------------------------------------
def _bn_relu_out(y, scale, shift):
    n, p, cout, hw = y.shape
    thw = hw
    cap = 8192
    if hw > cap:
        for t in range(cap - cap % 128, 127, -128):
            if hw % t == 0:
                thw = t
                break

    def kernel(y_ref, sc_ref, sh_ref, o_ref):
        v = y_ref[...].astype(jnp.float32) * sc_ref[...] + sh_ref[...]
        o_ref[...] = jnp.maximum(v, 0.0)

    blk = pl.BlockSpec((1, p, cout, thw), lambda ni, ti: (ni, 0, 0, ti))
    vec = pl.BlockSpec((cout, 1), lambda ni, ti: (0, 0))
    return pl.pallas_call(
        kernel,
        out_shape=jax.ShapeDtypeStruct((n, p, cout, hw), jnp.float32),
        grid=(n, hw // thw),
        in_specs=[blk, vec, vec],
        out_specs=blk,
        compiler_params=pltpu.CompilerParams(
            dimension_semantics=("parallel", "parallel"),
            vmem_limit_bytes=_vmem_limit_bytes()),
    )(y, scale, shift)


def _bn_scale_shift(stats, gamma, beta, count):
    """Training-mode BN scale/shift from per-image [sum, sum_sq] partials."""
    s = jnp.sum(stats[:, :, 0], axis=0)
    ss = jnp.sum(stats[:, :, 1], axis=0)
    mean = s / count
    # TODO(synk): E[x^2]-E[x]^2 can cancel for |mean| >> std; switch to a
    # centered second reduction pass if activation magnitudes grow.
    var = jnp.maximum(ss / count - mean * mean, 0.0)
    scale = gamma * jax.lax.rsqrt(var + EPS)
    shift = beta - mean * scale
    c = scale.shape[0]
    return (scale.reshape(c, 1).astype(jnp.float32),
            shift.reshape(c, 1).astype(jnp.float32))


# ---------------------------------------------------------------------------
# Weight / mask preprocessing (one-time, outside the hot path)
# ---------------------------------------------------------------------------
def _pack_conv_w(w_oihw):
    """PyTorch (Cout, Cin, 3, 3) -> (1, Cout, 9*Cin); K index = (3*ky+kx)*Cin+ci."""
    co, ci = w_oihw.shape[0], w_oihw.shape[1]
    return jnp.transpose(w_oihw, (0, 2, 3, 1)).reshape(1, co, 9 * ci)


_PARITY = jnp.array([[[1., 0., 0.], [0., 1., 1.]],
                     [[1., 1., 0.], [0., 0., 1.]]], jnp.float32)  # [parity, r, ky]


def _pack_upsample_conv_w(w_oihw):
    """Fold nearest-2x upsample into the 3x3 conv: (Cout,Cin,3,3) -> (4, Cout, 9*Cin).

    Output parity (a, b) of conv3x3(upsample2x(h)) is a 2x2 conv over h whose
    weights are row/column sums of the 3x3 weights; they are placed back at 3x3
    tap positions (a+r, b+s) so the same conv kernel is reused unchanged.
    """
    co, ci = w_oihw.shape[0], w_oihw.shape[1]
    w_hw = jnp.transpose(w_oihw, (2, 3, 1, 0))                        # (ky,kx,ci,co)
    w_par = jnp.einsum('ark,bsl,klio->abrsio', _PARITY, _PARITY, w_hw)
    taps = jnp.zeros((2, 2, 3, 3, ci, co), jnp.float32)
    for a in range(2):
        for b in range(2):
            for r in range(2):
                for s in range(2):
                    taps = taps.at[a, b, a + r, b + s].set(w_par[a, b, r, s])
    taps = jnp.transpose(taps, (0, 1, 5, 2, 3, 4))                    # (a,b,co,ky,kx,ci)
    return taps.reshape(4, co, 9 * ci)


def _border_masks(h, w):
    """(9, H*W) f32 {0,1} masks implementing the conv's zero padding per tap."""
    yy, xx = np.meshgrid(np.arange(h), np.arange(w), indexing="ij")
    yy, xx = yy.reshape(-1), xx.reshape(-1)
    m = np.zeros((9, h * w), np.float32)
    for ky in range(3):
        for kx in range(3):
            ok = ((yy + ky - 1 >= 0) & (yy + ky - 1 < h) &
                  (xx + kx - 1 >= 0) & (xx + kx - 1 < w))
            m[3 * ky + kx] = ok.astype(np.float32)
    return jnp.asarray(m, jnp.float32)


def prepare_params(raw):
    return {
        "w1": _pack_conv_w(raw["w1"]).astype(jnp.bfloat16),
        "w2": _pack_conv_w(raw["w2"]).astype(jnp.bfloat16),
        "w3": _pack_upsample_conv_w(raw["w3"]).astype(jnp.bfloat16),
        # Conv biases dropped: bias followed by training-mode BN cancels exactly.
        "g1": raw["g1"], "be1": raw["be1"],
        "g2": raw["g2"], "be2": raw["be2"],
        "g3": raw["g3"], "be3": raw["be3"],
    }


# ---------------------------------------------------------------------------
# Forward pass
# ---------------------------------------------------------------------------
def up_layer_forward(x_nchw, params):
    """UpLayer forward.  x_nchw: (N, Cin, H, W) f32 -> (N, Cout, 2H, 2W) f32."""
    n, cin, h, w = x_nchw.shape
    hw = h * w
    cout = params["w3"].shape[1]
    x = x_nchw.reshape(n, cin, hw).astype(jnp.bfloat16)   # channels-first, flat HW
    masks = _border_masks(h, w)

    # residual = BasicBlock(in_channels, in_channels)
    y1, st1 = _conv_layer(x, params["w1"], masks, h, w)
    sc1, sh1 = _bn_scale_shift(st1, params["g1"], params["be1"], n * hw)
    y2, st2 = _conv_layer(y1, params["w2"], masks, h, w, scale=sc1, shift=sh1)
    sc2, sh2 = _bn_scale_shift(st2, params["g2"], params["be2"], n * hw)

    # main = Conv -> BN -> ReLU on the nearest-2x upsample of h2.  The upsample
    # is folded into 4 parity weight sets and the BasicBlock tail (BN2 affine +
    # residual + ReLU) is fused into this conv's input stage, so neither h2 nor
    # x_big is ever materialized in HBM.
    y3, st3 = _conv_layer(y2, params["w3"], masks, h, w,
                          scale=sc2, shift=sh2, residual=x)
    sc3, sh3 = _bn_scale_shift(st3, params["g3"], params["be3"], n * 4 * hw)
    z = _bn_relu_out(y3, sc3, sh3)                         # (N, 4, Cout, H*W) f32

    # (N, 4, Cout, H*W) -> (N, Cout, 2H, 2W) parity interleave.
    # TODO(synk): emit the interleaved NCHW output directly from _bn_relu_out
    # (strided sublane/lane stores) to save this extra pass over the largest tensor.
    z = z.reshape(n, 2, 2, cout, h, w)
    z = jnp.transpose(z, (0, 3, 4, 1, 5, 2))
    return z.reshape(n, cout, 2 * h, 2 * w)


# ---------------------------------------------------------------------------
# Pure-XLA f32 reference (mirrors the PyTorch module, training-mode BN)
# ---------------------------------------------------------------------------
def _ref_conv3x3(x_nhwc, w_oihw):
    w = jnp.transpose(w_oihw, (2, 3, 1, 0))  # HWIO
    return jax.lax.conv_general_dilated(
        x_nhwc, w, window_strides=(1, 1), padding="SAME",
        dimension_numbers=("NHWC", "HWIO", "NHWC"),
        precision=jax.lax.Precision.HIGHEST)


def _ref_bn_relu(y, g, b, res=None):
    mean = jnp.mean(y, axis=(0, 1, 2))
    var = jnp.mean(jnp.square(y - mean), axis=(0, 1, 2))
    z = (y - mean) * jax.lax.rsqrt(var + EPS) * g + b
    if res is not None:
        z = z + res
    return jnp.maximum(z, 0.0)


def up_layer_reference(x_nchw, raw):
    x = jnp.transpose(x_nchw, (0, 2, 3, 1))
    h1 = _ref_bn_relu(_ref_conv3x3(x, raw["w1"]), raw["g1"], raw["be1"])
    h2 = _ref_bn_relu(_ref_conv3x3(h1, raw["w2"]), raw["g2"], raw["be2"], res=x)
    xb = jnp.repeat(jnp.repeat(h2, 2, axis=1), 2, axis=2)
    z = _ref_bn_relu(_ref_conv3x3(xb, raw["w3"]) + raw["b3"], raw["g3"], raw["be3"])
    return jnp.transpose(z, (0, 3, 1, 2))


def init_raw_params(key, in_channels, out_channels):
    ks = jax.random.split(key, 8)
    return {
        "w1": 0.1 * jax.random.normal(ks[0], (in_channels, in_channels, 3, 3), jnp.float32),
        "w2": 0.1 * jax.random.normal(ks[1], (in_channels, in_channels, 3, 3), jnp.float32),
        "w3": 0.1 * jax.random.normal(ks[2], (out_channels, in_channels, 3, 3), jnp.float32),
        "b3": 0.1 * jax.random.normal(ks[3], (out_channels,), jnp.float32),
        "g1": 1.0 + 0.1 * jax.random.normal(ks[4], (in_channels,), jnp.float32),
        "be1": 0.1 * jax.random.normal(ks[5], (in_channels,), jnp.float32),
        "g2": 1.0 + 0.1 * jax.random.normal(ks[6], (in_channels,), jnp.float32),
        "be2": 0.1 * jax.random.normal(ks[7], (in_channels,), jnp.float32),
        "g3": jnp.ones((out_channels,), jnp.float32),
        "be3": jnp.zeros((out_channels,), jnp.float32),
    }


if __name__ == "__main__":
    key = jax.random.PRNGKey(0)
    k_x, k_p = jax.random.split(key)

    N, Cin, Cout, H, W = 2, 4, 8, 16, 16
    x = jax.random.normal(k_x, (N, Cin, H, W), jnp.float32)
    raw = init_raw_params(k_p, Cin, Cout)
    params = prepare_params(raw)

    fwd = jax.jit(up_layer_forward)
    out = jax.block_until_ready(fwd(x, params))

    assert out.shape == (N, Cout, 2 * H, 2 * W), out.shape
    assert bool(jnp.all(jnp.isfinite(out)))

    ref = up_layer_reference(x, raw)
    err = float(jnp.max(jnp.abs(out - ref)))
    assert err < 0.25, f"max abs error vs reference: {err}"
    print("KERNEL_OK")
</pallas_src>

<mosaic_0001>
module attributes {stable_mosaic.version = 11 : i64} {
  func.func @kernel(%arg0: i32, %arg1: memref<1x4x256xbf16, #tpu.memory_space<vmem>>, %arg2: memref<9x256xf32, #tpu.memory_space<vmem>>, %arg3: memref<1x4x36xbf16, #tpu.memory_space<vmem>>, %arg4: memref<1x4x256xbf16, #tpu.memory_space<vmem>>, %arg5: memref<1x4x2xf32, #tpu.memory_space<vmem>>) attributes {dimension_semantics = [#tpu.dimension_semantics<parallel>], iteration_bounds = array<i64: 2>, scalar_prefetch = 0 : i64, scratch_operands = 0 : i64, tpu.core_type = #tpu.core_type<tc>, window_params = [{transform_indices = @transform_0, window_bounds = array<i64: 1, 4, 256>}, {pipeline_mode = #tpu.pipeline_mode<synchronous>, transform_indices = @transform_1, window_bounds = array<i64: 9, 256>}, {pipeline_mode = #tpu.pipeline_mode<synchronous>, transform_indices = @transform_2, window_bounds = array<i64: 1, 4, 36>}, {transform_indices = @transform_3, window_bounds = array<i64: 1, 4, 256>}, {transform_indices = @transform_4, window_bounds = array<i64: 1, 4, 2>}]} {
    %c0 = arith.constant 0 : index
    %c0_0 = arith.constant 0 : index
    %c0_1 = arith.constant 0 : index
    %0 = vector.load %arg1[%c0, %c0_0, %c0_1] : memref<1x4x256xbf16, #tpu.memory_space<vmem>>, vector<1x4x256xbf16>
    %1 = vector.shape_cast %0 : vector<1x4x256xbf16> to vector<4x256xbf16>
    %2 = arith.extf %1 : vector<4x256xbf16> to vector<4x256xf32>
    %c17_i32 = arith.constant 17 : i32
    %3 = tpu.dynamic_rotate %2 by %c17_i32 dim 1 : vector<4x256xf32>, i32 -> vector<4x256xf32>
    %c0_2 = arith.constant 0 : index
    %c0_3 = arith.constant 0 : index
    %4 = vector.load %arg2[%c0_2, %c0_3] : memref<9x256xf32, #tpu.memory_space<vmem>>, vector<1x256xf32>
    %5 = vector.broadcast %4 : vector<1x256xf32> to vector<4x256xf32>
    %6 = arith.mulf %3, %5 : vector<4x256xf32>
    %7 = arith.truncf %6 : vector<4x256xf32> to vector<4x256xbf16>
    %c16_i32 = arith.constant 16 : i32
    %8 = tpu.dynamic_rotate %2 by %c16_i32 dim 1 : vector<4x256xf32>, i32 -> vector<4x256xf32>
    %c1 = arith.constant 1 : index
    %c0_4 = arith.constant 0 : index
    %9 = vector.load %arg2[%c1, %c0_4] : memref<9x256xf32, #tpu.memory_space<vmem>>, vector<1x256xf32>
    %10 = vector.broadcast %9 : vector<1x256xf32> to vector<4x256xf32>
    %11 = arith.mulf %8, %10 : vector<4x256xf32>
    %12 = arith.truncf %11 : vector<4x256xf32> to vector<4x256xbf16>
    %c15_i32 = arith.constant 15 : i32
    %13 = tpu.dynamic_rotate %2 by %c15_i32 dim 1 : vector<4x256xf32>, i32 -> vector<4x256xf32>
    %c2 = arith.constant 2 : index
    %c0_5 = arith.constant 0 : index
    %14 = vector.load %arg2[%c2, %c0_5] : memref<9x256xf32, #tpu.memory_space<vmem>>, vector<1x256xf32>
    %15 = vector.broadcast %14 : vector<1x256xf32> to vector<4x256xf32>
    %16 = arith.mulf %13, %15 : vector<4x256xf32>
    %17 = arith.truncf %16 : vector<4x256xf32> to vector<4x256xbf16>
    %c1_i32 = arith.constant 1 : i32
    %18 = tpu.dynamic_rotate %2 by %c1_i32 dim 1 : vector<4x256xf32>, i32 -> vector<4x256xf32>
    %c3 = arith.constant 3 : index
    %c0_6 = arith.constant 0 : index
    %19 = vector.load %arg2[%c3, %c0_6] : memref<9x256xf32, #tpu.memory_space<vmem>>, vector<1x256xf32>
    %20 = vector.broadcast %19 : vector<1x256xf32> to vector<4x256xf32>
    %21 = arith.mulf %18, %20 : vector<4x256xf32>
    %22 = arith.truncf %21 : vector<4x256xf32> to vector<4x256xbf16>
    %c4 = arith.constant 4 : index
    %c0_7 = arith.constant 0 : index
    %23 = vector.load %arg2[%c4, %c0_7] : memref<9x256xf32, #tpu.memory_space<vmem>>, vector<1x256xf32>
    %24 = vector.broadcast %23 : vector<1x256xf32> to vector<4x256xf32>
    %25 = arith.mulf %2, %24 : vector<4x256xf32>
    %26 = arith.truncf %25 : vector<4x256xf32> to vector<4x256xbf16>
    %c255_i32 = arith.constant 255 : i32
    %27 = tpu.dynamic_rotate %2 by %c255_i32 dim 1 : vector<4x256xf32>, i32 -> vector<4x256xf32>
    %c5 = arith.constant 5 : index
    %c0_8 = arith.constant 0 : index
    %28 = vector.load %arg2[%c5, %c0_8] : memref<9x256xf32, #tpu.memory_space<vmem>>, vector<1x256xf32>
    %29 = vector.broadcast %28 : vector<1x256xf32> to vector<4x256xf32>
    %30 = arith.mulf %27, %29 : vector<4x256xf32>
    %31 = arith.truncf %30 : vector<4x256xf32> to vector<4x256xbf16>
    %c241_i32 = arith.constant 241 : i32
    %32 = tpu.dynamic_rotate %2 by %c241_i32 dim 1 : vector<4x256xf32>, i32 -> vector<4x256xf32>
    %c6 = arith.constant 6 : index
    %c0_9 = arith.constant 0 : index
    %33 = vector.load %arg2[%c6, %c0_9] : memref<9x256xf32, #tpu.memory_space<vmem>>, vector<1x256xf32>
    %34 = vector.broadcast %33 : vector<1x256xf32> to vector<4x256xf32>
    %35 = arith.mulf %32, %34 : vector<4x256xf32>
    %36 = arith.truncf %35 : vector<4x256xf32> to vector<4x256xbf16>
    %c240_i32 = arith.constant 240 : i32
    %37 = tpu.dynamic_rotate %2 by %c240_i32 dim 1 : vector<4x256xf32>, i32 -> vector<4x256xf32>
    %c7 = arith.constant 7 : index
    %c0_10 = arith.constant 0 : index
    %38 = vector.load %arg2[%c7, %c0_10] : memref<9x256xf32, #tpu.memory_space<vmem>>, vector<1x256xf32>
    %39 = vector.broadcast %38 : vector<1x256xf32> to vector<4x256xf32>
    %40 = arith.mulf %37, %39 : vector<4x256xf32>
    %41 = arith.truncf %40 : vector<4x256xf32> to vector<4x256xbf16>
    %c239_i32 = arith.constant 239 : i32
    %42 = tpu.dynamic_rotate %2 by %c239_i32 dim 1 : vector<4x256xf32>, i32 -> vector<4x256xf32>
    %c8 = arith.constant 8 : index
    %c0_11 = arith.constant 0 : index
    %43 = vector.load %arg2[%c8, %c0_11] : memref<9x256xf32, #tpu.memory_space<vmem>>, vector<1x256xf32>
    %44 = vector.broadcast %43 : vector<1x256xf32> to vector<4x256xf32>
    %45 = arith.mulf %42, %44 : vector<4x256xf32>
    %46 = arith.truncf %45 : vector<4x256xf32> to vector<4x256xbf16>
    %47 = tpu.concatenate %7, %12, %17, %22, %26, %31, %36, %41, %46 in 0 : vector<4x256xbf16>, vector<4x256xbf16>, vector<4x256xbf16>, vector<4x256xbf16>, vector<4x256xbf16>, vector<4x256xbf16>, vector<4x256xbf16>, vector<4x256xbf16>, vector<4x256xbf16> -> vector<36x256xbf16>
    %cst = arith.constant 0.000000e+00 : f32
    %48 = vector.broadcast %cst : f32 to vector<4x1xf32>
    %cst_12 = arith.constant 0.000000e+00 : f32
    %49 = vector.broadcast %cst_12 : f32 to vector<4x1xf32>
    %c0_13 = arith.constant 0 : index
    %c0_14 = arith.constant 0 : index
    %c0_15 = arith.constant 0 : index
    %50 = vector.load %arg3[%c0_13, %c0_14, %c0_15] : memref<1x4x36xbf16, #tpu.memory_space<vmem>>, vector<1x4x36xbf16>
    %51 = vector.shape_cast %50 : vector<1x4x36xbf16> to vector<4x36xbf16>
    %cst_16 = arith.constant dense<0.000000e+00> : vector<4x256xf32>
    %52 = tpu.matmul %51, %47, %cst_16 {dimension_numbers = #tpu.dot_dimension_numbers<[1], [0], [0], [1], [0, 0, 1, 1], [], []>} : vector<4x36xbf16>, vector<36x256xbf16>, vector<4x256xf32> -> vector<4x256xf32>
    %53 = arith.truncf %52 : vector<4x256xf32> to vector<4x256xbf16>
    %c0_17 = arith.constant 0 : index
    %c0_18 = arith.constant 0 : index
    %c0_19 = arith.constant 0 : index
    %54 = vector.load %arg4[%c0_17, %c0_18, %c0_19] : memref<1x4x256xbf16, #tpu.memory_space<vmem>>, vector<1x4x256xbf16>
    %55 = vector.shape_cast %54 : vector<1x4x256xbf16> to vector<4x256xbf16>
    %56 = vector.shape_cast %53 : vector<4x256xbf16> to vector<1x4x256xbf16>
    tpu.vector_store %arg4[%c0_17, %c0_18, %c0_19], %56 {strides = array<i32>} : memref<1x4x256xbf16, #tpu.memory_space<vmem>>, vector<1x4x256xbf16>,
    %cst_20 = arith.constant dense<0.000000e+00> : vector<4xf32>
    %57 = vector.multi_reduction <add>, %52, %cst_20 [1] : vector<4x256xf32> to vector<4xf32>
    %58 = vector.shape_cast %57 : vector<4xf32> to vector<4x1xf32>
    %59 = arith.addf %48, %58 : vector<4x1xf32>
    %60 = arith.mulf %52, %52 : vector<4x256xf32>
    %cst_21 = arith.constant dense<0.000000e+00> : vector<4xf32>
    %61 = vector.multi_reduction <add>, %60, %cst_21 [1] : vector<4x256xf32> to vector<4xf32>
    %62 = vector.shape_cast %61 : vector<4xf32> to vector<4x1xf32>
    %63 = arith.addf %49, %62 : vector<4x1xf32>
    %c0_22 = arith.constant 0 : index
    %c0_23 = arith.constant 0 : index
    %c0_24 = arith.constant 0 : index
    %64 = vector.load %arg5[%c0_22, %c0_23, %c0_24] : memref<1x4x2xf32, #tpu.memory_space<vmem>>, vector<1x4x1xf32>
    %65 = vector.shape_cast %64 : vector<1x4x1xf32> to vector<4x1xf32>
    %66 = vector.shape_cast %59 : vector<4x1xf32> to vector<1x4x1xf32>
    tpu.vector_store %arg5[%c0_22, %c0_23, %c0_24], %66 {strides = array<i32>} : memref<1x4x2xf32, #tpu.memory_space<vmem>>, vector<1x4x1xf32>,
    %c0_25 = arith.constant 0 : index
    %c0_26 = arith.constant 0 : index
    %c1_27 = arith.constant 1 : index
    %67 = vector.load %arg5[%c0_25, %c0_26, %c1_27] : memref<1x4x2xf32, #tpu.memory_space<vmem>>, vector<1x4x1xf32>
    %68 = vector.shape_cast %67 : vector<1x4x1xf32> to vector<4x1xf32>
    %69 = vector.shape_cast %63 : vector<4x1xf32> to vector<1x4x1xf32>
    tpu.vector_store %arg5[%c0_25, %c0_26, %c1_27], %69 {strides = array<i32>} : memref<1x4x2xf32, #tpu.memory_space<vmem>>, vector<1x4x1xf32>,
    return
  }
  func.func @transform_0(%arg0: i32) -> (i32, i32, i32) {
    %c0_i32 = arith.constant 0 : i32
    %c0_i32_0 = arith.constant 0 : i32
    %c0_i32_1 = arith.constant 0 : i32
    return %arg0, %c0_i32, %c0_i32_0 : i32, i32, i32
  }
  func.func @transform_1(%arg0: i32) -> (i32, i32) {
    %c0_i32 = arith.constant 0 : i32
    %c0_i32_0 = arith.constant 0 : i32
    %c0_i32_1 = arith.constant 0 : i32
    return %c0_i32, %c0_i32_0 : i32, i32
  }
  func.func @transform_2(%arg0: i32) -> (i32, i32, i32) {
    %c0_i32 = arith.constant 0 : i32
    %c0_i32_0 = arith.constant 0 : i32
    %c0_i32_1 = arith.constant 0 : i32
    %c0_i32_2 = arith.constant 0 : i32
    return %c0_i32, %c0_i32_0, %c0_i32_1 : i32, i32, i32
  }
  func.func @transform_3(%arg0: i32) -> (i32, i32, i32) {
    %c0_i32 = arith.constant 0 : i32
    %c0_i32_0 = arith.constant 0 : i32
    %c0_i32_1 = arith.constant 0 : i32
    return %arg0, %c0_i32, %c0_i32_0 : i32, i32, i32
  }
  func.func @transform_4(%arg0: i32) -> (i32, i32, i32) {
    %c0_i32 = arith.constant 0 : i32
    %c0_i32_0 = arith.constant 0 : i32
    %c0_i32_1 = arith.constant 0 : i32
    return %arg0, %c0_i32, %c0_i32_0 : i32, i32, i32
  }
}

module attributes {stable_mosaic.version = 11 : i64} {
  func.func @kernel(%arg0: i32, %arg1: memref<1x4x256xbf16, #tpu.memory_space<vmem>>, %arg2: memref<4x1xf32, #tpu.memory_space<vmem>>, %arg3: memref<4x1xf32, #tpu.memory_space<vmem>>, %arg4: memref<9x256xf32, #tpu.memory_space<vmem>>, %arg5: memref<1x4x36xbf16, #tpu.memory_space<vmem>>, %arg6: memref<1x4x256xbf16, #tpu.memory_space<vmem>>, %arg7: memref<1x4x2xf32, #tpu.memory_space<vmem>>) attributes {dimension_semantics = [#tpu.dimension_semantics<parallel>], iteration_bounds = array<i64: 2>, scalar_prefetch = 0 : i64, scratch_operands = 0 : i64, tpu.core_type = #tpu.core_type<tc>, window_params = [{transform_indices = @transform_0, window_bounds = array<i64: 1, 4, 256>}, {pipeline_mode = #tpu.pipeline_mode<synchronous>, transform_indices = @transform_1, window_bounds = array<i64: 4, 1>}, {pipeline_mode = #tpu.pipeline_mode<synchronous>, transform_indices = @transform_2, window_bounds = array<i64: 4, 1>}, {pipeline_mode = #tpu.pipeline_mode<synchronous>, transform_indices = @transform_3, window_bounds = array<i64: 9, 256>}, {pipeline_mode = #tpu.pipeline_mode<synchronous>, transform_indices = @transform_4, window_bounds = array<i64: 1, 4, 36>}, {transform_indices = @transform_5, window_bounds = array<i64: 1, 4, 256>}, {transform_indices = @transform_6, window_bounds = array<i64: 1, 4, 2>}]} {
    %c0 = arith.constant 0 : index
    %c0_0 = arith.constant 0 : index
    %c0_1 = arith.constant 0 : index
    %0 = vector.load %arg1[%c0, %c0_0, %c0_1] : memref<1x4x256xbf16, #tpu.memory_space<vmem>>, vector<1x4x256xbf16>
    %1 = vector.shape_cast %0 : vector<1x4x256xbf16> to vector<4x256xbf16>
    %2 = arith.extf %1 : vector<4x256xbf16> to vector<4x256xf32>
    %c0_2 = arith.constant 0 : index
    %c0_3 = arith.constant 0 : index
    %3 = vector.load %arg2[%c0_2, %c0_3] : memref<4x1xf32, #tpu.memory_space<vmem>>, vector<4x1xf32>
    %4 = vector.broadcast %3 : vector<4x1xf32> to vector<4x256xf32>
    %5 = arith.mulf %2, %4 : vector<4x256xf32>
    %c0_4 = arith.constant 0 : index
    %c0_5 = arith.constant 0 : index
    %6 = vector.load %arg3[%c0_4, %c0_5] : memref<4x1xf32, #tpu.memory_space<vmem>>, vector<4x1xf32>
    %7 = vector.broadcast %6 : vector<4x1xf32> to vector<4x256xf32>
    %8 = arith.addf %5, %7 : vector<4x256xf32>
    %cst = arith.constant 0.000000e+00 : f32
    %9 = vector.broadcast %cst : f32 to vector<4x256xf32>
    %10 = arith.maximumf %8, %9 : vector<4x256xf32>
    %c17_i32 = arith.constant 17 : i32
    %11 = tpu.dynamic_rotate %10 by %c17_i32 dim 1 : vector<4x256xf32>, i32 -> vector<4x256xf32>
    %c0_6 = arith.constant 0 : index
    %c0_7 = arith.constant 0 : index
    %12 = vector.load %arg4[%c0_6, %c0_7] : memref<9x256xf32, #tpu.memory_space<vmem>>, vector<1x256xf32>
    %13 = vector.broadcast %12 : vector<1x256xf32> to vector<4x256xf32>
    %14 = arith.mulf %11, %13 : vector<4x256xf32>
    %15 = arith.truncf %14 : vector<4x256xf32> to vector<4x256xbf16>
    %c16_i32 = arith.constant 16 : i32
    %16 = tpu.dynamic_rotate %10 by %c16_i32 dim 1 : vector<4x256xf32>, i32 -> vector<4x256xf32>
    %c1 = arith.constant 1 : index
    %c0_8 = arith.constant 0 : index
    %17 = vector.load %arg4[%c1, %c0_8] : memref<9x256xf32, #tpu.memory_space<vmem>>, vector<1x256xf32>
    %18 = vector.broadcast %17 : vector<1x256xf32> to vector<4x256xf32>
    %19 = arith.mulf %16, %18 : vector<4x256xf32>
    %20 = arith.truncf %19 : vector<4x256xf32> to vector<4x256xbf16>
    %c15_i32 = arith.constant 15 : i32
    %21 = tpu.dynamic_rotate %10 by %c15_i32 dim 1 : vector<4x256xf32>, i32 -> vector<4x256xf32>
    %c2 = arith.constant 2 : index
    %c0_9 = arith.constant 0 : index
    %22 = vector.load %arg4[%c2, %c0_9] : memref<9x256xf32, #tpu.memory_space<vmem>>, vector<1x256xf32>
    %23 = vector.broadcast %22 : vector<1x256xf32> to vector<4x256xf32>
    %24 = arith.mulf %21, %23 : vector<4x256xf32>
    %25 = arith.truncf %24 : vector<4x256xf32> to vector<4x256xbf16>
    %c1_i32 = arith.constant 1 : i32
    %26 = tpu.dynamic_rotate %10 by %c1_i32 dim 1 : vector<4x256xf32>, i32 -> vector<4x256xf32>
    %c3 = arith.constant 3 : index
    %c0_10 = arith.constant 0 : index
    %27 = vector.load %arg4[%c3, %c0_10] : memref<9x256xf32, #tpu.memory_space<vmem>>, vector<1x256xf32>
    %28 = vector.broadcast %27 : vector<1x256xf32> to vector<4x256xf32>
    %29 = arith.mulf %26, %28 : vector<4x256xf32>
    %30 = arith.truncf %29 : vector<4x256xf32> to vector<4x256xbf16>
    %c4 = arith.constant 4 : index
    %c0_11 = arith.constant 0 : index
    %31 = vector.load %arg4[%c4, %c0_11] : memref<9x256xf32, #tpu.memory_space<vmem>>, vector<1x256xf32>
    %32 = vector.broadcast %31 : vector<1x256xf32> to vector<4x256xf32>
    %33 = arith.mulf %10, %32 : vector<4x256xf32>
    %34 = arith.truncf %33 : vector<4x256xf32> to vector<4x256xbf16>
    %c255_i32 = arith.constant 255 : i32
    %35 = tpu.dynamic_rotate %10 by %c255_i32 dim 1 : vector<4x256xf32>, i32 -> vector<4x256xf32>
    %c5 = arith.constant 5 : index
    %c0_12 = arith.constant 0 : index
    %36 = vector.load %arg4[%c5, %c0_12] : memref<9x256xf32, #tpu.memory_space<vmem>>, vector<1x256xf32>
    %37 = vector.broadcast %36 : vector<1x256xf32> to vector<4x256xf32>
    %38 = arith.mulf %35, %37 : vector<4x256xf32>
    %39 = arith.truncf %38 : vector<4x256xf32> to vector<4x256xbf16>
    %c241_i32 = arith.constant 241 : i32
    %40 = tpu.dynamic_rotate %10 by %c241_i32 dim 1 : vector<4x256xf32>, i32 -> vector<4x256xf32>
    %c6 = arith.constant 6 : index
    %c0_13 = arith.constant 0 : index
    %41 = vector.load %arg4[%c6, %c0_13] : memref<9x256xf32, #tpu.memory_space<vmem>>, vector<1x256xf32>
    %42 = vector.broadcast %41 : vector<1x256xf32> to vector<4x256xf32>
    %43 = arith.mulf %40, %42 : vector<4x256xf32>
    %44 = arith.truncf %43 : vector<4x256xf32> to vector<4x256xbf16>
    %c240_i32 = arith.constant 240 : i32
    %45 = tpu.dynamic_rotate %10 by %c240_i32 dim 1 : vector<4x256xf32>, i32 -> vector<4x256xf32>
    %c7 = arith.constant 7 : index
    %c0_14 = arith.constant 0 : index
    %46 = vector.load %arg4[%c7, %c0_14] : memref<9x256xf32, #tpu.memory_space<vmem>>, vector<1x256xf32>
    %47 = vector.broadcast %46 : vector<1x256xf32> to vector<4x256xf32>
    %48 = arith.mulf %45, %47 : vector<4x256xf32>
    %49 = arith.truncf %48 : vector<4x256xf32> to vector<4x256xbf16>
    %c239_i32 = arith.constant 239 : i32
    %50 = tpu.dynamic_rotate %10 by %c239_i32 dim 1 : vector<4x256xf32>, i32 -> vector<4x256xf32>
    %c8 = arith.constant 8 : index
    %c0_15 = arith.constant 0 : index
    %51 = vector.load %arg4[%c8, %c0_15] : memref<9x256xf32, #tpu.memory_space<vmem>>, vector<1x256xf32>
    %52 = vector.broadcast %51 : vector<1x256xf32> to vector<4x256xf32>
    %53 = arith.mulf %50, %52 : vector<4x256xf32>
    %54 = arith.truncf %53 : vector<4x256xf32> to vector<4x256xbf16>
    %55 = tpu.concatenate %15, %20, %25, %30, %34, %39, %44, %49, %54 in 0 : vector<4x256xbf16>, vector<4x256xbf16>, vector<4x256xbf16>, vector<4x256xbf16>, vector<4x256xbf16>, vector<4x256xbf16>, vector<4x256xbf16>, vector<4x256xbf16>, vector<4x256xbf16> -> vector<36x256xbf16>
    %cst_16 = arith.constant 0.000000e+00 : f32
    %56 = vector.broadcast %cst_16 : f32 to vector<4x1xf32>
    %cst_17 = arith.constant 0.000000e+00 : f32
    %57 = vector.broadcast %cst_17 : f32 to vector<4x1xf32>
    %c0_18 = arith.constant 0 : index
    %c0_19 = arith.constant 0 : index
    %c0_20 = arith.constant 0 : index
    %58 = vector.load %arg5[%c0_18, %c0_19, %c0_20] : memref<1x4x36xbf16, #tpu.memory_space<vmem>>, vector<1x4x36xbf16>
    %59 = vector.shape_cast %58 : vector<1x4x36xbf16> to vector<4x36xbf16>
    %cst_21 = arith.constant dense<0.000000e+00> : vector<4x256xf32>
    %60 = tpu.matmul %59, %55, %cst_21 {dimension_numbers = #tpu.dot_dimension_numbers<[1], [0], [0], [1], [0, 0, 1, 1], [], []>} : vector<4x36xbf16>, vector<36x256xbf16>, vector<4x256xf32> -> vector<4x256xf32>
    %61 = arith.truncf %60 : vector<4x256xf32> to vector<4x256xbf16>
    %c0_22 = arith.constant 0 : index
    %c0_23 = arith.constant 0 : index
    %c0_24 = arith.constant 0 : index
    %62 = vector.load %arg6[%c0_22, %c0_23, %c0_24] : memref<1x4x256xbf16, #tpu.memory_space<vmem>>, vector<1x4x256xbf16>
    %63 = vector.shape_cast %62 : vector<1x4x256xbf16> to vector<4x256xbf16>
    %64 = vector.shape_cast %61 : vector<4x256xbf16> to vector<1x4x256xbf16>
    tpu.vector_store %arg6[%c0_22, %c0_23, %c0_24], %64 {strides = array<i32>} : memref<1x4x256xbf16, #tpu.memory_space<vmem>>, vector<1x4x256xbf16>,
    %cst_25 = arith.constant dense<0.000000e+00> : vector<4xf32>
    %65 = vector.multi_reduction <add>, %60, %cst_25 [1] : vector<4x256xf32> to vector<4xf32>
    %66 = vector.shape_cast %65 : vector<4xf32> to vector<4x1xf32>
    %67 = arith.addf %56, %66 : vector<4x1xf32>
    %68 = arith.mulf %60, %60 : vector<4x256xf32>
    %cst_26 = arith.constant dense<0.000000e+00> : vector<4xf32>
    %69 = vector.multi_reduction <add>, %68, %cst_26 [1] : vector<4x256xf32> to vector<4xf32>
    %70 = vector.shape_cast %69 : vector<4xf32> to vector<4x1xf32>
    %71 = arith.addf %57, %70 : vector<4x1xf32>
    %c0_27 = arith.constant 0 : index
    %c0_28 = arith.constant 0 : index
    %c0_29 = arith.constant 0 : index
    %72 = vector.load %arg7[%c0_27, %c0_28, %c0_29] : memref<1x4x2xf32, #tpu.memory_space<vmem>>, vector<1x4x1xf32>
    %73 = vector.shape_cast %72 : vector<1x4x1xf32> to vector<4x1xf32>
    %74 = vector.shape_cast %67 : vector<4x1xf32> to vector<1x4x1xf32>
    tpu.vector_store %arg7[%c0_27, %c0_28, %c0_29], %74 {strides = array<i32>} : memref<1x4x2xf32, #tpu.memory_space<vmem>>, vector<1x4x1xf32>,
    %c0_30 = arith.constant 0 : index
    %c0_31 = arith.constant 0 : index
    %c1_32 = arith.constant 1 : index
    %75 = vector.load %arg7[%c0_30, %c0_31, %c1_32] : memref<1x4x2xf32, #tpu.memory_space<vmem>>, vector<1x4x1xf32>
    %76 = vector.shape_cast %75 : vector<1x4x1xf32> to vector<4x1xf32>
    %77 = vector.shape_cast %71 : vector<4x1xf32> to vector<1x4x1xf32>
    tpu.vector_store %arg7[%c0_30, %c0_31, %c1_32], %77 {strides = array<i32>} : memref<1x4x2xf32, #tpu.memory_space<vmem>>, vector<1x4x1xf32>,
    return
  }
  func.func @transform_0(%arg0: i32) -> (i32, i32, i32) {
    %c0_i32 = arith.constant 0 : i32
    %c0_i32_0 = arith.constant 0 : i32
    %c0_i32_1 = arith.constant 0 : i32
    return %arg0, %c0_i32, %c0_i32_0 : i32, i32, i32
  }
  func.func @transform_1(%arg0: i32) -> (i32, i32) {
    %c0_i32 = arith.constant 0 : i32
    %c0_i32_0 = arith.constant 0 : i32
    %c0_i32_1 = arith.constant 0 : i32
    return %c0_i32, %c0_i32_0 : i32, i32
  }
  func.func @transform_2(%arg0: i32) -> (i32, i32) {
    %c0_i32 = arith.constant 0 : i32
    %c0_i32_0 = arith.constant 0 : i32
    %c0_i32_1 = arith.constant 0 : i32
    return %c0_i32, %c0_i32_0 : i32, i32
  }
  func.func @transform_3(%arg0: i32) -> (i32, i32) {
    %c0_i32 = arith.constant 0 : i32
    %c0_i32_0 = arith.constant 0 : i32
    %c0_i32_1 = arith.constant 0 : i32
    return %c0_i32, %c0_i32_0 : i32, i32
  }
  func.func @transform_4(%arg0: i32) -> (i32, i32, i32) {
    %c0_i32 = arith.constant 0 : i32
    %c0_i32_0 = arith.constant 0 : i32
    %c0_i32_1 = arith.constant 0 : i32
    %c0_i32_2 = arith.constant 0 : i32
    return %c0_i32, %c0_i32_0, %c0_i32_1 : i32, i32, i32
  }
  func.func @transform_5(%arg0: i32) -> (i32, i32, i32) {
    %c0_i32 = arith.constant 0 : i32
    %c0_i32_0 = arith.constant 0 : i32
    %c0_i32_1 = arith.constant 0 : i32
    return %arg0, %c0_i32, %c0_i32_0 : i32, i32, i32
  }
  func.func @transform_6(%arg0: i32) -> (i32, i32, i32) {
    %c0_i32 = arith.constant 0 : i32
    %c0_i32_0 = arith.constant 0 : i32
    %c0_i32_1 = arith.constant 0 : i32
    return %arg0, %c0_i32, %c0_i32_0 : i32, i32, i32
  }
}

module attributes {stable_mosaic.version = 11 : i64} {
  func.func @kernel(%arg0: i32, %arg1: memref<1x4x256xbf16, #tpu.memory_space<vmem>>, %arg2: memref<4x1xf32, #tpu.memory_space<vmem>>, %arg3: memref<4x1xf32, #tpu.memory_space<vmem>>, %arg4: memref<1x4x256xbf16, #tpu.memory_space<vmem>>, %arg5: memref<9x256xf32, #tpu.memory_space<vmem>>, %arg6: memref<4x8x36xbf16, #tpu.memory_space<vmem>>, %arg7: memref<1x4x8x256xbf16, #tpu.memory_space<vmem>>, %arg8: memref<1x8x2xf32, #tpu.memory_space<vmem>>) attributes {dimension_semantics = [#tpu.dimension_semantics<parallel>], iteration_bounds = array<i64: 2>, scalar_prefetch = 0 : i64, scratch_operands = 0 : i64, tpu.core_type = #tpu.core_type<tc>, window_params = [{transform_indices = @transform_0, window_bounds = array<i64: 1, 4, 256>}, {pipeline_mode = #tpu.pipeline_mode<synchronous>, transform_indices = @transform_1, window_bounds = array<i64: 4, 1>}, {pipeline_mode = #tpu.pipeline_mode<synchronous>, transform_indices = @transform_2, window_bounds = array<i64: 4, 1>}, {transform_indices = @transform_3, window_bounds = array<i64: 1, 4, 256>}, {pipeline_mode = #tpu.pipeline_mode<synchronous>, transform_indices = @transform_4, window_bounds = array<i64: 9, 256>}, {pipeline_mode = #tpu.pipeline_mode<synchronous>, transform_indices = @transform_5, window_bounds = array<i64: 4, 8, 36>}, {transform_indices = @transform_6, window_bounds = array<i64: 1, 4, 8, 256>}, {transform_indices = @transform_7, window_bounds = array<i64: 1, 8, 2>}]} {
    %c0 = arith.constant 0 : index
    %c0_0 = arith.constant 0 : index
    %c0_1 = arith.constant 0 : index
    %0 = vector.load %arg1[%c0, %c0_0, %c0_1] : memref<1x4x256xbf16, #tpu.memory_space<vmem>>, vector<1x4x256xbf16>
    %1 = vector.shape_cast %0 : vector<1x4x256xbf16> to vector<4x256xbf16>
    %2 = arith.extf %1 : vector<4x256xbf16> to vector<4x256xf32>
    %c0_2 = arith.constant 0 : index
    %c0_3 = arith.constant 0 : index
    %3 = vector.load %arg2[%c0_2, %c0_3] : memref<4x1xf32, #tpu.memory_space<vmem>>, vector<4x1xf32>
    %4 = vector.broadcast %3 : vector<4x1xf32> to vector<4x256xf32>
    %5 = arith.mulf %2, %4 : vector<4x256xf32>
    %c0_4 = arith.constant 0 : index
    %c0_5 = arith.constant 0 : index
    %6 = vector.load %arg3[%c0_4, %c0_5] : memref<4x1xf32, #tpu.memory_space<vmem>>, vector<4x1xf32>
    %7 = vector.broadcast %6 : vector<4x1xf32> to vector<4x256xf32>
    %8 = arith.addf %5, %7 : vector<4x256xf32>
    %c0_6 = arith.constant 0 : index
    %c0_7 = arith.constant 0 : index
    %c0_8 = arith.constant 0 : index
    %9 = vector.load %arg4[%c0_6, %c0_7, %c0_8] : memref<1x4x256xbf16, #tpu.memory_space<vmem>>, vector<1x4x256xbf16>
    %10 = vector.shape_cast %9 : vector<1x4x256xbf16> to vector<4x256xbf16>
    %11 = arith.extf %10 : vector<4x256xbf16> to vector<4x256xf32>
    %12 = arith.addf %8, %11 : vector<4x256xf32>
    %cst = arith.constant 0.000000e+00 : f32
    %13 = vector.broadcast %cst : f32 to vector<4x256xf32>
    %14 = arith.maximumf %12, %13 : vector<4x256xf32>
    %c17_i32 = arith.constant 17 : i32
    %15 = tpu.dynamic_rotate %14 by %c17_i32 dim 1 : vector<4x256xf32>, i32 -> vector<4x256xf32>
    %c0_9 = arith.constant 0 : index
    %c0_10 = arith.constant 0 : index
    %16 = vector.load %arg5[%c0_9, %c0_10] : memref<9x256xf32, #tpu.memory_space<vmem>>, vector<1x256xf32>
    %17 = vector.broadcast %16 : vector<1x256xf32> to vector<4x256xf32>
    %18 = arith.mulf %15, %17 : vector<4x256xf32>
    %19 = arith.truncf %18 : vector<4x256xf32> to vector<4x256xbf16>
    %c16_i32 = arith.constant 16 : i32
    %20 = tpu.dynamic_rotate %14 by %c16_i32 dim 1 : vector<4x256xf32>, i32 -> vector<4x256xf32>
    %c1 = arith.constant 1 : index
    %c0_11 = arith.constant 0 : index
    %21 = vector.load %arg5[%c1, %c0_11] : memref<9x256xf32, #tpu.memory_space<vmem>>, vector<1x256xf32>
    %22 = vector.broadcast %21 : vector<1x256xf32> to vector<4x256xf32>
    %23 = arith.mulf %20, %22 : vector<4x256xf32>
    %24 = arith.truncf %23 : vector<4x256xf32> to vector<4x256xbf16>
    %c15_i32 = arith.constant 15 : i32
    %25 = tpu.dynamic_rotate %14 by %c15_i32 dim 1 : vector<4x256xf32>, i32 -> vector<4x256xf32>
    %c2 = arith.constant 2 : index
    %c0_12 = arith.constant 0 : index
    %26 = vector.load %arg5[%c2, %c0_12] : memref<9x256xf32, #tpu.memory_space<vmem>>, vector<1x256xf32>
    %27 = vector.broadcast %26 : vector<1x256xf32> to vector<4x256xf32>
    %28 = arith.mulf %25, %27 : vector<4x256xf32>
    %29 = arith.truncf %28 : vector<4x256xf32> to vector<4x256xbf16>
    %c1_i32 = arith.constant 1 : i32
    %30 = tpu.dynamic_rotate %14 by %c1_i32 dim 1 : vector<4x256xf32>, i32 -> vector<4x256xf32>
    %c3 = arith.constant 3 : index
    %c0_13 = arith.constant 0 : index
    %31 = vector.load %arg5[%c3, %c0_13] : memref<9x256xf32, #tpu.memory_space<vmem>>, vector<1x256xf32>
    %32 = vector.broadcast %31 : vector<1x256xf32> to vector<4x256xf32>
    %33 = arith.mulf %30, %32 : vector<4x256xf32>
    %34 = arith.truncf %33 : vector<4x256xf32> to vector<4x256xbf16>
    %c4 = arith.constant 4 : index
    %c0_14 = arith.constant 0 : index
    %35 = vector.load %arg5[%c4, %c0_14] : memref<9x256xf32, #tpu.memory_space<vmem>>, vector<1x256xf32>
    %36 = vector.broadcast %35 : vector<1x256xf32> to vector<4x256xf32>
    %37 = arith.mulf %14, %36 : vector<4x256xf32>
    %38 = arith.truncf %37 : vector<4x256xf32> to vector<4x256xbf16>
    %c255_i32 = arith.constant 255 : i32
    %39 = tpu.dynamic_rotate %14 by %c255_i32 dim 1 : vector<4x256xf32>, i32 -> vector<4x256xf32>
    %c5 = arith.constant 5 : index
    %c0_15 = arith.constant 0 : index
    %40 = vector.load %arg5[%c5, %c0_15] : memref<9x256xf32, #tpu.memory_space<vmem>>, vector<1x256xf32>
    %41 = vector.broadcast %40 : vector<1x256xf32> to vector<4x256xf32>
    %42 = arith.mulf %39, %41 : vector<4x256xf32>
    %43 = arith.truncf %42 : vector<4x256xf32> to vector<4x256xbf16>
    %c241_i32 = arith.constant 241 : i32
    %44 = tpu.dynamic_rotate %14 by %c241_i32 dim 1 : vector<4x256xf32>, i32 -> vector<4x256xf32>
    %c6 = arith.constant 6 : index
    %c0_16 = arith.constant 0 : index
    %45 = vector.load %arg5[%c6, %c0_16] : memref<9x256xf32, #tpu.memory_space<vmem>>, vector<1x256xf32>
    %46 = vector.broadcast %45 : vector<1x256xf32> to vector<4x256xf32>
    %47 = arith.mulf %44, %46 : vector<4x256xf32>
    %48 = arith.truncf %47 : vector<4x256xf32> to vector<4x256xbf16>
    %c240_i32 = arith.constant 240 : i32
    %49 = tpu.dynamic_rotate %14 by %c240_i32 dim 1 : vector<4x256xf32>, i32 -> vector<4x256xf32>
    %c7 = arith.constant 7 : index
    %c0_17 = arith.constant 0 : index
    %50 = vector.load %arg5[%c7, %c0_17] : memref<9x256xf32, #tpu.memory_space<vmem>>, vector<1x256xf32>
    %51 = vector.broadcast %50 : vector<1x256xf32> to vector<4x256xf32>
    %52 = arith.mulf %49, %51 : vector<4x256xf32>
    %53 = arith.truncf %52 : vector<4x256xf32> to vector<4x256xbf16>
    %c239_i32 = arith.constant 239 : i32
    %54 = tpu.dynamic_rotate %14 by %c239_i32 dim 1 : vector<4x256xf32>, i32 -> vector<4x256xf32>
    %c8 = arith.constant 8 : index
    %c0_18 = arith.constant 0 : index
    %55 = vector.load %arg5[%c8, %c0_18] : memref<9x256xf32, #tpu.memory_space<vmem>>, vector<1x256xf32>
    %56 = vector.broadcast %55 : vector<1x256xf32> to vector<4x256xf32>
    %57 = arith.mulf %54, %56 : vector<4x256xf32>
    %58 = arith.truncf %57 : vector<4x256xf32> to vector<4x256xbf16>
    %59 = tpu.concatenate %19, %24, %29, %34, %38, %43, %48, %53, %58 in 0 : vector<4x256xbf16>, vector<4x256xbf16>, vector<4x256xbf16>, vector<4x256xbf16>, vector<4x256xbf16>, vector<4x256xbf16>, vector<4x256xbf16>, vector<4x256xbf16>, vector<4x256xbf16> -> vector<36x256xbf16>
    %cst_19 = arith.constant 0.000000e+00 : f32
    %60 = vector.broadcast %cst_19 : f32 to vector<8x1xf32>
    %cst_20 = arith.constant 0.000000e+00 : f32
    %61 = vector.broadcast %cst_20 : f32 to vector<8x1xf32>
    %c0_21 = arith.constant 0 : index
    %c0_22 = arith.constant 0 : index
    %c0_23 = arith.constant 0 : index
    %62 = vector.load %arg6[%c0_21, %c0_22, %c0_23] : memref<4x8x36xbf16, #tpu.memory_space<vmem>>, vector<1x8x36xbf16>
    %63 = vector.shape_cast %62 : vector<1x8x36xbf16> to vector<8x36xbf16>
    %cst_24 = arith.constant dense<0.000000e+00> : vector<8x256xf32>
    %64 = tpu.matmul %63, %59, %cst_24 {dimension_numbers = #tpu.dot_dimension_numbers<[1], [0], [0], [1], [0, 0, 1, 1], [], []>} : vector<8x36xbf16>, vector<36x256xbf16>, vector<8x256xf32> -> vector<8x256xf32>
    %65 = arith.truncf %64 : vector<8x256xf32> to vector<8x256xbf16>
    %c0_25 = arith.constant 0 : index
    %c0_26 = arith.constant 0 : index
    %c0_27 = arith.constant 0 : index
    %c0_28 = arith.constant 0 : index
    %66 = vector.load %arg7[%c0_25, %c0_26, %c0_27, %c0_28] : memref<1x4x8x256xbf16, #tpu.memory_space<vmem>>, vector<1x1x8x256xbf16>
    %67 = vector.shape_cast %66 : vector<1x1x8x256xbf16> to vector<8x256xbf16>
    %68 = vector.shape_cast %65 : vector<8x256xbf16> to vector<1x1x8x256xbf16>
    tpu.vector_store %arg7[%c0_25, %c0_26, %c0_27, %c0_28], %68 {strides = array<i32>} : memref<1x4x8x256xbf16, #tpu.memory_space<vmem>>, vector<1x1x8x256xbf16>,
    %cst_29 = arith.constant dense<0.000000e+00> : vector<8xf32>
    %69 = vector.multi_reduction <add>, %64, %cst_29 [1] : vector<8x256xf32> to vector<8xf32>
    %70 = vector.shape_cast %69 : vector<8xf32> to vector<8x1xf32>
    %71 = arith.addf %60, %70 : vector<8x1xf32>
    %72 = arith.mulf %64, %64 : vector<8x256xf32>
    %cst_30 = arith.constant dense<0.000000e+00> : vector<8xf32>
    %73 = vector.multi_reduction <add>, %72, %cst_30 [1] : vector<8x256xf32> to vector<8xf32>
    %74 = vector.shape_cast %73 : vector<8xf32> to vector<8x1xf32>
    %75 = arith.addf %61, %74 : vector<8x1xf32>
    %c1_31 = arith.constant 1 : index
    %c0_32 = arith.constant 0 : index
    %c0_33 = arith.constant 0 : index
    %76 = vector.load %arg6[%c1_31, %c0_32, %c0_33] : memref<4x8x36xbf16, #tpu.memory_space<vmem>>, vector<1x8x36xbf16>
    %77 = vector.shape_cast %76 : vector<1x8x36xbf16> to vector<8x36xbf16>
    %cst_34 = arith.constant dense<0.000000e+00> : vector<8x256xf32>
    %78 = tpu.matmul %77, %59, %cst_34 {dimension_numbers = #tpu.dot_dimension_numbers<[1], [0], [0], [1], [0, 0, 1, 1], [], []>} : vector<8x36xbf16>, vector<36x256xbf16>, vector<8x256xf32> -> vector<8x256xf32>
    %79 = arith.truncf %78 : vector<8x256xf32> to vector<8x256xbf16>
    %c0_35 = arith.constant 0 : index
    %c1_36 = arith.constant 1 : index
    %c0_37 = arith.constant 0 : index
    %c0_38 = arith.constant 0 : index
    %80 = vector.load %arg7[%c0_35, %c1_36, %c0_37, %c0_38] : memref<1x4x8x256xbf16, #tpu.memory_space<vmem>>, vector<1x1x8x256xbf16>
    %81 = vector.shape_cast %80 : vector<1x1x8x256xbf16> to vector<8x256xbf16>
    %82 = vector.shape_cast %79 : vector<8x256xbf16> to vector<1x1x8x256xbf16>
    tpu.vector_store %arg7[%c0_35, %c1_36, %c0_37, %c0_38], %82 {strides = array<i32>} : memref<1x4x8x256xbf16, #tpu.memory_space<vmem>>, vector<1x1x8x256xbf16>,
    %cst_39 = arith.constant dense<0.000000e+00> : vector<8xf32>
    %83 = vector.multi_reduction <add>, %78, %cst_39 [1] : vector<8x256xf32> to vector<8xf32>
    %84 = vector.shape_cast %83 : vector<8xf32> to vector<8x1xf32>
    %85 = arith.addf %71, %84 : vector<8x1xf32>
    %86 = arith.mulf %78, %78 : vector<8x256xf32>
    %cst_40 = arith.constant dense<0.000000e+00> : vector<8xf32>
    %87 = vector.multi_reduction <add>, %86, %cst_40 [1] : vector<8x256xf32> to vector<8xf32>
    %88 = vector.shape_cast %87 : vector<8xf32> to vector<8x1xf32>
    %89 = arith.addf %75, %88 : vector<8x1xf32>
    %c2_41 = arith.constant 2 : index
    %c0_42 = arith.constant 0 : index
    %c0_43 = arith.constant 0 : index
    %90 = vector.load %arg6[%c2_41, %c0_42, %c0_43] : memref<4x8x36xbf16, #tpu.memory_space<vmem>>, vector<1x8x36xbf16>
    %91 = vector.shape_cast %90 : vector<1x8x36xbf16> to vector<8x36xbf16>
    %cst_44 = arith.constant dense<0.000000e+00> : vector<8x256xf32>
    %92 = tpu.matmul %91, %59, %cst_44 {dimension_numbers = #tpu.dot_dimension_numbers<[1], [0], [0], [1], [0, 0, 1, 1], [], []>} : vector<8x36xbf16>, vector<36x256xbf16>, vector<8x256xf32> -> vector<8x256xf32>
    %93 = arith.truncf %92 : vector<8x256xf32> to vector<8x256xbf16>
    %c0_45 = arith.constant 0 : index
    %c2_46 = arith.constant 2 : index
    %c0_47 = arith.constant 0 : index
    %c0_48 = arith.constant 0 : index
    %94 = vector.load %arg7[%c0_45, %c2_46, %c0_47, %c0_48] : memref<1x4x8x256xbf16, #tpu.memory_space<vmem>>, vector<1x1x8x256xbf16>
    %95 = vector.shape_cast %94 : vector<1x1x8x256xbf16> to vector<8x256xbf16>
    %96 = vector.shape_cast %93 : vector<8x256xbf16> to vector<1x1x8x256xbf16>
    tpu.vector_store %arg7[%c0_45, %c2_46, %c0_47, %c0_48], %96 {strides = array<i32>} : memref<1x4x8x256xbf16, #tpu.memory_space<vmem>>, vector<1x1x8x256xbf16>,
    %cst_49 = arith.constant dense<0.000000e+00> : vector<8xf32>
    %97 = vector.multi_reduction <add>, %92, %cst_49 [1] : vector<8x256xf32> to vector<8xf32>
    %98 = vector.shape_cast %97 : vector<8xf32> to vector<8x1xf32>
    %99 = arith.addf %85, %98 : vector<8x1xf32>
    %100 = arith.mulf %92, %92 : vector<8x256xf32>
    %cst_50 = arith.constant dense<0.000000e+00> : vector<8xf32>
    %101 = vector.multi_reduction <add>, %100, %cst_50 [1] : vector<8x256xf32> to vector<8xf32>
    %102 = vector.shape_cast %101 : vector<8xf32> to vector<8x1xf32>
    %103 = arith.addf %89, %102 : vector<8x1xf32>
    %c3_51 = arith.constant 3 : index
    %c0_52 = arith.constant 0 : index
    %c0_53 = arith.constant 0 : index
    %104 = vector.load %arg6[%c3_51, %c0_52, %c0_53] : memref<4x8x36xbf16, #tpu.memory_space<vmem>>, vector<1x8x36xbf16>
    %105 = vector.shape_cast %104 : vector<1x8x36xbf16> to vector<8x36xbf16>
    %cst_54 = arith.constant dense<0.000000e+00> : vector<8x256xf32>
    %106 = tpu.matmul %105, %59, %cst_54 {dimension_numbers = #tpu.dot_dimension_numbers<[1], [0], [0], [1], [0, 0, 1, 1], [], []>} : vector<8x36xbf16>, vector<36x256xbf16>, vector<8x256xf32> -> vector<8x256xf32>
    %107 = arith.truncf %106 : vector<8x256xf32> to vector<8x256xbf16>
    %c0_55 = arith.constant 0 : index
    %c3_56 = arith.constant 3 : index
    %c0_57 = arith.constant 0 : index
    %c0_58 = arith.constant 0 : index
    %108 = vector.load %arg7[%c0_55, %c3_56, %c0_57, %c0_58] : memref<1x4x8x256xbf16, #tpu.memory_space<vmem>>, vector<1x1x8x256xbf16>
    %109 = vector.shape_cast %108 : vector<1x1x8x256xbf16> to vector<8x256xbf16>
    %110 = vector.shape_cast %107 : vector<8x256xbf16> to vector<1x1x8x256xbf16>
    tpu.vector_store %arg7[%c0_55, %c3_56, %c0_57, %c0_58], %110 {strides = array<i32>} : memref<1x4x8x256xbf16, #tpu.memory_space<vmem>>, vector<1x1x8x256xbf16>,
    %cst_59 = arith.constant dense<0.000000e+00> : vector<8xf32>
    %111 = vector.multi_reduction <add>, %106, %cst_59 [1] : vector<8x256xf32> to vector<8xf32>
    %112 = vector.shape_cast %111 : vector<8xf32> to vector<8x1xf32>
    %113 = arith.addf %99, %112 : vector<8x1xf32>
    %114 = arith.mulf %106, %106 : vector<8x256xf32>
    %cst_60 = arith.constant dense<0.000000e+00> : vector<8xf32>
    %115 = vector.multi_reduction <add>, %114, %cst_60 [1] : vector<8x256xf32> to vector<8xf32>
    %116 = vector.shape_cast %115 : vector<8xf32> to vector<8x1xf32>
    %117 = arith.addf %103, %116 : vector<8x1xf32>
    %c0_61 = arith.constant 0 : index
    %c0_62 = arith.constant 0 : index
    %c0_63 = arith.constant 0 : index
    %118 = vector.load %arg8[%c0_61, %c0_62, %c0_63] : memref<1x8x2xf32, #tpu.memory_space<vmem>>, vector<1x8x1xf32>
    %119 = vector.shape_cast %118 : vector<1x8x1xf32> to vector<8x1xf32>
    %120 = vector.shape_cast %113 : vector<8x1xf32> to vector<1x8x1xf32>
    tpu.vector_store %arg8[%c0_61, %c0_62, %c0_63], %120 {strides = array<i32>} : memref<1x8x2xf32, #tpu.memory_space<vmem>>, vector<1x8x1xf32>,
    %c0_64 = arith.constant 0 : index
    %c0_65 = arith.constant 0 : index
    %c1_66 = arith.constant 1 : index
    %121 = vector.load %arg8[%c0_64, %c0_65, %c1_66] : memref<1x8x2xf32, #tpu.memory_space<vmem>>, vector<1x8x1xf32>
    %122 = vector.shape_cast %121 : vector<1x8x1xf32> to vector<8x1xf32>
    %123 = vector.shape_cast %117 : vector<8x1xf32> to vector<1x8x1xf32>
    tpu.vector_store %arg8[%c0_64, %c0_65, %c1_66], %123 {strides = array<i32>} : memref<1x8x2xf32, #tpu.memory_space<vmem>>, vector<1x8x1xf32>,
    return
  }
  func.func @transform_0(%arg0: i32) -> (i32, i32, i32) {
    %c0_i32 = arith.constant 0 : i32
    %c0_i32_0 = arith.constant 0 : i32
    %c0_i32_1 = arith.constant 0 : i32
    return %arg0, %c0_i32, %c0_i32_0 : i32, i32, i32
  }
  func.func @transform_1(%arg0: i32) -> (i32, i32) {
    %c0_i32 = arith.constant 0 : i32
    %c0_i32_0 = arith.constant 0 : i32
    %c0_i32_1 = arith.constant 0 : i32
    return %c0_i32, %c0_i32_0 : i32, i32
  }
  func.func @transform_2(%arg0: i32) -> (i32, i32) {
    %c0_i32 = arith.constant 0 : i32
    %c0_i32_0 = arith.constant 0 : i32
    %c0_i32_1 = arith.constant 0 : i32
    return %c0_i32, %c0_i32_0 : i32, i32
  }
  func.func @transform_3(%arg0: i32) -> (i32, i32, i32) {
    %c0_i32 = arith.constant 0 : i32
    %c0_i32_0 = arith.constant 0 : i32
    %c0_i32_1 = arith.constant 0 : i32
    return %arg0, %c0_i32, %c0_i32_0 : i32, i32, i32
  }
  func.func @transform_4(%arg0: i32) -> (i32, i32) {
    %c0_i32 = arith.constant 0 : i32
    %c0_i32_0 = arith.constant 0 : i32
    %c0_i32_1 = arith.constant 0 : i32
    return %c0_i32, %c0_i32_0 : i32, i32
  }
  func.func @transform_5(%arg0: i32) -> (i32, i32, i32) {
    %c0_i32 = arith.constant 0 : i32
    %c0_i32_0 = arith.constant 0 : i32
    %c0_i32_1 = arith.constant 0 : i32
    %c0_i32_2 = arith.constant 0 : i32
    return %c0_i32, %c0_i32_0, %c0_i32_1 : i32, i32, i32
  }
  func.func @transform_6(%arg0: i32) -> (i32, i32, i32, i32) {
    %c0_i32 = arith.constant 0 : i32
    %c0_i32_0 = arith.constant 0 : i32
    %c0_i32_1 = arith.constant 0 : i32
    %c0_i32_2 = arith.constant 0 : i32
    return %arg0, %c0_i32, %c0_i32_0, %c0_i32_1 : i32, i32, i32, i32
  }
  func.func @transform_7(%arg0: i32) -> (i32, i32, i32) {
    %c0_i32 = arith.constant 0 : i32
    %c0_i32_0 = arith.constant 0 : i32
    %c0_i32_1 = arith.constant 0 : i32
    return %arg0, %c0_i32, %c0_i32_0 : i32, i32, i32
  }
}

module attributes {stable_mosaic.version = 11 : i64} {
  func.func @kernel(%arg0: i32, %arg1: i32, %arg2: memref<1x4x8x256xbf16, #tpu.memory_space<vmem>>, %arg3: memref<8x1xf32, #tpu.memory_space<vmem>>, %arg4: memref<8x1xf32, #tpu.memory_space<vmem>>, %arg5: memref<1x4x8x256xf32, #tpu.memory_space<vmem>>) attributes {dimension_semantics = [#tpu.dimension_semantics<parallel>, #tpu.dimension_semantics<parallel>], iteration_bounds = array<i64: 2, 1>, scalar_prefetch = 0 : i64, scratch_operands = 0 : i64, tpu.core_type = #tpu.core_type<tc>, window_params = [{transform_indices = @transform_0, window_bounds = array<i64: 1, 4, 8, 256>}, {pipeline_mode = #tpu.pipeline_mode<synchronous>, transform_indices = @transform_1, window_bounds = array<i64: 8, 1>}, {pipeline_mode = #tpu.pipeline_mode<synchronous>, transform_indices = @transform_2, window_bounds = array<i64: 8, 1>}, {transform_indices = @transform_3, window_bounds = array<i64: 1, 4, 8, 256>}]} {
    %c0 = arith.constant 0 : index
    %c0_0 = arith.constant 0 : index
    %c0_1 = arith.constant 0 : index
    %c0_2 = arith.constant 0 : index
    %0 = vector.load %arg2[%c0, %c0_0, %c0_1, %c0_2] : memref<1x4x8x256xbf16, #tpu.memory_space<vmem>>, vector<1x4x8x256xbf16>
    %1 = arith.extf %0 : vector<1x4x8x256xbf16> to vector<1x4x8x256xf32>
    %c0_3 = arith.constant 0 : index
    %c0_4 = arith.constant 0 : index
    %2 = vector.load %arg3[%c0_3, %c0_4] : memref<8x1xf32, #tpu.memory_space<vmem>>, vector<8x1xf32>
    %3 = vector.shape_cast %2 : vector<8x1xf32> to vector<1x1x8x1xf32>
    %4 = vector.broadcast %3 : vector<1x1x8x1xf32> to vector<1x4x8x256xf32>
    %5 = arith.mulf %1, %4 : vector<1x4x8x256xf32>
    %c0_5 = arith.constant 0 : index
    %c0_6 = arith.constant 0 : index
    %6 = vector.load %arg4[%c0_5, %c0_6] : memref<8x1xf32, #tpu.memory_space<vmem>>, vector<8x1xf32>
    %7 = vector.shape_cast %6 : vector<8x1xf32> to vector<1x1x8x1xf32>
    %8 = vector.broadcast %7 : vector<1x1x8x1xf32> to vector<1x4x8x256xf32>
    %9 = arith.addf %5, %8 : vector<1x4x8x256xf32>
    %cst = arith.constant 0.000000e+00 : f32
    %10 = vector.broadcast %cst : f32 to vector<1x4x8x256xf32>
    %11 = arith.maximumf %9, %10 : vector<1x4x8x256xf32>
    %c0_7 = arith.constant 0 : index
    %c0_8 = arith.constant 0 : index
    %c0_9 = arith.constant 0 : index
    %c0_10 = arith.constant 0 : index
    %12 = vector.load %arg5[%c0_7, %c0_8, %c0_9, %c0_10] : memref<1x4x8x256xf32, #tpu.memory_space<vmem>>, vector<1x4x8x256xf32>
    tpu.vector_store %arg5[%c0_7, %c0_8, %c0_9, %c0_10], %11 {strides = array<i32>} : memref<1x4x8x256xf32, #tpu.memory_space<vmem>>, vector<1x4x8x256xf32>,
    return
  }
  func.func @transform_0(%arg0: i32, %arg1: i32) -> (i32, i32, i32, i32) {
    %c0_i32 = arith.constant 0 : i32
    %c0_i32_0 = arith.constant 0 : i32
    %c0_i32_1 = arith.constant 0 : i32
    return %arg0, %c0_i32, %c0_i32_0, %arg1 : i32, i32, i32, i32
  }
  func.func @transform_1(%arg0: i32, %arg1: i32) -> (i32, i32) {
    %c0_i32 = arith.constant 0 : i32
    %c0_i32_0 = arith.constant 0 : i32
    %c0_i32_1 = arith.constant 0 : i32
    return %c0_i32, %c0_i32_0 : i32, i32
  }
  func.func @transform_2(%arg0: i32, %arg1: i32) -> (i32, i32) {
    %c0_i32 = arith.constant 0 : i32
    %c0_i32_0 = arith.constant 0 : i32
    %c0_i32_1 = arith.constant 0 : i32
    return %c0_i32, %c0_i32_0 : i32, i32
  }
  func.func @transform_3(%arg0: i32, %arg1: i32) -> (i32, i32, i32, i32) {
    %c0_i32 = arith.constant 0 : i32
    %c0_i32_0 = arith.constant 0 : i32
    %c0_i32_1 = arith.constant 0 : i32
    return %arg0, %c0_i32, %c0_i32_0, %arg1 : i32, i32, i32, i32
  }
}

</mosaic_0001>

<llo_original>
// kernel: up_layer_forward.5
$region0: #{up_layer_forward.5}
  #allocation0 [shape = 'u32[]', space=smem, size = 0x4, offset = 0x4, fixed_abs, tag = 'smem constant byte address 0x4 - core index']
  #allocation1 [shape = 'u32[144,128]{1,0:T(1,128)}', space=vmem, size = 0x12000, scoped, tag = 'internal scratch']
  %s0 = inlined_call_operand.vmem [shape: bf16[2,4,256], index: 0, kind: input, shape index: {}]
  %s1 = inlined_call_operand.vmem [shape: f32[4,1], index: 1, kind: input, shape index: {}]
  %s2 = inlined_call_operand.vmem [shape: f32[4,1], index: 2, kind: input, shape index: {}]
  %s3 = inlined_call_operand.vmem [shape: f32[9,256], index: 3, kind: input, shape index: {}]
  %s4 = inlined_call_operand.vmem [shape: bf16[1,4,36], index: 4, kind: input, shape index: {}]
  %s5 = inlined_call_operand.vmem [shape: bf16[2,4,256], index: 5, kind: output, shape index: {0}]
  %s6 = inlined_call_operand.vmem [shape: f32[2,4,2], index: 6, kind: output, shape index: {1}]
  %7 = xla_tuple %s5, %s6
  %s8 = sld [smem:[#allocation0]]
  $region61: #{up_layer_forward.5} parent=0
    _
  %s10 = ssub.s32 1, %s8
  %s11 = scalar_select 0, %s10, %s8
  loop: start=0, step=1, limit=4
  $region2: #{up_layer_forward.5} parent=0 // loop_pre_header
    _
  $region3: #{up_layer_forward.5} parent=0 // loop_header
    %s13 = sphi 0, %s17
    %p14 = scmp.ge.s32.totalorder %s13, 4
    %s23 = sphi 0, %s25
    %s26 = sphi 0, %s23
    %s27 = sphi 0, %s26
    %s43 = sphi 0, %s27
    %s47 = sphi 0, %s47
    %s49 = sphi 0, %s47
    %s50 = sphi 0, %s49
    %s64 = sphi 0, %s50
    %s68 = sphi 0, %s68
    %s70 = sphi 0, %s68
    %s71 = sphi 0, %s70
    %s85 = sphi 0, %s71
    %s89 = sphi 0, %s89
    %s91 = sphi 0, %s89
    %s92 = sphi 0, %s91
    %s106 = sphi 0, %s92
    %s110 = sphi 0, %s110
    %s112 = sphi 0, %s110
    %s113 = sphi 0, %s112
    %s127 = sphi 0, %s113
    %s133 = sphi 0, %s135
    %s136 = sphi 0, %s133
    %s137 = sphi 0, %s136
    %s153 = sphi 0, %s137
    %s159 = sphi 0, %s161
    %s162 = sphi 0, %s159
    %s163 = sphi 0, %s162
    %s179 = sphi 0, %s163
  $region4: #{up_layer_forward.5} parent=0 // loop_header_branch
    %16 = sbr.rel (%p14) target = $region8
  $region5: #{up_layer_forward.5} parent=0 // loop_body
    %s18 = ssub.s32 %s13, 1
    %s19 = ssub.s32 %s13, 2
    %s20 = sadd.s32 %s13, 1
    %s21 = ssub.s32 %s13, %s20
    %p22 = scmp.eq.s32.totalorder %s21, 0
    %s24 = sadd.s32 %s23, 1
    %s25 = scalar_select %p22, %s23, %s24
    %p28 = pneg %p22
    %p29 = scmp.eq.s32.totalorder %s13, 1
    %p30 = por %p28, %p29
    %p31 = scmp.ne.s32.totalorder %s23, %s26
    %p32 = scmp.eq.s32.totalorder %s13, 0
    %p33 = por %p31, %p32
    %p34 = scmp.ne.s32.totalorder %s23, %s26
    %p35 = scmp.eq.s32.totalorder %s18, 1
    %p36 = por %p34, %p35
    %p37 = scmp.ne.s32.totalorder %s26, %s27
    %p38 = scmp.eq.s32.totalorder %s18, 0
    %p39 = por %p37, %p38
    %p40 = scmp.ne.s32.totalorder %s26, %s27
    %p41 = scmp.eq.s32.totalorder %s19, 1
    %p42 = por %p40, %p41
    %p44 = scmp.ne.s32.totalorder %s27, %s43
    %p45 = scmp.eq.s32.totalorder %s19, 0
    %p46 = por %p44, %p45
    %s48 = sadd.s32 %s47, 1
    %p51 = scmp.eq.s32.totalorder %s13, 1
    %p52 = scmp.ne.s32.totalorder %s47, %s49
    %p53 = scmp.eq.s32.totalorder %s13, 0
    %p54 = por %p52, %p53
    %p55 = scmp.ne.s32.totalorder %s47, %s49
    %p56 = scmp.eq.s32.totalorder %s18, 1
    %p57 = por %p55, %p56
    %p58 = scmp.ne.s32.totalorder %s49, %s50
    %p59 = scmp.eq.s32.totalorder %s18, 0
    %p60 = por %p58, %p59
    %p61 = scmp.ne.s32.totalorder %s49, %s50
    %p62 = scmp.eq.s32.totalorder %s19, 1
    %p63 = por %p61, %p62
    %p65 = scmp.ne.s32.totalorder %s50, %s64
    %p66 = scmp.eq.s32.totalorder %s19, 0
    %p67 = por %p65, %p66
    %s69 = sadd.s32 %s68, 1
    %p72 = scmp.eq.s32.totalorder %s13, 1
    %p73 = scmp.ne.s32.totalorder %s68, %s70
    %p74 = scmp.eq.s32.totalorder %s13, 0
    %p75 = por %p73, %p74
    %p76 = scmp.ne.s32.totalorder %s68, %s70
    %p77 = scmp.eq.s32.totalorder %s18, 1
    %p78 = por %p76, %p77
    %p79 = scmp.ne.s32.totalorder %s70, %s71
    %p80 = scmp.eq.s32.totalorder %s18, 0
    %p81 = por %p79, %p80
    %p82 = scmp.ne.s32.totalorder %s70, %s71
    %p83 = scmp.eq.s32.totalorder %s19, 1
    %p84 = por %p82, %p83
    %p86 = scmp.ne.s32.totalorder %s71, %s85
    %p87 = scmp.eq.s32.totalorder %s19, 0
    %p88 = por %p86, %p87
    %s90 = sadd.s32 %s89, 1
    %p93 = scmp.eq.s32.totalorder %s13, 1
    %p94 = scmp.ne.s32.totalorder %s89, %s91
    %p95 = scmp.eq.s32.totalorder %s13, 0
    %p96 = por %p94, %p95
    %p97 = scmp.ne.s32.totalorder %s89, %s91
    %p98 = scmp.eq.s32.totalorder %s18, 1
    %p99 = por %p97, %p98
    %p100 = scmp.ne.s32.totalorder %s91, %s92
    %p101 = scmp.eq.s32.totalorder %s18, 0
    %p102 = por %p100, %p101
    %p103 = scmp.ne.s32.totalorder %s91, %s92
    %p104 = scmp.eq.s32.totalorder %s19, 1
    %p105 = por %p103, %p104
    %p107 = scmp.ne.s32.totalorder %s92, %s106
    %p108 = scmp.eq.s32.totalorder %s19, 0
    %p109 = por %p107, %p108
    %s111 = sadd.s32 %s110, 1
    %p114 = scmp.eq.s32.totalorder %s13, 1
    %p115 = scmp.ne.s32.totalorder %s110, %s112
    %p116 = scmp.eq.s32.totalorder %s13, 0
    %p117 = por %p115, %p116
    %p118 = scmp.ne.s32.totalorder %s110, %s112
    %p119 = scmp.eq.s32.totalorder %s18, 1
    %p120 = por %p118, %p119
    %p121 = scmp.ne.s32.totalorder %s112, %s113
    %p122 = scmp.eq.s32.totalorder %s18, 0
    %p123 = por %p121, %p122
    %p124 = scmp.ne.s32.totalorder %s112, %s113
    %p125 = scmp.eq.s32.totalorder %s19, 1
    %p126 = por %p124, %p125
    %p128 = scmp.ne.s32.totalorder %s113, %s127
    %p129 = scmp.eq.s32.totalorder %s19, 0
    %p130 = por %p128, %p129
    %s131 = ssub.s32 %s13, %s20
    %p132 = scmp.eq.s32.totalorder %s131, 0
    %s134 = sadd.s32 %s133, 1
    %s135 = scalar_select %p132, %s133, %s134
    %p138 = pneg %p132
    %p139 = scmp.eq.s32.totalorder %s13, 1
    %p140 = por %p138, %p139
    %p141 = scmp.ne.s32.totalorder %s133, %s136
    %p142 = scmp.eq.s32.totalorder %s13, 0
    %p143 = por %p141, %p142
    %p144 = scmp.ne.s32.totalorder %s133, %s136
    %p145 = scmp.eq.s32.totalorder %s18, 1
    %p146 = por %p144, %p145
    %p147 = scmp.ne.s32.totalorder %s136, %s137
    %p148 = scmp.eq.s32.totalorder %s18, 0
    %p149 = por %p147, %p148
    %p150 = scmp.ne.s32.totalorder %s136, %s137
    %p151 = scmp.eq.s32.totalorder %s19, 1
    %p152 = por %p150, %p151
    %p154 = scmp.ne.s32.totalorder %s137, %s153
    %p155 = scmp.eq.s32.totalorder %s19, 0
    %p156 = por %p154, %p155
    %s157 = ssub.s32 %s13, %s20
    %p158 = scmp.eq.s32.totalorder %s157, 0
    %s160 = sadd.s32 %s159, 1
    %s161 = scalar_select %p158, %s159, %s160
    %p164 = pneg %p158
    %p165 = scmp.eq.s32.totalorder %s13, 1
    %p166 = por %p164, %p165
    %p167 = scmp.ne.s32.totalorder %s159, %s162
    %p168 = scmp.eq.s32.totalorder %s13, 0
    %p169 = por %p167, %p168
    %p170 = scmp.ne.s32.totalorder %s159, %s162
    %p171 = scmp.eq.s32.totalorder %s18, 1
    %p172 = por %p170, %p171
    %p173 = scmp.ne.s32.totalorder %s162, %s163
    %p174 = scmp.eq.s32.totalorder %s18, 0
    %p175 = por %p173, %p174
    %p176 = scmp.ne.s32.totalorder %s162, %s163
    %p177 = scmp.eq.s32.totalorder %s19, 1
    %p178 = por %p176, %p177
    %p180 = scmp.ne.s32.totalorder %s163, %s179
    %p181 = scmp.eq.s32.totalorder %s19, 0
    %p182 = por %p180, %p181
    %p183 = scmp.le.s32.totalorder 1, %s13
    %p184 = scmp.lt.s32.totalorder %s13, 3
    %p185 = pnand %p183, %p184
    %p186 = pneg %p185
    // Predicated region
    $region9: #{up_layer_forward.5} parent=5 // pred_check
      _
    $region10: #{up_layer_forward.5} parent=5 // pred_check_branch
      %188 = sbr.rel (%p185) target = $region12
    $region11: #{up_layer_forward.5} parent=5 // pred_region
      %s189 = ssub.s32 %s13, 1
      // Predicated region
      $region13: #{up_layer_forward.5} parent=11 // pred_check
        %p190 = pneg %p60
      $region14: #{up_layer_forward.5} parent=11 // pred_check_branch
        %192 = sbr.rel (%p190) target = $region16
      $region15: #{up_layer_forward.5} parent=11 // pred_region
        _
      $region16: #{up_layer_forward.5} parent=11 // pred_fallthru
        _
      // Predicated region
      $region17: #{up_layer_forward.5} parent=11 // pred_check
        %p193 = pneg %p81
      $region18: #{up_layer_forward.5} parent=11 // pred_check_branch
        %195 = sbr.rel (%p193) target = $region20
      $region19: #{up_layer_forward.5} parent=11 // pred_region
        _
      $region20: #{up_layer_forward.5} parent=11 // pred_fallthru
        _
      // Predicated region
      $region21: #{up_layer_forward.5} parent=11 // pred_check
        %p196 = pneg %p102
      $region22: #{up_layer_forward.5} parent=11 // pred_check_branch
        %198 = sbr.rel (%p196) target = $region24
      $region23: #{up_layer_forward.5} parent=11 // pred_region
        _
      $region24: #{up_layer_forward.5} parent=11 // pred_fallthru
        _
      // Predicated region
      $region25: #{up_layer_forward.5} parent=11 // pred_check
        %p199 = pneg %p123
      $region26: #{up_layer_forward.5} parent=11 // pred_check_branch
        %201 = sbr.rel (%p199) target = $region28
      $region27: #{up_layer_forward.5} parent=11 // pred_region
        _
      $region28: #{up_layer_forward.5} parent=11 // pred_fallthru
        _
    $region12: #{up_layer_forward.5} parent=5 // pred_fallthru
      _
    %p202 = scmp.lt.s32.totalorder %s13, 2
    // Predicated region
    $region29: #{up_layer_forward.5} parent=5 // pred_check
      %p203 = pneg %p202
    $region30: #{up_layer_forward.5} parent=5 // pred_check_branch
      %205 = sbr.rel (%p203) target = $region32
    $region31: #{up_layer_forward.5} parent=5 // pred_region
      // Predicated region
      $region33: #{up_layer_forward.5} parent=31 // pred_check
        %p206 = pneg %p33
      $region34: #{up_layer_forward.5} parent=31 // pred_check_branch
        %208 = sbr.rel (%p206) target = $region36
      $region35: #{up_layer_forward.5} parent=31 // pred_region
        %p209 = scmp.lt.s32.totalorder %s13, 1
        %s210 = scalar_select %p209, %s13, 1
        %s211 = smul.addr %s210, 2
        %s212 = smul.addr %s211, 2
        %s213 = scalar_lea.vmem %s0, %s212
      $region36: #{up_layer_forward.5} parent=31 // pred_fallthru
        _
    $region32: #{up_layer_forward.5} parent=5 // pred_fallthru
      _
    %p214 = scmp.le.s32.totalorder 1, %s13
    %p215 = scmp.lt.s32.totalorder %s13, 3
    %p216 = pnand %p214, %p215
    %p217 = pneg %p216
    // Predicated region
    $region37: #{up_layer_forward.5} parent=5 // pred_check
      _
    $region38: #{up_layer_forward.5} parent=5 // pred_check_branch
      %219 = sbr.rel (%p216) target = $region40
    $region39: #{up_layer_forward.5} parent=5 // pred_region
      %s220 = ssub.s32 %s13, 1
      %p221 = scmp.lt.s32.totalorder %s18, 1
      %s222 = scalar_select %p221, %s18, 1
      %s223 = smul.addr %s222, 2
      %s224 = smul.addr %s223, 2
      %s225 = scalar_lea.vmem %s0, %s224
      %p226 = pneg %p39
      %p227 = pneg %p36
      %p228 = pneg %p60
      %p229 = pneg %p57
      %p230 = pneg %p81
      %p231 = pneg %p78
      %p232 = pneg %p102
      %p233 = pneg %p99
      %p234 = pneg %p123
      %p235 = pneg %p120
      %p236 = pneg %p149
      %p237 = pneg %p146
      %p238 = scmp.lt.s32.totalorder %s18, 1
      %s239 = scalar_select %p238, %s18, 1
      %s240 = smul.addr %s239, 2
      %s241 = smul.addr %s240, 2
      %s242 = scalar_lea.vmem %s5, %s241
      %p243 = pneg %p175
      %p244 = pneg %p172
      %p245 = scmp.lt.s32.totalorder %s18, 1
      %s246 = scalar_select %p245, %s18, 1
      %s247 = smul.addr %s246, 4
      %s248 = scalar_lea.vmem %s6, %s247
      %p249 = scmp.lt.s32.totalorder %s18, 1
      %s250 = scalar_select %p249, %s18, 1
      %s251 = smul.addr %s250, 2
      %s252 = smul.addr %s251, 2
      %s253 = scalar_lea.vmem %s0, %s252
      %p254 = scmp.lt.s32.totalorder %s18, 1
      %s255 = scalar_select %p254, %s18, 1
      %s256 = smul.addr %s255, 2
      %s257 = smul.addr %s256, 2
      %s258 = scalar_lea.vmem %s5, %s257
      %p259 = scmp.lt.s32.totalorder %s18, 1
      %s260 = scalar_select %p259, %s18, 1
      %s261 = smul.addr %s260, 4
      %s262 = scalar_lea.vmem %s6, %s261
      %v264 = vld [vmem:[%s253] sm:$0xf]
      %v265 = vunpack.c.l.bf16 %v264
      %v266 = vld [vmem:[%s1] sm:$0xf]
      %268 = vset.pattern.permute.xlu0 0
      %269 = vperm.xlu0 %268, %v266
      %v270 = vpop.permute.xlu0 %269
      %v272 = vunpack.c.l.s4 839922192
      %v273 = vunpack.c.0.s8 %v272
      %v274 = vlaneseq
      %v275 = vshrl.u32 %v274, 7
      %v276 = vsub.s32 %v273, %v275
      %v277 = vrot.slane %v270, %v276
      %v279 = vmul.f32 %v265, %v277
      %v280 = vld [vmem:[%s2] sm:$0xf]
      %282 = vset.pattern.permute.xlu0 0
      %283 = vperm.xlu0 %282, %v280
      %v284 = vpop.permute.xlu0 %283
      %v286 = vunpack.c.l.s4 839922192
      %v287 = vunpack.c.0.s8 %v286
      %v288 = vlaneseq
      %v289 = vshrl.u32 %v288, 7
      %v290 = vsub.s32 %v287, %v289
      %v291 = vrot.slane %v284, %v290
      %v293 = vadd.f32 %v279, %v291
      %v294 = vmax.f32 %v293, 0.0
      %v296 = vcombine.high %v294, %v294
      %298 = vrot.lane.b32.xlu0 %v294, 17
      %v299 = vpop.permute.xlu0 %298
      %300 = vrot.lane.b32.xlu0 %v296, 17
      %v301 = vpop.permute.xlu0 %300
      %v302 = vlaneseq
      %v303 = vand.u32 %v302, 127
      %vm304 = vcmp.lt.s32.totalorder %v303, 17
      %v305 = vsel %vm304, %v299, %v301
      %v306 = vsel %vm304, %v301, %v299
      %v307 = vld [vmem:[%s3] ss:$8 sm:$0x3]
      %v309 = vlaneseq
      %v310 = vshrl.u32 %v309, 7
      %v311 = vsub.s32 0, %v310
      %v312 = vrot.slane %v307, %v311
      %v313 = vlaneseq
      %v314 = vshrl.u32 %v313, 7
      %v315 = vsub.s32 1, %v314
      %v316 = vrot.slane %v307, %v315
      %v319 = vmul.f32 %v306, %v312
      %v320 = vmul.f32 %v305, %v316
      %v321 = vpack.c.bf16 %v319, %v319
      %v322 = vpack.c.bf16 %v320, %v320
      %323 = vrot.lane.b32.xlu0 %v294, 16
      %v324 = vpop.permute.xlu0 %323
      %325 = vrot.lane.b32.xlu0 %v296, 16
      %v326 = vpop.permute.xlu0 %325
      %vm327 = vcmp.lt.s32.totalorder %v303, 16
      %v328 = vsel %vm327, %v324, %v326
      %v329 = vsel %vm327, %v326, %v324
      %s330 = scalar_lea.vmem %s3, 1
      %v331 = vld [vmem:[%s330] ss:$8 sm:$0x3]
      %v333 = vlaneseq
      %v334 = vshrl.u32 %v333, 7
      %v335 = vsub.s32 0, %v334
      %v336 = vrot.slane %v331, %v335
      %v337 = vlaneseq
      %v338 = vshrl.u32 %v337, 7
      %v339 = vsub.s32 1, %v338
      %v340 = vrot.slane %v331, %v339
      %v343 = vmul.f32 %v329, %v336
      %v344 = vmul.f32 %v328, %v340
      %v345 = vpack.c.bf16 %v343, %v343
      %v346 = vpack.c.bf16 %v344, %v344
      %347 = vrot.lane.b32.xlu0 %v294, 15
      %v348 = vpop.permute.xlu0 %347
      %349 = vrot.lane.b32.xlu0 %v296, 15
      %v350 = vpop.permute.xlu0 %349
      %vm351 = vcmp.lt.s32.totalorder %v303, 15
      %v352 = vsel %vm351, %v348, %v350
      %v353 = vsel %vm351, %v350, %v348
      %s354 = scalar_lea.vmem %s3, 2
      %v355 = vld [vmem:[%s354] ss:$8 sm:$0x3]
      %v357 = vlaneseq
      %v358 = vshrl.u32 %v357, 7
      %v359 = vsub.s32 0, %v358
      %v360 = vrot.slane %v355, %v359
      %v361 = vlaneseq
      %v362 = vshrl.u32 %v361, 7
      %v363 = vsub.s32 1, %v362
      %v364 = vrot.slane %v355, %v363
      %v367 = vmul.f32 %v353, %v360
      %v368 = vmul.f32 %v352, %v364
      %v369 = vpack.c.bf16 %v367, %v367
      %v370 = vpack.c.bf16 %v368, %v368
      %371 = vrot.lane.b32.xlu0 %v294, 1
      %v372 = vpop.permute.xlu0 %371
      %373 = vrot.lane.b32.xlu0 %v296, 1
      %v374 = vpop.permute.xlu0 %373
      %vm375 = vcmp.lt.s32.totalorder %v303, 1
      %v376 = vsel %vm375, %v372, %v374
      %v377 = vsel %vm375, %v374, %v372
      %s378 = scalar_lea.vmem %s3, 3
      %v379 = vld [vmem:[%s378] ss:$8 sm:$0x3]
      %v381 = vlaneseq
      %v382 = vshrl.u32 %v381, 7
      %v383 = vsub.s32 0, %v382
      %v384 = vrot.slane %v379, %v383
      %v385 = vlaneseq
      %v386 = vshrl.u32 %v385, 7
      %v387 = vsub.s32 1, %v386
      %v388 = vrot.slane %v379, %v387
      %v391 = vmul.f32 %v377, %v384
      %v392 = vmul.f32 %v376, %v388
      %v393 = vpack.c.bf16 %v391, %v391
      %v394 = vpack.c.bf16 %v392, %v392
      %s395 = scalar_lea.vmem %s3, 4
      %v396 = vld [vmem:[%s395] ss:$8 sm:$0x3]
      %v398 = vlaneseq
      %v399 = vshrl.u32 %v398, 7
      %v400 = vsub.s32 0, %v399
      %v401 = vrot.slane %v396, %v400
      %v402 = vlaneseq
      %v403 = vshrl.u32 %v402, 7
      %v404 = vsub.s32 1, %v403
      %v405 = vrot.slane %v396, %v404
      %v406 = vcombine.low %v401, %v405
      %v408 = vmul.f32 %v294, %v406
      %v410 = vcombine.high %v408, %v408
      %v412 = vpack.c.bf16 %v408, %v408
      %v413 = vpack.c.bf16 %v410, %v410
      %414 = vrot.lane.b32.xlu0 %v294, 127
      %v415 = vpop.permute.xlu0 %414
      %416 = vrot.lane.b32.xlu0 %v296, 127
      %v417 = vpop.permute.xlu0 %416
      %vm418 = vcmp.lt.s32.totalorder %v303, 127
      %v419 = vsel %vm418, %v415, %v417
      %v420 = vsel %vm418, %v417, %v415
      %s421 = scalar_lea.vmem %s3, 5
      %v422 = vld [vmem:[%s421] ss:$8 sm:$0x3]
      %v424 = vlaneseq
      %v425 = vshrl.u32 %v424, 7
      %v426 = vsub.s32 0, %v425
      %v427 = vrot.slane %v422, %v426
      %v428 = vlaneseq
      %v429 = vshrl.u32 %v428, 7
      %v430 = vsub.s32 1, %v429
      %v431 = vrot.slane %v422, %v430
      %v434 = vmul.f32 %v419, %v427
      %v435 = vmul.f32 %v420, %v431
      %v436 = vpack.c.bf16 %v434, %v434
      %v437 = vpack.c.bf16 %v435, %v435
      %438 = vrot.lane.b32.xlu0 %v294, 113
      %v439 = vpop.permute.xlu0 %438
      %440 = vrot.lane.b32.xlu0 %v296, 113
      %v441 = vpop.permute.xlu0 %440
      %vm442 = vcmp.lt.s32.totalorder %v303, 113
      %v443 = vsel %vm442, %v439, %v441
      %v444 = vsel %vm442, %v441, %v439
      %s445 = scalar_lea.vmem %s3, 6
      %v446 = vld [vmem:[%s445] ss:$8 sm:$0x3]
      %v448 = vlaneseq
      %v449 = vshrl.u32 %v448, 7
      %v450 = vsub.s32 0, %v449
      %v451 = vrot.slane %v446, %v450
      %v452 = vlaneseq
      %v453 = vshrl.u32 %v452, 7
      %v454 = vsub.s32 1, %v453
      %v455 = vrot.slane %v446, %v454
      %v458 = vmul.f32 %v443, %v451
      %v459 = vmul.f32 %v444, %v455
      %v460 = vpack.c.bf16 %v458, %v458
      %v461 = vpack.c.bf16 %v459, %v459
      %462 = vrot.lane.b32.xlu0 %v294, 112
      %v463 = vpop.permute.xlu0 %462
      %464 = vrot.lane.b32.xlu0 %v296, 112
      %v465 = vpop.permute.xlu0 %464
      %vm466 = vcmp.lt.s32.totalorder %v303, 112
      %v467 = vsel %vm466, %v463, %v465
      %v468 = vsel %vm466, %v465, %v463
      %s469 = scalar_lea.vmem %s3, 7
      %v470 = vld [vmem:[%s469] ss:$8 sm:$0x3]
      %v472 = vlaneseq
      %v473 = vshrl.u32 %v472, 7
      %v474 = vsub.s32 0, %v473
      %v475 = vrot.slane %v470, %v474
      %v476 = vlaneseq
      %v477 = vshrl.u32 %v476, 7
      %v478 = vsub.s32 1, %v477
      %v479 = vrot.slane %v470, %v478
      %v482 = vmul.f32 %v467, %v475
      %v483 = vmul.f32 %v468, %v479
      %v484 = vpack.c.bf16 %v482, %v482
      %v485 = vpack.c.bf16 %v483, %v483
      %486 = vrot.lane.b32.xlu0 %v294, 111
      %v487 = vpop.permute.xlu0 %486
      %488 = vrot.lane.b32.xlu0 %v296, 111
      %v489 = vpop.permute.xlu0 %488
      %vm490 = vcmp.lt.s32.totalorder %v303, 111
      %v491 = vsel %vm490, %v487, %v489
      %v492 = vsel %vm490, %v489, %v487
      %s493 = scalar_lea.vmem %s3, 16
      %v494 = vld [vmem:[%s493] ss:$8 sm:$0x3]
      %v496 = vlaneseq
      %v497 = vshrl.u32 %v496, 7
      %v498 = vsub.s32 0, %v497
      %v499 = vrot.slane %v494, %v498
      %v500 = vlaneseq
      %v501 = vshrl.u32 %v500, 7
      %v502 = vsub.s32 1, %v501
      %v503 = vrot.slane %v494, %v502
      %v506 = vmul.f32 %v491, %v499
      %v507 = vmul.f32 %v492, %v503
      %v508 = vpack.c.bf16 %v506, %v506
      %v509 = vpack.c.bf16 %v507, %v507
      %v512 = vrot.slane %v345, 6
      %v513 = vrot.slane %v346, 6
      %v516 = vrot.slane %v369, 4
      %v517 = vrot.slane %v370, 4
      %v520 = vrot.slane %v393, 2
      %v521 = vrot.slane %v394, 2
      %v524 = vrot.slane %v436, 6
      %v525 = vrot.slane %v437, 6
      %v528 = vrot.slane %v460, 4
      %v529 = vrot.slane %v461, 4
      %v532 = vrot.slane %v484, 2
      %v533 = vrot.slane %v485, 2
      %vm534 = vcmask 1041408
      %v537 = vsel %vm534, %v321, %v512
      %v540 = vsel %vm534, %v322, %v513
      %vm541 = vcmask 1043456
      %v543 = vsel %vm541, %v537, %v516
      %v545 = vsel %vm541, %v540, %v517
      %vm546 = vcmask 1045504
      %v548 = vsel %vm546, %v543, %v520
      %v551 = vsel %vm546, %v545, %v521
      %v555 = vsel %vm534, %v412, %v524
      %v558 = vsel %vm534, %v413, %v525
      %v560 = vsel %vm541, %v555, %v528
      %v562 = vsel %vm541, %v558, %v529
      %v564 = vsel %vm546, %v560, %v532
      %v567 = vsel %vm546, %v562, %v533
      %v569 = vld [vmem:[%s4] sm:$0x3]
      %vm570 = vcmask 293888
      %v572 = vsel %vm570, %v569, 0
      %v575 = vsel %vm534, %v508, 0
      %v578 = vsel %vm534, %v509, 0
      %580 = vmatprep.subr.bf16.mxu0 %v551
      %581 = vmatpush1.bf16.msra.mxu0 %v548
      %582 = vmatprep.subr.bf16.mxu0 %v567
      %583 = vmatpush1.bf16.msra.mxu0 %v564
      %584 = vmatprep.subr.bf16.mxu0 %v578
      %585 = vmatpush1.bf16.msra.mxu0 %v575
      %586 = vmatprep.subr.bf16.mxu0 0
      %587 = vmatpush1.bf16.msra.mxu0 0
      %588 = vmatprep.subr.bf16.mxu0 0
      %589 = vmatpush1.bf16.msra.mxu0 0
      %590 = vmatprep.subr.bf16.mxu0 0
      %591 = vmatpush1.bf16.msra.mxu0 0
      %592 = vmatprep.subr.bf16.mxu0 0
      %593 = vmatpush1.bf16.msra.mxu0 0
      %594 = vmatprep.subr.bf16.mxu0 0
      %595 = vmatpush1.bf16.msra.mxu0 0
      %596 = vmatprep.subr.bf16.mxu0 0
      %597 = vmatpush1.bf16.msra.mxu0 0
      %598 = vmatprep.subr.bf16.mxu0 0
      %599 = vmatpush1.bf16.msra.mxu0 0
      %600 = vmatprep.subr.bf16.mxu0 0
      %601 = vmatpush1.bf16.msra.mxu0 0
      %602 = vmatprep.subr.bf16.mxu0 0
      %603 = vmatpush1.bf16.msra.mxu0 0
      %604 = vmatprep.subr.bf16.mxu0 0
      %605 = vmatpush1.bf16.msra.mxu0 0
      %606 = vmatprep.subr.bf16.mxu0 0
      %607 = vmatpush1.bf16.msra.mxu0 0
      %608 = vmatprep.subr.bf16.mxu0 0
      %609 = vmatpush1.bf16.msra.mxu0 0
      %610 = vmatprep.subr.bf16.mxu0 0
      %611 = vmatpush1.bf16.msra.mxu0 0
      %612 = vmatprep.mubr.bf16.mxu0 0
      %613 = vmatmul.mubr.bf16.gmra.mrb[0].mxu0 %v572
      %v614 = vpop.f32.mrb[0].mxu0
      %v615 = vadd.f32 0.0, %v614
      %v616 = vpop.f32.mrb[0].mxu0
      %v617 = vadd.f32 0.0, %v616
      %v618 = vpop.f32.mrb[0].mxu0
      %v619 = vpop.f32.mrb[0].mxu0
      %620 = vdwg.mxu0
      %v621 = vpack.c.bf16 %v615, %v615
      %v622 = vpack.c.bf16 %v617, %v617
      %v625 = vcombine.low %v621, %v622
      %v627 = vunpack.c.l.s4 1983009808
      %v628 = vunpack.c.0.s8 %v627
      %v629 = vlaneseq
      %v630 = vshrl.u32 %v629, 7
      %v631 = vsub.s32 %v628, %v630
      %v632 = vrot.slane %v625, %v631
      %634 = vst [vmem:[%s258] sm:$0xf] %v632
      %v635 = vsel %vm541, %v615, 0.0
      %v636 = vsel %vm541, %v617, 0.0
      %v637 = vadd.f32 %v635, %v636
      %638 = vadd.xlane.f32.xlu0 %v637
      %v639 = vpop.xlane.xlu0 %638
      %v640 = vadd.f32 %v639, 0.0
      %v641 = vmul.f32 %v615, %v615
      %v642 = vmul.f32 %v617, %v617
      %v643 = vsel %vm541, %v641, 0.0
      %v644 = vsel %vm541, %v642, 0.0
      %v645 = vadd.f32 %v643, %v644
      %646 = vadd.xlane.f32.xlu0 %v645
      %v647 = vpop.xlane.xlu0 %646
      %v648 = vadd.f32 %v647, 0.0
      %vm649 = vcmask 3072
      %650 = vst.msk [vmem:[%s262] sm:$0xf] %vm649, %v640
      %vm651 = vcmask 11272
      %652 = vst.msk [vmem:[%s262] sm:$0xf] %vm651, %v648
      %p653 = scmp.lt.s32.totalorder %s18, 1
      %s654 = scalar_select %p653, %s18, 1
      %s655 = smul.addr %s654, 2
      %s656 = smul.addr %s655, 2
      %s657 = scalar_lea.vmem %s5, %s656
      %p658 = scmp.lt.s32.totalorder %s18, 1
      %s659 = scalar_select %p658, %s18, 1
      %s660 = smul.addr %s659, 4
      %s661 = scalar_lea.vmem %s6, %s660
      // Predicated region
      $region41: #{up_layer_forward.5} parent=39 // pred_check
        %p662 = pneg %p146
      $region42: #{up_layer_forward.5} parent=39 // pred_check_branch
        %664 = sbr.rel (%p662) target = $region44
      $region43: #{up_layer_forward.5} parent=39 // pred_region
        _
      $region44: #{up_layer_forward.5} parent=39 // pred_fallthru
        _
      // Predicated region
      $region45: #{up_layer_forward.5} parent=39 // pred_check
        %p665 = pneg %p172
      $region46: #{up_layer_forward.5} parent=39 // pred_check_branch
        %667 = sbr.rel (%p665) target = $region48
      $region47: #{up_layer_forward.5} parent=39 // pred_region
        _
      $region48: #{up_layer_forward.5} parent=39 // pred_fallthru
        _
    $region40: #{up_layer_forward.5} parent=5 // pred_fallthru
      _
    %p668 = scmp.le.s32.totalorder 2, %s13
    // Predicated region
    $region49: #{up_layer_forward.5} parent=5 // pred_check
      %p669 = pneg %p668
    $region50: #{up_layer_forward.5} parent=5 // pred_check_branch
      %671 = sbr.rel (%p669) target = $region52
    $region51: #{up_layer_forward.5} parent=5 // pred_region
      %s672 = ssub.s32 %s13, 2
      // Predicated region
      $region53: #{up_layer_forward.5} parent=51 // pred_check
        %p673 = pneg %p152
      $region54: #{up_layer_forward.5} parent=51 // pred_check_branch
        %675 = sbr.rel (%p673) target = $region56
      $region55: #{up_layer_forward.5} parent=51 // pred_region
        %p676 = scmp.lt.s32.totalorder %s19, 1
        %s677 = scalar_select %p676, %s19, 1
        %s678 = smul.addr %s677, 2
        %s679 = smul.addr %s678, 2
        %s680 = scalar_lea.vmem %s5, %s679
      $region56: #{up_layer_forward.5} parent=51 // pred_fallthru
        _
      // Predicated region
      $region57: #{up_layer_forward.5} parent=51 // pred_check
        %p681 = pneg %p178
      $region58: #{up_layer_forward.5} parent=51 // pred_check_branch
        %683 = sbr.rel (%p681) target = $region60
      $region59: #{up_layer_forward.5} parent=51 // pred_region
        %p684 = scmp.lt.s32.totalorder %s19, 1
        %s685 = scalar_select %p684, %s19, 1
        %s686 = smul.addr %s685, 4
        %s687 = scalar_lea.vmem %s6, %s686
      $region60: #{up_layer_forward.5} parent=51 // pred_fallthru
        _
    $region52: #{up_layer_forward.5} parent=5 // pred_fallthru
      _
  $region6: #{up_layer_forward.5} parent=0 // loop_footer
    %s17 = sadd.s32 1, %s13
  $region7: #{up_layer_forward.5} parent=0 // loop_footer_branch
    %12 = sbr.rel target = $region3
  $region8: #{up_layer_forward.5} parent=0 // loop_exit
    _

// kernel: up_layer_forward.4
$region0: #{up_layer_forward.4}
  #allocation0 [shape = 'u32[]', space=smem, size = 0x4, offset = 0x4, fixed_abs, tag = 'smem constant byte address 0x4 - core index']
  #allocation1 [shape = 'u32[144,128]{1,0:T(1,128)}', space=vmem, size = 0x12000, scoped, tag = 'internal scratch']
  %s0 = inlined_call_operand.vmem [shape: bf16[2,4,256], index: 0, kind: input, shape index: {}]
  %s1 = inlined_call_operand.vmem [shape: f32[9,256], index: 1, kind: input, shape index: {}]
  %s2 = inlined_call_operand.vmem [shape: bf16[1,4,36], index: 2, kind: input, shape index: {}]
  %s3 = inlined_call_operand.vmem [shape: bf16[2,4,256], index: 3, kind: output, shape index: {0}]
  %s4 = inlined_call_operand.vmem [shape: f32[2,4,2], index: 4, kind: output, shape index: {1}]
  %5 = xla_tuple %s3, %s4
  %s6 = sld [smem:[#allocation0]]
  $region53: #{up_layer_forward.4} parent=0
    _
  %s8 = ssub.s32 1, %s6
  %s9 = scalar_select 0, %s8, %s6
  loop: start=0, step=1, limit=4
  $region2: #{up_layer_forward.4} parent=0 // loop_pre_header
    _
  $region3: #{up_layer_forward.4} parent=0 // loop_header
    %s11 = sphi 0, %s15
    %p12 = scmp.ge.s32.totalorder %s11, 4
    %s21 = sphi 0, %s23
    %s24 = sphi 0, %s21
    %s25 = sphi 0, %s24
    %s41 = sphi 0, %s25
    %s45 = sphi 0, %s45
    %s47 = sphi 0, %s45
    %s48 = sphi 0, %s47
    %s62 = sphi 0, %s48
    %s66 = sphi 0, %s66
    %s68 = sphi 0, %s66
    %s69 = sphi 0, %s68
    %s83 = sphi 0, %s69
    %s89 = sphi 0, %s91
    %s92 = sphi 0, %s89
    %s93 = sphi 0, %s92
    %s109 = sphi 0, %s93
    %s115 = sphi 0, %s117
    %s118 = sphi 0, %s115
    %s119 = sphi 0, %s118
    %s135 = sphi 0, %s119
  $region4: #{up_layer_forward.4} parent=0 // loop_header_branch
    %14 = sbr.rel (%p12) target = $region8
  $region5: #{up_layer_forward.4} parent=0 // loop_body
    %s16 = ssub.s32 %s11, 1
    %s17 = ssub.s32 %s11, 2
    %s18 = sadd.s32 %s11, 1
    %s19 = ssub.s32 %s11, %s18
    %p20 = scmp.eq.s32.totalorder %s19, 0
    %s22 = sadd.s32 %s21, 1
    %s23 = scalar_select %p20, %s21, %s22
    %p26 = pneg %p20
    %p27 = scmp.eq.s32.totalorder %s11, 1
    %p28 = por %p26, %p27
    %p29 = scmp.ne.s32.totalorder %s21, %s24
    %p30 = scmp.eq.s32.totalorder %s11, 0
    %p31 = por %p29, %p30
    %p32 = scmp.ne.s32.totalorder %s21, %s24
    %p33 = scmp.eq.s32.totalorder %s16, 1
    %p34 = por %p32, %p33
    %p35 = scmp.ne.s32.totalorder %s24, %s25
    %p36 = scmp.eq.s32.totalorder %s16, 0
    %p37 = por %p35, %p36
    %p38 = scmp.ne.s32.totalorder %s24, %s25
    %p39 = scmp.eq.s32.totalorder %s17, 1
    %p40 = por %p38, %p39
    %p42 = scmp.ne.s32.totalorder %s25, %s41
    %p43 = scmp.eq.s32.totalorder %s17, 0
    %p44 = por %p42, %p43
    %s46 = sadd.s32 %s45, 1
    %p49 = scmp.eq.s32.totalorder %s11, 1
    %p50 = scmp.ne.s32.totalorder %s45, %s47
    %p51 = scmp.eq.s32.totalorder %s11, 0
    %p52 = por %p50, %p51
    %p53 = scmp.ne.s32.totalorder %s45, %s47
    %p54 = scmp.eq.s32.totalorder %s16, 1
    %p55 = por %p53, %p54
    %p56 = scmp.ne.s32.totalorder %s47, %s48
    %p57 = scmp.eq.s32.totalorder %s16, 0
    %p58 = por %p56, %p57
    %p59 = scmp.ne.s32.totalorder %s47, %s48
    %p60 = scmp.eq.s32.totalorder %s17, 1
    %p61 = por %p59, %p60
    %p63 = scmp.ne.s32.totalorder %s48, %s62
    %p64 = scmp.eq.s32.totalorder %s17, 0
    %p65 = por %p63, %p64
    %s67 = sadd.s32 %s66, 1
    %p70 = scmp.eq.s32.totalorder %s11, 1
    %p71 = scmp.ne.s32.totalorder %s66, %s68
    %p72 = scmp.eq.s32.totalorder %s11, 0
    %p73 = por %p71, %p72
    %p74 = scmp.ne.s32.totalorder %s66, %s68
    %p75 = scmp.eq.s32.totalorder %s16, 1
    %p76 = por %p74, %p75
    %p77 = scmp.ne.s32.totalorder %s68, %s69
    %p78 = scmp.eq.s32.totalorder %s16, 0
    %p79 = por %p77, %p78
    %p80 = scmp.ne.s32.totalorder %s68, %s69
    %p81 = scmp.eq.s32.totalorder %s17, 1
    %p82 = por %p80, %p81
    %p84 = scmp.ne.s32.totalorder %s69, %s83
    %p85 = scmp.eq.s32.totalorder %s17, 0
    %p86 = por %p84, %p85
    %s87 = ssub.s32 %s11, %s18
    %p88 = scmp.eq.s32.totalorder %s87, 0
    %s90 = sadd.s32 %s89, 1
    %s91 = scalar_select %p88, %s89, %s90
    %p94 = pneg %p88
    %p95 = scmp.eq.s32.totalorder %s11, 1
    %p96 = por %p94, %p95
    %p97 = scmp.ne.s32.totalorder %s89, %s92
    %p98 = scmp.eq.s32.totalorder %s11, 0
    %p99 = por %p97, %p98
    %p100 = scmp.ne.s32.totalorder %s89, %s92
    %p101 = scmp.eq.s32.totalorder %s16, 1
    %p102 = por %p100, %p101
    %p103 = scmp.ne.s32.totalorder %s92, %s93
    %p104 = scmp.eq.s32.totalorder %s16, 0
    %p105 = por %p103, %p104
    %p106 = scmp.ne.s32.totalorder %s92, %s93
    %p107 = scmp.eq.s32.totalorder %s17, 1
    %p108 = por %p106, %p107
    %p110 = scmp.ne.s32.totalorder %s93, %s109
    %p111 = scmp.eq.s32.totalorder %s17, 0
    %p112 = por %p110, %p111
    %s113 = ssub.s32 %s11, %s18
    %p114 = scmp.eq.s32.totalorder %s113, 0
    %s116 = sadd.s32 %s115, 1
    %s117 = scalar_select %p114, %s115, %s116
    %p120 = pneg %p114
    %p121 = scmp.eq.s32.totalorder %s11, 1
    %p122 = por %p120, %p121
    %p123 = scmp.ne.s32.totalorder %s115, %s118
    %p124 = scmp.eq.s32.totalorder %s11, 0
    %p125 = por %p123, %p124
    %p126 = scmp.ne.s32.totalorder %s115, %s118
    %p127 = scmp.eq.s32.totalorder %s16, 1
    %p128 = por %p126, %p127
    %p129 = scmp.ne.s32.totalorder %s118, %s119
    %p130 = scmp.eq.s32.totalorder %s16, 0
    %p131 = por %p129, %p130
    %p132 = scmp.ne.s32.totalorder %s118, %s119
    %p133 = scmp.eq.s32.totalorder %s17, 1
    %p134 = por %p132, %p133
    %p136 = scmp.ne.s32.totalorder %s119, %s135
    %p137 = scmp.eq.s32.totalorder %s17, 0
    %p138 = por %p136, %p137
    %p139 = scmp.le.s32.totalorder 1, %s11
    %p140 = scmp.lt.s32.totalorder %s11, 3
    %p141 = pnand %p139, %p140
    %p142 = pneg %p141
    // Predicated region
    $region9: #{up_layer_forward.4} parent=5 // pred_check
      _
    $region10: #{up_layer_forward.4} parent=5 // pred_check_branch
      %144 = sbr.rel (%p141) target = $region12
    $region11: #{up_layer_forward.4} parent=5 // pred_region
      %s145 = ssub.s32 %s11, 1
      // Predicated region
      $region13: #{up_layer_forward.4} parent=11 // pred_check
        %p146 = pneg %p58
      $region14: #{up_layer_forward.4} parent=11 // pred_check_branch
        %148 = sbr.rel (%p146) target = $region16
      $region15: #{up_layer_forward.4} parent=11 // pred_region
        _
      $region16: #{up_layer_forward.4} parent=11 // pred_fallthru
        _
      // Predicated region
      $region17: #{up_layer_forward.4} parent=11 // pred_check
        %p149 = pneg %p79
      $region18: #{up_layer_forward.4} parent=11 // pred_check_branch
        %151 = sbr.rel (%p149) target = $region20
      $region19: #{up_layer_forward.4} parent=11 // pred_region
        _
      $region20: #{up_layer_forward.4} parent=11 // pred_fallthru
        _
    $region12: #{up_layer_forward.4} parent=5 // pred_fallthru
      _
    %p152 = scmp.lt.s32.totalorder %s11, 2
    // Predicated region
    $region21: #{up_layer_forward.4} parent=5 // pred_check
      %p153 = pneg %p152
    $region22: #{up_layer_forward.4} parent=5 // pred_check_branch
      %155 = sbr.rel (%p153) target = $region24
    $region23: #{up_layer_forward.4} parent=5 // pred_region
      // Predicated region
      $region25: #{up_layer_forward.4} parent=23 // pred_check
        %p156 = pneg %p31
      $region26: #{up_layer_forward.4} parent=23 // pred_check_branch
        %158 = sbr.rel (%p156) target = $region28
      $region27: #{up_layer_forward.4} parent=23 // pred_region
        %p159 = scmp.lt.s32.totalorder %s11, 1
        %s160 = scalar_select %p159, %s11, 1
        %s161 = smul.addr %s160, 2
        %s162 = smul.addr %s161, 2
        %s163 = scalar_lea.vmem %s0, %s162
      $region28: #{up_layer_forward.4} parent=23 // pred_fallthru
        _
    $region24: #{up_layer_forward.4} parent=5 // pred_fallthru
      _
    %p164 = scmp.le.s32.totalorder 1, %s11
    %p165 = scmp.lt.s32.totalorder %s11, 3
    %p166 = pnand %p164, %p165
    %p167 = pneg %p166
    // Predicated region
    $region29: #{up_layer_forward.4} parent=5 // pred_check
      _
    $region30: #{up_layer_forward.4} parent=5 // pred_check_branch
      %169 = sbr.rel (%p166) target = $region32
    $region31: #{up_layer_forward.4} parent=5 // pred_region
      %s170 = ssub.s32 %s11, 1
      %p171 = scmp.lt.s32.totalorder %s16, 1
      %s172 = scalar_select %p171, %s16, 1
      %s173 = smul.addr %s172, 2
      %s174 = smul.addr %s173, 2
      %s175 = scalar_lea.vmem %s0, %s174
      %p176 = pneg %p37
      %p177 = pneg %p34
      %p178 = pneg %p58
      %p179 = pneg %p55
      %p180 = pneg %p79
      %p181 = pneg %p76
      %p182 = pneg %p105
      %p183 = pneg %p102
      %p184 = scmp.lt.s32.totalorder %s16, 1
      %s185 = scalar_select %p184, %s16, 1
      %s186 = smul.addr %s185, 2
      %s187 = smul.addr %s186, 2
      %s188 = scalar_lea.vmem %s3, %s187
      %p189 = pneg %p131
      %p190 = pneg %p128
      %p191 = scmp.lt.s32.totalorder %s16, 1
      %s192 = scalar_select %p191, %s16, 1
      %s193 = smul.addr %s192, 4
      %s194 = scalar_lea.vmem %s4, %s193
      %p195 = scmp.lt.s32.totalorder %s16, 1
      %s196 = scalar_select %p195, %s16, 1
      %s197 = smul.addr %s196, 2
      %s198 = smul.addr %s197, 2
      %s199 = scalar_lea.vmem %s0, %s198
      %p200 = scmp.lt.s32.totalorder %s16, 1
      %s201 = scalar_select %p200, %s16, 1
      %s202 = smul.addr %s201, 2
      %s203 = smul.addr %s202, 2
      %s204 = scalar_lea.vmem %s3, %s203
      %p205 = scmp.lt.s32.totalorder %s16, 1
      %s206 = scalar_select %p205, %s16, 1
      %s207 = smul.addr %s206, 4
      %s208 = scalar_lea.vmem %s4, %s207
      %v210 = vld [vmem:[%s199] sm:$0xf]
      %v211 = vunpack.c.l.bf16 %v210
      %v213 = vcombine.high %v211, %v211
      %215 = vrot.lane.b32.xlu0 %v211, 17
      %v216 = vpop.permute.xlu0 %215
      %217 = vrot.lane.b32.xlu0 %v213, 17
      %v218 = vpop.permute.xlu0 %217
      %v219 = vlaneseq
      %v220 = vand.u32 %v219, 127
      %vm221 = vcmp.lt.s32.totalorder %v220, 17
      %v222 = vsel %vm221, %v216, %v218
      %v223 = vsel %vm221, %v218, %v216
      %v224 = vld [vmem:[%s1] ss:$8 sm:$0x3]
      %v226 = vlaneseq
      %v227 = vshrl.u32 %v226, 7
      %v228 = vsub.s32 0, %v227
      %v229 = vrot.slane %v224, %v228
      %v230 = vlaneseq
      %v231 = vshrl.u32 %v230, 7
      %v232 = vsub.s32 1, %v231
      %v233 = vrot.slane %v224, %v232
      %v236 = vmul.f32 %v223, %v229
      %v237 = vmul.f32 %v222, %v233
      %v238 = vpack.c.bf16 %v236, %v236
      %v239 = vpack.c.bf16 %v237, %v237
      %240 = vrot.lane.b32.xlu0 %v211, 16
      %v241 = vpop.permute.xlu0 %240
      %242 = vrot.lane.b32.xlu0 %v213, 16
      %v243 = vpop.permute.xlu0 %242
      %vm244 = vcmp.lt.s32.totalorder %v220, 16
      %v245 = vsel %vm244, %v241, %v243
      %v246 = vsel %vm244, %v243, %v241
      %s247 = scalar_lea.vmem %s1, 1
      %v248 = vld [vmem:[%s247] ss:$8 sm:$0x3]
      %v250 = vlaneseq
      %v251 = vshrl.u32 %v250, 7
      %v252 = vsub.s32 0, %v251
      %v253 = vrot.slane %v248, %v252
      %v254 = vlaneseq
      %v255 = vshrl.u32 %v254, 7
      %v256 = vsub.s32 1, %v255
      %v257 = vrot.slane %v248, %v256
      %v260 = vmul.f32 %v246, %v253
      %v261 = vmul.f32 %v245, %v257
      %v262 = vpack.c.bf16 %v260, %v260
      %v263 = vpack.c.bf16 %v261, %v261
      %264 = vrot.lane.b32.xlu0 %v211, 15
      %v265 = vpop.permute.xlu0 %264
      %266 = vrot.lane.b32.xlu0 %v213, 15
      %v267 = vpop.permute.xlu0 %266
      %vm268 = vcmp.lt.s32.totalorder %v220, 15
      %v269 = vsel %vm268, %v265, %v267
      %v270 = vsel %vm268, %v267, %v265
      %s271 = scalar_lea.vmem %s1, 2
      %v272 = vld [vmem:[%s271] ss:$8 sm:$0x3]
      %v274 = vlaneseq
      %v275 = vshrl.u32 %v274, 7
      %v276 = vsub.s32 0, %v275
      %v277 = vrot.slane %v272, %v276
      %v278 = vlaneseq
      %v279 = vshrl.u32 %v278, 7
      %v280 = vsub.s32 1, %v279
      %v281 = vrot.slane %v272, %v280
      %v284 = vmul.f32 %v270, %v277
      %v285 = vmul.f32 %v269, %v281
      %v286 = vpack.c.bf16 %v284, %v284
      %v287 = vpack.c.bf16 %v285, %v285
      %288 = vrot.lane.b32.xlu0 %v211, 1
      %v289 = vpop.permute.xlu0 %288
      %290 = vrot.lane.b32.xlu0 %v213, 1
      %v291 = vpop.permute.xlu0 %290
      %vm292 = vcmp.lt.s32.totalorder %v220, 1
      %v293 = vsel %vm292, %v289, %v291
      %v294 = vsel %vm292, %v291, %v289
      %s295 = scalar_lea.vmem %s1, 3
      %v296 = vld [vmem:[%s295] ss:$8 sm:$0x3]
      %v298 = vlaneseq
      %v299 = vshrl.u32 %v298, 7
      %v300 = vsub.s32 0, %v299
      %v301 = vrot.slane %v296, %v300
      %v302 = vlaneseq
      %v303 = vshrl.u32 %v302, 7
      %v304 = vsub.s32 1, %v303
      %v305 = vrot.slane %v296, %v304
      %v308 = vmul.f32 %v294, %v301
      %v309 = vmul.f32 %v293, %v305
      %v310 = vpack.c.bf16 %v308, %v308
      %v311 = vpack.c.bf16 %v309, %v309
      %s312 = scalar_lea.vmem %s1, 4
      %v313 = vld [vmem:[%s312] ss:$8 sm:$0x3]
      %v315 = vlaneseq
      %v316 = vshrl.u32 %v315, 7
      %v317 = vsub.s32 0, %v316
      %v318 = vrot.slane %v313, %v317
      %v319 = vlaneseq
      %v320 = vshrl.u32 %v319, 7
      %v321 = vsub.s32 1, %v320
      %v322 = vrot.slane %v313, %v321
      %v323 = vcombine.low %v318, %v322
      %v325 = vmul.f32 %v211, %v323
      %v327 = vcombine.high %v325, %v325
      %v329 = vpack.c.bf16 %v325, %v325
      %v330 = vpack.c.bf16 %v327, %v327
      %331 = vrot.lane.b32.xlu0 %v211, 127
      %v332 = vpop.permute.xlu0 %331
      %333 = vrot.lane.b32.xlu0 %v213, 127
      %v334 = vpop.permute.xlu0 %333
      %vm335 = vcmp.lt.s32.totalorder %v220, 127
      %v336 = vsel %vm335, %v332, %v334
      %v337 = vsel %vm335, %v334, %v332
      %s338 = scalar_lea.vmem %s1, 5
      %v339 = vld [vmem:[%s338] ss:$8 sm:$0x3]
      %v341 = vlaneseq
      %v342 = vshrl.u32 %v341, 7
      %v343 = vsub.s32 0, %v342
      %v344 = vrot.slane %v339, %v343
      %v345 = vlaneseq
      %v346 = vshrl.u32 %v345, 7
      %v347 = vsub.s32 1, %v346
      %v348 = vrot.slane %v339, %v347
      %v351 = vmul.f32 %v336, %v344
      %v352 = vmul.f32 %v337, %v348
      %v353 = vpack.c.bf16 %v351, %v351
      %v354 = vpack.c.bf16 %v352, %v352
      %355 = vrot.lane.b32.xlu0 %v211, 113
      %v356 = vpop.permute.xlu0 %355
      %357 = vrot.lane.b32.xlu0 %v213, 113
      %v358 = vpop.permute.xlu0 %357
      %vm359 = vcmp.lt.s32.totalorder %v220, 113
      %v360 = vsel %vm359, %v356, %v358
      %v361 = vsel %vm359, %v358, %v356
      %s362 = scalar_lea.vmem %s1, 6
      %v363 = vld [vmem:[%s362] ss:$8 sm:$0x3]
      %v365 = vlaneseq
      %v366 = vshrl.u32 %v365, 7
      %v367 = vsub.s32 0, %v366
      %v368 = vrot.slane %v363, %v367
      %v369 = vlaneseq
      %v370 = vshrl.u32 %v369, 7
      %v371 = vsub.s32 1, %v370
      %v372 = vrot.slane %v363, %v371
      %v375 = vmul.f32 %v360, %v368
      %v376 = vmul.f32 %v361, %v372
      %v377 = vpack.c.bf16 %v375, %v375
      %v378 = vpack.c.bf16 %v376, %v376
      %379 = vrot.lane.b32.xlu0 %v211, 112
      %v380 = vpop.permute.xlu0 %379
      %381 = vrot.lane.b32.xlu0 %v213, 112
      %v382 = vpop.permute.xlu0 %381
      %vm383 = vcmp.lt.s32.totalorder %v220, 112
      %v384 = vsel %vm383, %v380, %v382
      %v385 = vsel %vm383, %v382, %v380
      %s386 = scalar_lea.vmem %s1, 7
      %v387 = vld [vmem:[%s386] ss:$8 sm:$0x3]
      %v389 = vlaneseq
      %v390 = vshrl.u32 %v389, 7
      %v391 = vsub.s32 0, %v390
      %v392 = vrot.slane %v387, %v391
      %v393 = vlaneseq
      %v394 = vshrl.u32 %v393, 7
      %v395 = vsub.s32 1, %v394
      %v396 = vrot.slane %v387, %v395
      %v399 = vmul.f32 %v384, %v392
      %v400 = vmul.f32 %v385, %v396
      %v401 = vpack.c.bf16 %v399, %v399
      %v402 = vpack.c.bf16 %v400, %v400
      %403 = vrot.lane.b32.xlu0 %v211, 111
      %v404 = vpop.permute.xlu0 %403
      %405 = vrot.lane.b32.xlu0 %v213, 111
      %v406 = vpop.permute.xlu0 %405
      %vm407 = vcmp.lt.s32.totalorder %v220, 111
      %v408 = vsel %vm407, %v404, %v406
      %v409 = vsel %vm407, %v406, %v404
      %s410 = scalar_lea.vmem %s1, 16
      %v411 = vld [vmem:[%s410] ss:$8 sm:$0x3]
      %v413 = vlaneseq
      %v414 = vshrl.u32 %v413, 7
      %v415 = vsub.s32 0, %v414
      %v416 = vrot.slane %v411, %v415
      %v417 = vlaneseq
      %v418 = vshrl.u32 %v417, 7
      %v419 = vsub.s32 1, %v418
      %v420 = vrot.slane %v411, %v419
      %v423 = vmul.f32 %v408, %v416
      %v424 = vmul.f32 %v409, %v420
      %v425 = vpack.c.bf16 %v423, %v423
      %v426 = vpack.c.bf16 %v424, %v424
      %v429 = vrot.slane %v262, 6
      %v430 = vrot.slane %v263, 6
      %v433 = vrot.slane %v286, 4
      %v434 = vrot.slane %v287, 4
      %v437 = vrot.slane %v310, 2
      %v438 = vrot.slane %v311, 2
      %v441 = vrot.slane %v353, 6
      %v442 = vrot.slane %v354, 6
      %v445 = vrot.slane %v377, 4
      %v446 = vrot.slane %v378, 4
      %v449 = vrot.slane %v401, 2
      %v450 = vrot.slane %v402, 2
      %vm451 = vcmask 1041408
      %v454 = vsel %vm451, %v238, %v429
      %v457 = vsel %vm451, %v239, %v430
      %vm458 = vcmask 1043456
      %v460 = vsel %vm458, %v454, %v433
      %v462 = vsel %vm458, %v457, %v434
      %vm463 = vcmask 1045504
      %v465 = vsel %vm463, %v460, %v437
      %v468 = vsel %vm463, %v462, %v438
      %v472 = vsel %vm451, %v329, %v441
      %v475 = vsel %vm451, %v330, %v442
      %v477 = vsel %vm458, %v472, %v445
      %v479 = vsel %vm458, %v475, %v446
      %v481 = vsel %vm463, %v477, %v449
      %v484 = vsel %vm463, %v479, %v450
      %v486 = vld [vmem:[%s2] sm:$0x3]
      %vm487 = vcmask 293888
      %v489 = vsel %vm487, %v486, 0
      %v492 = vsel %vm451, %v425, 0
      %v495 = vsel %vm451, %v426, 0
      %497 = vmatprep.subr.bf16.mxu0 %v468
      %498 = vmatpush1.bf16.msra.mxu0 %v465
      %499 = vmatprep.subr.bf16.mxu0 %v484
      %500 = vmatpush1.bf16.msra.mxu0 %v481
      %501 = vmatprep.subr.bf16.mxu0 %v495
      %502 = vmatpush1.bf16.msra.mxu0 %v492
      %503 = vmatprep.subr.bf16.mxu0 0
      %504 = vmatpush1.bf16.msra.mxu0 0
      %505 = vmatprep.subr.bf16.mxu0 0
      %506 = vmatpush1.bf16.msra.mxu0 0
      %507 = vmatprep.subr.bf16.mxu0 0
      %508 = vmatpush1.bf16.msra.mxu0 0
      %509 = vmatprep.subr.bf16.mxu0 0
      %510 = vmatpush1.bf16.msra.mxu0 0
      %511 = vmatprep.subr.bf16.mxu0 0
      %512 = vmatpush1.bf16.msra.mxu0 0
      %513 = vmatprep.subr.bf16.mxu0 0
      %514 = vmatpush1.bf16.msra.mxu0 0
      %515 = vmatprep.subr.bf16.mxu0 0
      %516 = vmatpush1.bf16.msra.mxu0 0
      %517 = vmatprep.subr.bf16.mxu0 0
      %518 = vmatpush1.bf16.msra.mxu0 0
      %519 = vmatprep.subr.bf16.mxu0 0
      %520 = vmatpush1.bf16.msra.mxu0 0
      %521 = vmatprep.subr.bf16.mxu0 0
      %522 = vmatpush1.bf16.msra.mxu0 0
      %523 = vmatprep.subr.bf16.mxu0 0
      %524 = vmatpush1.bf16.msra.mxu0 0
      %525 = vmatprep.subr.bf16.mxu0 0
      %526 = vmatpush1.bf16.msra.mxu0 0
      %527 = vmatprep.subr.bf16.mxu0 0
      %528 = vmatpush1.bf16.msra.mxu0 0
      %529 = vmatprep.mubr.bf16.mxu0 0
      %530 = vmatmul.mubr.bf16.gmra.mrb[0].mxu0 %v489
      %v531 = vpop.f32.mrb[0].mxu0
      %v532 = vadd.f32 0.0, %v531
      %v533 = vpop.f32.mrb[0].mxu0
      %v534 = vadd.f32 0.0, %v533
      %v535 = vpop.f32.mrb[0].mxu0
      %v536 = vpop.f32.mrb[0].mxu0
      %537 = vdwg.mxu0
      %v538 = vpack.c.bf16 %v532, %v532
      %v539 = vpack.c.bf16 %v534, %v534
      %v542 = vcombine.low %v538, %v539
      %v544 = vunpack.c.l.s4 1983009808
      %v545 = vunpack.c.0.s8 %v544
      %v546 = vlaneseq
      %v547 = vshrl.u32 %v546, 7
      %v548 = vsub.s32 %v545, %v547
      %v549 = vrot.slane %v542, %v548
      %551 = vst [vmem:[%s204] sm:$0xf] %v549
      %v552 = vsel %vm458, %v532, 0.0
      %v553 = vsel %vm458, %v534, 0.0
      %v554 = vadd.f32 %v552, %v553
      %555 = vadd.xlane.f32.xlu0 %v554
      %v556 = vpop.xlane.xlu0 %555
      %v557 = vadd.f32 %v556, 0.0
      %v558 = vmul.f32 %v532, %v532
      %v559 = vmul.f32 %v534, %v534
      %v560 = vsel %vm458, %v558, 0.0
      %v561 = vsel %vm458, %v559, 0.0
      %v562 = vadd.f32 %v560, %v561
      %563 = vadd.xlane.f32.xlu0 %v562
      %v564 = vpop.xlane.xlu0 %563
      %v565 = vadd.f32 %v564, 0.0
      %vm566 = vcmask 3072
      %567 = vst.msk [vmem:[%s208] sm:$0xf] %vm566, %v557
      %vm568 = vcmask 11272
      %569 = vst.msk [vmem:[%s208] sm:$0xf] %vm568, %v565
      %p570 = scmp.lt.s32.totalorder %s16, 1
      %s571 = scalar_select %p570, %s16, 1
      %s572 = smul.addr %s571, 2
      %s573 = smul.addr %s572, 2
      %s574 = scalar_lea.vmem %s3, %s573
      %p575 = scmp.lt.s32.totalorder %s16, 1
      %s576 = scalar_select %p575, %s16, 1
      %s577 = smul.addr %s576, 4
      %s578 = scalar_lea.vmem %s4, %s577
      // Predicated region
      $region33: #{up_layer_forward.4} parent=31 // pred_check
        %p579 = pneg %p102
      $region34: #{up_layer_forward.4} parent=31 // pred_check_branch
        %581 = sbr.rel (%p579) target = $region36
      $region35: #{up_layer_forward.4} parent=31 // pred_region
        _
      $region36: #{up_layer_forward.4} parent=31 // pred_fallthru
        _
      // Predicated region
      $region37: #{up_layer_forward.4} parent=31 // pred_check
        %p582 = pneg %p128
      $region38: #{up_layer_forward.4} parent=31 // pred_check_branch
        %584 = sbr.rel (%p582) target = $region40
      $region39: #{up_layer_forward.4} parent=31 // pred_region
        _
      $region40: #{up_layer_forward.4} parent=31 // pred_fallthru
        _
    $region32: #{up_layer_forward.4} parent=5 // pred_fallthru
      _
    %p585 = scmp.le.s32.totalorder 2, %s11
    // Predicated region
    $region41: #{up_layer_forward.4} parent=5 // pred_check
      %p586 = pneg %p585
    $region42: #{up_layer_forward.4} parent=5 // pred_check_branch
      %588 = sbr.rel (%p586) target = $region44
    $region43: #{up_layer_forward.4} parent=5 // pred_region
      %s589 = ssub.s32 %s11, 2
      // Predicated region
      $region45: #{up_layer_forward.4} parent=43 // pred_check
        %p590 = pneg %p108
      $region46: #{up_layer_forward.4} parent=43 // pred_check_branch
        %592 = sbr.rel (%p590) target = $region48
      $region47: #{up_layer_forward.4} parent=43 // pred_region
        %p593 = scmp.lt.s32.totalorder %s17, 1
        %s594 = scalar_select %p593, %s17, 1
        %s595 = smul.addr %s594, 2
        %s596 = smul.addr %s595, 2
        %s597 = scalar_lea.vmem %s3, %s596
      $region48: #{up_layer_forward.4} parent=43 // pred_fallthru
        _
      // Predicated region
      $region49: #{up_layer_forward.4} parent=43 // pred_check
        %p598 = pneg %p134
      $region50: #{up_layer_forward.4} parent=43 // pred_check_branch
        %600 = sbr.rel (%p598) target = $region52
      $region51: #{up_layer_forward.4} parent=43 // pred_region
        %p601 = scmp.lt.s32.totalorder %s17, 1
        %s602 = scalar_select %p601, %s17, 1
        %s603 = smul.addr %s602, 4
        %s604 = scalar_lea.vmem %s4, %s603
      $region52: #{up_layer_forward.4} parent=43 // pred_fallthru
        _
    $region44: #{up_layer_forward.4} parent=5 // pred_fallthru
      _
  $region6: #{up_layer_forward.4} parent=0 // loop_footer
    %s15 = sadd.s32 1, %s11
  $region7: #{up_layer_forward.4} parent=0 // loop_footer_branch
    %10 = sbr.rel target = $region3
  $region8: #{up_layer_forward.4} parent=0 // loop_exit
    _

// kernel: up_layer_forward.7
$region0: #{up_layer_forward.7}
  #allocation0 [shape = 'u32[]', space=smem, size = 0x4, offset = 0x4, fixed_abs, tag = 'smem constant byte address 0x4 - core index']
  #allocation1 [shape = 'u32[144,128]{1,0:T(1,128)}', space=vmem, size = 0x12000, scoped, tag = 'internal scratch']
  %s0 = inlined_call_operand.vmem [shape: bf16[2,4,8,256], index: 0, kind: input, shape index: {}]
  %s1 = inlined_call_operand.vmem [shape: f32[8,1], index: 1, kind: input, shape index: {}]
  %s2 = inlined_call_operand.vmem [shape: f32[8,1], index: 2, kind: input, shape index: {}]
  %s3 = inlined_call_operand.vmem [shape: f32[2,4,8,256], index: 3, kind: output, shape index: {}]
  %s4 = sld [smem:[#allocation0]]
  $region45: #{up_layer_forward.7} parent=0
    _
  %s6 = ssub.s32 1, %s4
  %s7 = scalar_select 0, %s6, %s4
  loop: start=0, step=1, limit=4
  $region2: #{up_layer_forward.7} parent=0 // loop_pre_header
    _
  $region3: #{up_layer_forward.7} parent=0 // loop_header
    %s9 = sphi 0, %s13
    %p10 = scmp.ge.s32.totalorder %s9, 4
    %s16 = sphi 0, %s28
    %s17 = sphi 0, %s24
    %s18 = sphi 0, %s16
    %s19 = sphi 0, %s17
    %s20 = sphi 0, %s18
    %s21 = sphi 0, %s19
    %s33 = sphi 0, %s35
    %s36 = sphi 0, %s33
    %s37 = sphi 0, %s36
    %s53 = sphi 0, %s37
    %s57 = sphi 0, %s57
    %s59 = sphi 0, %s57
    %s60 = sphi 0, %s59
    %s74 = sphi 0, %s60
    %s78 = sphi 0, %s78
    %s80 = sphi 0, %s78
    %s81 = sphi 0, %s80
    %s95 = sphi 0, %s81
    %s103 = sphi 0, %s105
    %s106 = sphi 0, %s103
    %s107 = sphi 0, %s106
    %s123 = sphi 0, %s107
  $region4: #{up_layer_forward.7} parent=0 // loop_header_branch
    %12 = sbr.rel (%p10) target = $region8
  $region5: #{up_layer_forward.7} parent=0 // loop_body
    %s14 = ssub.s32 %s9, 1
    %s15 = ssub.s32 %s9, 2
    %s22 = sadd.s32 1, %s17
    %p23 = scmp.ge.s32.totalorder %s22, 1
    %s24 = scalar_select %p23, 0, %s22
    %s25 = sadd.s32 1, %s16
    %s26 = scalar_select %p23, %s25, %s16
    %p27 = scmp.ge.s32.totalorder %s26, 2
    %s28 = scalar_select %p27, 0, %s26
    %s29 = ssub.s32 %s16, %s28
    %s30 = ssub.s32 %s17, %s24
    %s31 = sor.u32 %s29, %s30
    %p32 = scmp.eq.s32.totalorder %s31, 0
    %s34 = sadd.s32 %s33, 1
    %s35 = scalar_select %p32, %s33, %s34
    %p38 = pneg %p32
    %p39 = scmp.eq.s32.totalorder %s9, 1
    %p40 = por %p38, %p39
    %p41 = scmp.ne.s32.totalorder %s33, %s36
    %p42 = scmp.eq.s32.totalorder %s9, 0
    %p43 = por %p41, %p42
    %p44 = scmp.ne.s32.totalorder %s33, %s36
    %p45 = scmp.eq.s32.totalorder %s14, 1
    %p46 = por %p44, %p45
    %p47 = scmp.ne.s32.totalorder %s36, %s37
    %p48 = scmp.eq.s32.totalorder %s14, 0
    %p49 = por %p47, %p48
    %p50 = scmp.ne.s32.totalorder %s36, %s37
    %p51 = scmp.eq.s32.totalorder %s15, 1
    %p52 = por %p50, %p51
    %p54 = scmp.ne.s32.totalorder %s37, %s53
    %p55 = scmp.eq.s32.totalorder %s15, 0
    %p56 = por %p54, %p55
    %s58 = sadd.s32 %s57, 1
    %p61 = scmp.eq.s32.totalorder %s9, 1
    %p62 = scmp.ne.s32.totalorder %s57, %s59
    %p63 = scmp.eq.s32.totalorder %s9, 0
    %p64 = por %p62, %p63
    %p65 = scmp.ne.s32.totalorder %s57, %s59
    %p66 = scmp.eq.s32.totalorder %s14, 1
    %p67 = por %p65, %p66
    %p68 = scmp.ne.s32.totalorder %s59, %s60
    %p69 = scmp.eq.s32.totalorder %s14, 0
    %p70 = por %p68, %p69
    %p71 = scmp.ne.s32.totalorder %s59, %s60
    %p72 = scmp.eq.s32.totalorder %s15, 1
    %p73 = por %p71, %p72
    %p75 = scmp.ne.s32.totalorder %s60, %s74
    %p76 = scmp.eq.s32.totalorder %s15, 0
    %p77 = por %p75, %p76
    %s79 = sadd.s32 %s78, 1
    %p82 = scmp.eq.s32.totalorder %s9, 1
    %p83 = scmp.ne.s32.totalorder %s78, %s80
    %p84 = scmp.eq.s32.totalorder %s9, 0
    %p85 = por %p83, %p84
    %p86 = scmp.ne.s32.totalorder %s78, %s80
    %p87 = scmp.eq.s32.totalorder %s14, 1
    %p88 = por %p86, %p87
    %p89 = scmp.ne.s32.totalorder %s80, %s81
    %p90 = scmp.eq.s32.totalorder %s14, 0
    %p91 = por %p89, %p90
    %p92 = scmp.ne.s32.totalorder %s80, %s81
    %p93 = scmp.eq.s32.totalorder %s15, 1
    %p94 = por %p92, %p93
    %p96 = scmp.ne.s32.totalorder %s81, %s95
    %p97 = scmp.eq.s32.totalorder %s15, 0
    %p98 = por %p96, %p97
    %s99 = ssub.s32 %s16, %s28
    %s100 = ssub.s32 %s17, %s24
    %s101 = sor.u32 %s99, %s100
    %p102 = scmp.eq.s32.totalorder %s101, 0
    %s104 = sadd.s32 %s103, 1
    %s105 = scalar_select %p102, %s103, %s104
    %p108 = pneg %p102
    %p109 = scmp.eq.s32.totalorder %s9, 1
    %p110 = por %p108, %p109
    %p111 = scmp.ne.s32.totalorder %s103, %s106
    %p112 = scmp.eq.s32.totalorder %s9, 0
    %p113 = por %p111, %p112
    %p114 = scmp.ne.s32.totalorder %s103, %s106
    %p115 = scmp.eq.s32.totalorder %s14, 1
    %p116 = por %p114, %p115
    %p117 = scmp.ne.s32.totalorder %s106, %s107
    %p118 = scmp.eq.s32.totalorder %s14, 0
    %p119 = por %p117, %p118
    %p120 = scmp.ne.s32.totalorder %s106, %s107
    %p121 = scmp.eq.s32.totalorder %s15, 1
    %p122 = por %p120, %p121
    %p124 = scmp.ne.s32.totalorder %s107, %s123
    %p125 = scmp.eq.s32.totalorder %s15, 0
    %p126 = por %p124, %p125
    %p127 = scmp.le.s32.totalorder 1, %s9
    %p128 = scmp.lt.s32.totalorder %s9, 3
    %p129 = pnand %p127, %p128
    %p130 = pneg %p129
    // Predicated region
    $region9: #{up_layer_forward.7} parent=5 // pred_check
      _
    $region10: #{up_layer_forward.7} parent=5 // pred_check_branch
      %132 = sbr.rel (%p129) target = $region12
    $region11: #{up_layer_forward.7} parent=5 // pred_region
      %s133 = ssub.s32 %s9, 1
      // Predicated region
      $region13: #{up_layer_forward.7} parent=11 // pred_check
        %p134 = pneg %p70
      $region14: #{up_layer_forward.7} parent=11 // pred_check_branch
        %136 = sbr.rel (%p134) target = $region16
      $region15: #{up_layer_forward.7} parent=11 // pred_region
        _
      $region16: #{up_layer_forward.7} parent=11 // pred_fallthru
        _
      // Predicated region
      $region17: #{up_layer_forward.7} parent=11 // pred_check
        %p137 = pneg %p91
      $region18: #{up_layer_forward.7} parent=11 // pred_check_branch
        %139 = sbr.rel (%p137) target = $region20
      $region19: #{up_layer_forward.7} parent=11 // pred_region
        _
      $region20: #{up_layer_forward.7} parent=11 // pred_fallthru
        _
    $region12: #{up_layer_forward.7} parent=5 // pred_fallthru
      _
    %p140 = scmp.lt.s32.totalorder %s9, 2
    // Predicated region
    $region21: #{up_layer_forward.7} parent=5 // pred_check
      %p141 = pneg %p140
    $region22: #{up_layer_forward.7} parent=5 // pred_check_branch
      %143 = sbr.rel (%p141) target = $region24
    $region23: #{up_layer_forward.7} parent=5 // pred_region
      // Predicated region
      $region25: #{up_layer_forward.7} parent=23 // pred_check
        %p144 = pneg %p43
      $region26: #{up_layer_forward.7} parent=23 // pred_check_branch
        %146 = sbr.rel (%p144) target = $region28
      $region27: #{up_layer_forward.7} parent=23 // pred_region
        %s147 = smul.u32 2, %s17
        %p148 = scmp.lt.s32.totalorder %s16, 1
        %s149 = scalar_select %p148, %s16, 1
        %p150 = scmp.lt.s32.totalorder %s147, 1
        %s151 = scalar_select %p150, %s147, 1
        %s152 = smul.addr %s149, 8
        %s153 = sadd.s32 %s151, %s152
        %s154 = smul.addr %s153, 4
        %s155 = scalar_lea.vmem %s0, %s154
        %s156 = smul.u32 2, %s17
      $region28: #{up_layer_forward.7} parent=23 // pred_fallthru
        _
    $region24: #{up_layer_forward.7} parent=5 // pred_fallthru
      _
    %p157 = scmp.le.s32.totalorder 1, %s9
    %p158 = scmp.lt.s32.totalorder %s9, 3
    %p159 = pnand %p157, %p158
    %p160 = pneg %p159
    // Predicated region
    $region29: #{up_layer_forward.7} parent=5 // pred_check
      _
    $region30: #{up_layer_forward.7} parent=5 // pred_check_branch
      %162 = sbr.rel (%p159) target = $region32
    $region31: #{up_layer_forward.7} parent=5 // pred_region
      %s163 = ssub.s32 %s9, 1
      %s164 = smul.u32 2, %s19
      %p165 = scmp.lt.s32.totalorder %s18, 1
      %s166 = scalar_select %p165, %s18, 1
      %p167 = scmp.lt.s32.totalorder %s164, 1
      %s168 = scalar_select %p167, %s164, 1
      %s169 = smul.addr %s166, 8
      %s170 = sadd.s32 %s168, %s169
      %s171 = smul.addr %s170, 4
      %s172 = scalar_lea.vmem %s0, %s171
      %p173 = pneg %p49
      %p174 = pneg %p46
      %p175 = pneg %p70
      %p176 = pneg %p67
      %p177 = pneg %p91
      %p178 = pneg %p88
      %p179 = pneg %p119
      %p180 = pneg %p116
      %s181 = smul.u32 2, %s19
      %p182 = scmp.lt.s32.totalorder %s18, 1
      %s183 = scalar_select %p182, %s18, 1
      %p184 = scmp.lt.s32.totalorder %s181, 1
      %s185 = scalar_select %p184, %s181, 1
      %s186 = smul.addr %s183, 8
      %s187 = sadd.s32 %s185, %s186
      %s188 = smul.addr %s187, 8
      %s189 = scalar_lea.vmem %s3, %s188
      %s190 = smul.u32 2, %s19
      %p191 = scmp.lt.s32.totalorder %s18, 1
      %s192 = scalar_select %p191, %s18, 1
      %p193 = scmp.lt.s32.totalorder %s190, 1
      %s194 = scalar_select %p193, %s190, 1
      %s195 = smul.addr %s192, 8
      %s196 = sadd.s32 %s194, %s195
      %s197 = smul.addr %s196, 4
      %s198 = scalar_lea.vmem %s0, %s197
      %s199 = smul.u32 2, %s19
      %s200 = smul.u32 2, %s19
      %p201 = scmp.lt.s32.totalorder %s18, 1
      %s202 = scalar_select %p201, %s18, 1
      %p203 = scmp.lt.s32.totalorder %s200, 1
      %s204 = scalar_select %p203, %s200, 1
      %s205 = smul.addr %s202, 8
      %s206 = sadd.s32 %s204, %s205
      %s207 = smul.addr %s206, 8
      %s208 = scalar_lea.vmem %s3, %s207
      %s209 = smul.u32 2, %s19
      %v210 = vld [vmem:[%s198] sm:$0xff]
      %v211 = vld [vmem:[%s198 + $0x8] sm:$0xff]
      %v212 = vld [vmem:[%s198 + $0x10] sm:$0xff]
      %v213 = vld [vmem:[%s198 + $0x18] sm:$0xff]
      %v214 = vunpack.c.l.bf16 %v210
      %v215 = vunpack.c.h.bf16 %v210
      %v216 = vunpack.c.l.bf16 %v211
      %v217 = vunpack.c.h.bf16 %v211
      %v218 = vunpack.c.l.bf16 %v212
      %v219 = vunpack.c.h.bf16 %v212
      %v220 = vunpack.c.l.bf16 %v213
      %v221 = vunpack.c.h.bf16 %v213
      %v222 = vld [vmem:[%s1] sm:$0xff]
      %224 = vset.pattern.permute.xlu0 0
      %225 = vperm.xlu0 %224, %v222
      %v226 = vpop.permute.xlu0 %225
      %v228 = vmul.f32 %v214, %v226
      %v229 = vmul.f32 %v215, %v226
      %v230 = vmul.f32 %v216, %v226
      %v231 = vmul.f32 %v217, %v226
      %v232 = vmul.f32 %v218, %v226
      %v233 = vmul.f32 %v219, %v226
      %v234 = vmul.f32 %v220, %v226
      %v235 = vmul.f32 %v221, %v226
      %v236 = vld [vmem:[%s2] sm:$0xff]
      %238 = vset.pattern.permute.xlu0 0
      %239 = vperm.xlu0 %238, %v236
      %v240 = vpop.permute.xlu0 %239
      %v242 = vadd.f32 %v228, %v240
      %v243 = vadd.f32 %v229, %v240
      %v244 = vadd.f32 %v230, %v240
      %v245 = vadd.f32 %v231, %v240
      %v246 = vadd.f32 %v232, %v240
      %v247 = vadd.f32 %v233, %v240
      %v248 = vadd.f32 %v234, %v240
      %v249 = vadd.f32 %v235, %v240
      %v250 = vmax.f32 %v242, 0.0
      %v251 = vmax.f32 %v243, 0.0
      %v252 = vmax.f32 %v244, 0.0
      %v253 = vmax.f32 %v245, 0.0
      %v254 = vmax.f32 %v246, 0.0
      %v255 = vmax.f32 %v247, 0.0
      %v256 = vmax.f32 %v248, 0.0
      %v257 = vmax.f32 %v249, 0.0
      %258 = vst [vmem:[%s208] sm:$0xff] %v250
      %259 = vst [vmem:[%s208 + $0x8] sm:$0xff] %v251
      %260 = vst [vmem:[%s208 + $0x10] sm:$0xff] %v252
      %261 = vst [vmem:[%s208 + $0x18] sm:$0xff] %v253
      %262 = vst [vmem:[%s208 + $0x20] sm:$0xff] %v254
      %263 = vst [vmem:[%s208 + $0x28] sm:$0xff] %v255
      %264 = vst [vmem:[%s208 + $0x30] sm:$0xff] %v256
      %265 = vst [vmem:[%s208 + $0x38] sm:$0xff] %v257
      %s266 = smul.u32 2, %s19
      %p267 = scmp.lt.s32.totalorder %s18, 1
      %s268 = scalar_select %p267, %s18, 1
      %p269 = scmp.lt.s32.totalorder %s266, 1
      %s270 = scalar_select %p269, %s266, 1
      %s271 = smul.addr %s268, 8
      %s272 = sadd.s32 %s270, %s271
      %s273 = smul.addr %s272, 8
      %s274 = scalar_lea.vmem %s3, %s273
      // Predicated region
      $region33: #{up_layer_forward.7} parent=31 // pred_check
        %p275 = pneg %p116
      $region34: #{up_layer_forward.7} parent=31 // pred_check_branch
        %277 = sbr.rel (%p275) target = $region36
      $region35: #{up_layer_forward.7} parent=31 // pred_region
        %s278 = smul.u32 2, %s19
      $region36: #{up_layer_forward.7} parent=31 // pred_fallthru
        _
    $region32: #{up_layer_forward.7} parent=5 // pred_fallthru
      _
    %p279 = scmp.le.s32.totalorder 2, %s9
    // Predicated region
    $region37: #{up_layer_forward.7} parent=5 // pred_check
      %p280 = pneg %p279
    $region38: #{up_layer_forward.7} parent=5 // pred_check_branch
      %282 = sbr.rel (%p280) target = $region40
    $region39: #{up_layer_forward.7} parent=5 // pred_region
      %s283 = ssub.s32 %s9, 2
      // Predicated region
      $region41: #{up_layer_forward.7} parent=39 // pred_check
        %p284 = pneg %p122
      $region42: #{up_layer_forward.7} parent=39 // pred_check_branch
        %286 = sbr.rel (%p284) target = $region44
      $region43: #{up_layer_forward.7} parent=39 // pred_region
        %s287 = smul.u32 2, %s21
        %p288 = scmp.lt.s32.totalorder %s20, 1
        %s289 = scalar_select %p288, %s20, 1
        %p290 = scmp.lt.s32.totalorder %s287, 1
        %s291 = scalar_select %p290, %s287, 1
        %s292 = smul.addr %s289, 8
        %s293 = sadd.s32 %s291, %s292
        %s294 = smul.addr %s293, 8
        %s295 = scalar_lea.vmem %s3, %s294
      $region44: #{up_layer_forward.7} parent=39 // pred_fallthru
        _
    $region40: #{up_layer_forward.7} parent=5 // pred_fallthru
      _
  $region6: #{up_layer_forward.7} parent=0 // loop_footer
    %s13 = sadd.s32 1, %s9
  $region7: #{up_layer_forward.7} parent=0 // loop_footer_branch
    %8 = sbr.rel target = $region3
  $region8: #{up_layer_forward.7} parent=0 // loop_exit
    _

// kernel: up_layer_forward.6
$region0: #{up_layer_forward.6}
  #allocation0 [shape = 'u32[]', space=smem, size = 0x4, offset = 0x4, fixed_abs, tag = 'smem constant byte address 0x4 - core index']
  #allocation1 [shape = 'u32[144,128]{1,0:T(1,128)}', space=vmem, size = 0x12000, scoped, tag = 'internal scratch']
  %s0 = inlined_call_operand.vmem [shape: bf16[2,4,256], index: 0, kind: input, shape index: {}]
  %s1 = inlined_call_operand.vmem [shape: f32[4,1], index: 1, kind: input, shape index: {}]
  %s2 = inlined_call_operand.vmem [shape: f32[4,1], index: 2, kind: input, shape index: {}]
  %s3 = inlined_call_operand.vmem [shape: bf16[2,4,256], index: 3, kind: input, shape index: {}]
  %s4 = inlined_call_operand.vmem [shape: f32[9,256], index: 4, kind: input, shape index: {}]
  %s5 = inlined_call_operand.vmem [shape: bf16[4,8,36], index: 5, kind: input, shape index: {}]
  %s6 = inlined_call_operand.vmem [shape: bf16[2,4,8,256], index: 6, kind: output, shape index: {0}]
  %s7 = inlined_call_operand.vmem [shape: f32[2,8,2], index: 7, kind: output, shape index: {1}]
  %8 = xla_tuple %s6, %s7
  %s9 = sld [smem:[#allocation0]]
  $region65: #{up_layer_forward.6} parent=0
    _
  %s11 = ssub.s32 1, %s9
  %s12 = scalar_select 0, %s11, %s9
  loop: start=0, step=1, limit=4
  $region2: #{up_layer_forward.6} parent=0 // loop_pre_header
    _
  $region3: #{up_layer_forward.6} parent=0 // loop_header
    %s14 = sphi 0, %s18
    %p15 = scmp.ge.s32.totalorder %s14, 4
    %s24 = sphi 0, %s26
    %s27 = sphi 0, %s24
    %s28 = sphi 0, %s27
    %s44 = sphi 0, %s28
    %s48 = sphi 0, %s48
    %s50 = sphi 0, %s48
    %s51 = sphi 0, %s50
    %s65 = sphi 0, %s51
    %s69 = sphi 0, %s69
    %s71 = sphi 0, %s69
    %s72 = sphi 0, %s71
    %s86 = sphi 0, %s72
    %s92 = sphi 0, %s94
    %s95 = sphi 0, %s92
    %s96 = sphi 0, %s95
    %s112 = sphi 0, %s96
    %s116 = sphi 0, %s116
    %s118 = sphi 0, %s116
    %s119 = sphi 0, %s118
    %s133 = sphi 0, %s119
    %s137 = sphi 0, %s137
    %s139 = sphi 0, %s137
    %s140 = sphi 0, %s139
    %s154 = sphi 0, %s140
    %s160 = sphi 0, %s162
    %s163 = sphi 0, %s160
    %s164 = sphi 0, %s163
    %s180 = sphi 0, %s164
    %s186 = sphi 0, %s188
    %s189 = sphi 0, %s186
    %s190 = sphi 0, %s189
    %s206 = sphi 0, %s190
  $region4: #{up_layer_forward.6} parent=0 // loop_header_branch
    %17 = sbr.rel (%p15) target = $region8
  $region5: #{up_layer_forward.6} parent=0 // loop_body
    %s19 = ssub.s32 %s14, 1
    %s20 = ssub.s32 %s14, 2
    %s21 = sadd.s32 %s14, 1
    %s22 = ssub.s32 %s14, %s21
    %p23 = scmp.eq.s32.totalorder %s22, 0
    %s25 = sadd.s32 %s24, 1
    %s26 = scalar_select %p23, %s24, %s25
    %p29 = pneg %p23
    %p30 = scmp.eq.s32.totalorder %s14, 1
    %p31 = por %p29, %p30
    %p32 = scmp.ne.s32.totalorder %s24, %s27
    %p33 = scmp.eq.s32.totalorder %s14, 0
    %p34 = por %p32, %p33
    %p35 = scmp.ne.s32.totalorder %s24, %s27
    %p36 = scmp.eq.s32.totalorder %s19, 1
    %p37 = por %p35, %p36
    %p38 = scmp.ne.s32.totalorder %s27, %s28
    %p39 = scmp.eq.s32.totalorder %s19, 0
    %p40 = por %p38, %p39
    %p41 = scmp.ne.s32.totalorder %s27, %s28
    %p42 = scmp.eq.s32.totalorder %s20, 1
    %p43 = por %p41, %p42
    %p45 = scmp.ne.s32.totalorder %s28, %s44
    %p46 = scmp.eq.s32.totalorder %s20, 0
    %p47 = por %p45, %p46
    %s49 = sadd.s32 %s48, 1
    %p52 = scmp.eq.s32.totalorder %s14, 1
    %p53 = scmp.ne.s32.totalorder %s48, %s50
    %p54 = scmp.eq.s32.totalorder %s14, 0
    %p55 = por %p53, %p54
    %p56 = scmp.ne.s32.totalorder %s48, %s50
    %p57 = scmp.eq.s32.totalorder %s19, 1
    %p58 = por %p56, %p57
    %p59 = scmp.ne.s32.totalorder %s50, %s51
    %p60 = scmp.eq.s32.totalorder %s19, 0
    %p61 = por %p59, %p60
    %p62 = scmp.ne.s32.totalorder %s50, %s51
    %p63 = scmp.eq.s32.totalorder %s20, 1
    %p64 = por %p62, %p63
    %p66 = scmp.ne.s32.totalorder %s51, %s65
    %p67 = scmp.eq.s32.totalorder %s20, 0
    %p68 = por %p66, %p67
    %s70 = sadd.s32 %s69, 1
    %p73 = scmp.eq.s32.totalorder %s14, 1
    %p74 = scmp.ne.s32.totalorder %s69, %s71
    %p75 = scmp.eq.s32.totalorder %s14, 0
    %p76 = por %p74, %p75
    %p77 = scmp.ne.s32.totalorder %s69, %s71
    %p78 = scmp.eq.s32.totalorder %s19, 1
    %p79 = por %p77, %p78
    %p80 = scmp.ne.s32.totalorder %s71, %s72
    %p81 = scmp.eq.s32.totalorder %s19, 0
    %p82 = por %p80, %p81
    %p83 = scmp.ne.s32.totalorder %s71, %s72
    %p84 = scmp.eq.s32.totalorder %s20, 1
    %p85 = por %p83, %p84
    %p87 = scmp.ne.s32.totalorder %s72, %s86
    %p88 = scmp.eq.s32.totalorder %s20, 0
    %p89 = por %p87, %p88
    %s90 = ssub.s32 %s14, %s21
    %p91 = scmp.eq.s32.totalorder %s90, 0
    %s93 = sadd.s32 %s92, 1
    %s94 = scalar_select %p91, %s92, %s93
    %p97 = pneg %p91
    %p98 = scmp.eq.s32.totalorder %s14, 1
    %p99 = por %p97, %p98
    %p100 = scmp.ne.s32.totalorder %s92, %s95
    %p101 = scmp.eq.s32.totalorder %s14, 0
    %p102 = por %p100, %p101
    %p103 = scmp.ne.s32.totalorder %s92, %s95
    %p104 = scmp.eq.s32.totalorder %s19, 1
    %p105 = por %p103, %p104
    %p106 = scmp.ne.s32.totalorder %s95, %s96
    %p107 = scmp.eq.s32.totalorder %s19, 0
    %p108 = por %p106, %p107
    %p109 = scmp.ne.s32.totalorder %s95, %s96
    %p110 = scmp.eq.s32.totalorder %s20, 1
    %p111 = por %p109, %p110
    %p113 = scmp.ne.s32.totalorder %s96, %s112
    %p114 = scmp.eq.s32.totalorder %s20, 0
    %p115 = por %p113, %p114
    %s117 = sadd.s32 %s116, 1
    %p120 = scmp.eq.s32.totalorder %s14, 1
    %p121 = scmp.ne.s32.totalorder %s116, %s118
    %p122 = scmp.eq.s32.totalorder %s14, 0
    %p123 = por %p121, %p122
    %p124 = scmp.ne.s32.totalorder %s116, %s118
    %p125 = scmp.eq.s32.totalorder %s19, 1
    %p126 = por %p124, %p125
    %p127 = scmp.ne.s32.totalorder %s118, %s119
    %p128 = scmp.eq.s32.totalorder %s19, 0
    %p129 = por %p127, %p128
    %p130 = scmp.ne.s32.totalorder %s118, %s119
    %p131 = scmp.eq.s32.totalorder %s20, 1
    %p132 = por %p130, %p131
    %p134 = scmp.ne.s32.totalorder %s119, %s133
    %p135 = scmp.eq.s32.totalorder %s20, 0
    %p136 = por %p134, %p135
    %s138 = sadd.s32 %s137, 1
    %p141 = scmp.eq.s32.totalorder %s14, 1
    %p142 = scmp.ne.s32.totalorder %s137, %s139
    %p143 = scmp.eq.s32.totalorder %s14, 0
    %p144 = por %p142, %p143
    %p145 = scmp.ne.s32.totalorder %s137, %s139
    %p146 = scmp.eq.s32.totalorder %s19, 1
    %p147 = por %p145, %p146
    %p148 = scmp.ne.s32.totalorder %s139, %s140
    %p149 = scmp.eq.s32.totalorder %s19, 0
    %p150 = por %p148, %p149
    %p151 = scmp.ne.s32.totalorder %s139, %s140
    %p152 = scmp.eq.s32.totalorder %s20, 1
    %p153 = por %p151, %p152
    %p155 = scmp.ne.s32.totalorder %s140, %s154
    %p156 = scmp.eq.s32.totalorder %s20, 0
    %p157 = por %p155, %p156
    %s158 = ssub.s32 %s14, %s21
    %p159 = scmp.eq.s32.totalorder %s158, 0
    %s161 = sadd.s32 %s160, 1
    %s162 = scalar_select %p159, %s160, %s161
    %p165 = pneg %p159
    %p166 = scmp.eq.s32.totalorder %s14, 1
    %p167 = por %p165, %p166
    %p168 = scmp.ne.s32.totalorder %s160, %s163
    %p169 = scmp.eq.s32.totalorder %s14, 0
    %p170 = por %p168, %p169
    %p171 = scmp.ne.s32.totalorder %s160, %s163
    %p172 = scmp.eq.s32.totalorder %s19, 1
    %p173 = por %p171, %p172
    %p174 = scmp.ne.s32.totalorder %s163, %s164
    %p175 = scmp.eq.s32.totalorder %s19, 0
    %p176 = por %p174, %p175
    %p177 = scmp.ne.s32.totalorder %s163, %s164
    %p178 = scmp.eq.s32.totalorder %s20, 1
    %p179 = por %p177, %p178
    %p181 = scmp.ne.s32.totalorder %s164, %s180
    %p182 = scmp.eq.s32.totalorder %s20, 0
    %p183 = por %p181, %p182
    %s184 = ssub.s32 %s14, %s21
    %p185 = scmp.eq.s32.totalorder %s184, 0
    %s187 = sadd.s32 %s186, 1
    %s188 = scalar_select %p185, %s186, %s187
    %p191 = pneg %p185
    %p192 = scmp.eq.s32.totalorder %s14, 1
    %p193 = por %p191, %p192
    %p194 = scmp.ne.s32.totalorder %s186, %s189
    %p195 = scmp.eq.s32.totalorder %s14, 0
    %p196 = por %p194, %p195
    %p197 = scmp.ne.s32.totalorder %s186, %s189
    %p198 = scmp.eq.s32.totalorder %s19, 1
    %p199 = por %p197, %p198
    %p200 = scmp.ne.s32.totalorder %s189, %s190
    %p201 = scmp.eq.s32.totalorder %s19, 0
    %p202 = por %p200, %p201
    %p203 = scmp.ne.s32.totalorder %s189, %s190
    %p204 = scmp.eq.s32.totalorder %s20, 1
    %p205 = por %p203, %p204
    %p207 = scmp.ne.s32.totalorder %s190, %s206
    %p208 = scmp.eq.s32.totalorder %s20, 0
    %p209 = por %p207, %p208
    %p210 = scmp.le.s32.totalorder 1, %s14
    %p211 = scmp.lt.s32.totalorder %s14, 3
    %p212 = pnand %p210, %p211
    %p213 = pneg %p212
    // Predicated region
    $region9: #{up_layer_forward.6} parent=5 // pred_check
      _
    $region10: #{up_layer_forward.6} parent=5 // pred_check_branch
      %215 = sbr.rel (%p212) target = $region12
    $region11: #{up_layer_forward.6} parent=5 // pred_region
      %s216 = ssub.s32 %s14, 1
      // Predicated region
      $region13: #{up_layer_forward.6} parent=11 // pred_check
        %p217 = pneg %p61
      $region14: #{up_layer_forward.6} parent=11 // pred_check_branch
        %219 = sbr.rel (%p217) target = $region16
      $region15: #{up_layer_forward.6} parent=11 // pred_region
        _
      $region16: #{up_layer_forward.6} parent=11 // pred_fallthru
        _
      // Predicated region
      $region17: #{up_layer_forward.6} parent=11 // pred_check
        %p220 = pneg %p82
      $region18: #{up_layer_forward.6} parent=11 // pred_check_branch
        %222 = sbr.rel (%p220) target = $region20
      $region19: #{up_layer_forward.6} parent=11 // pred_region
        _
      $region20: #{up_layer_forward.6} parent=11 // pred_fallthru
        _
      // Predicated region
      $region21: #{up_layer_forward.6} parent=11 // pred_check
        %p223 = pneg %p129
      $region22: #{up_layer_forward.6} parent=11 // pred_check_branch
        %225 = sbr.rel (%p223) target = $region24
      $region23: #{up_layer_forward.6} parent=11 // pred_region
        _
      $region24: #{up_layer_forward.6} parent=11 // pred_fallthru
        _
      // Predicated region
      $region25: #{up_layer_forward.6} parent=11 // pred_check
        %p226 = pneg %p150
      $region26: #{up_layer_forward.6} parent=11 // pred_check_branch
        %228 = sbr.rel (%p226) target = $region28
      $region27: #{up_layer_forward.6} parent=11 // pred_region
        _
      $region28: #{up_layer_forward.6} parent=11 // pred_fallthru
        _
    $region12: #{up_layer_forward.6} parent=5 // pred_fallthru
      _
    %p229 = scmp.lt.s32.totalorder %s14, 2
    // Predicated region
    $region29: #{up_layer_forward.6} parent=5 // pred_check
      %p230 = pneg %p229
    $region30: #{up_layer_forward.6} parent=5 // pred_check_branch
      %232 = sbr.rel (%p230) target = $region32
    $region31: #{up_layer_forward.6} parent=5 // pred_region
      // Predicated region
      $region33: #{up_layer_forward.6} parent=31 // pred_check
        %p233 = pneg %p34
      $region34: #{up_layer_forward.6} parent=31 // pred_check_branch
        %235 = sbr.rel (%p233) target = $region36
      $region35: #{up_layer_forward.6} parent=31 // pred_region
        %p236 = scmp.lt.s32.totalorder %s14, 1
        %s237 = scalar_select %p236, %s14, 1
        %s238 = smul.addr %s237, 2
        %s239 = smul.addr %s238, 2
        %s240 = scalar_lea.vmem %s0, %s239
      $region36: #{up_layer_forward.6} parent=31 // pred_fallthru
        _
      // Predicated region
      $region37: #{up_layer_forward.6} parent=31 // pred_check
        %p241 = pneg %p102
      $region38: #{up_layer_forward.6} parent=31 // pred_check_branch
        %243 = sbr.rel (%p241) target = $region40
      $region39: #{up_layer_forward.6} parent=31 // pred_region
        %p244 = scmp.lt.s32.totalorder %s14, 1
        %s245 = scalar_select %p244, %s14, 1
        %s246 = smul.addr %s245, 2
        %s247 = smul.addr %s246, 2
        %s248 = scalar_lea.vmem %s3, %s247
      $region40: #{up_layer_forward.6} parent=31 // pred_fallthru
        _
    $region32: #{up_layer_forward.6} parent=5 // pred_fallthru
      _
    %p249 = scmp.le.s32.totalorder 1, %s14
    %p250 = scmp.lt.s32.totalorder %s14, 3
    %p251 = pnand %p249, %p250
    %p252 = pneg %p251
    // Predicated region
    $region41: #{up_layer_forward.6} parent=5 // pred_check
      _
    $region42: #{up_layer_forward.6} parent=5 // pred_check_branch
      %254 = sbr.rel (%p251) target = $region44
    $region43: #{up_layer_forward.6} parent=5 // pred_region
      %s255 = ssub.s32 %s14, 1
      %p256 = scmp.lt.s32.totalorder %s19, 1
      %s257 = scalar_select %p256, %s19, 1
      %s258 = smul.addr %s257, 2
      %s259 = smul.addr %s258, 2
      %s260 = scalar_lea.vmem %s0, %s259
      %p261 = pneg %p40
      %p262 = pneg %p37
      %p263 = pneg %p61
      %p264 = pneg %p58
      %p265 = pneg %p82
      %p266 = pneg %p79
      %p267 = scmp.lt.s32.totalorder %s19, 1
      %s268 = scalar_select %p267, %s19, 1
      %s269 = smul.addr %s268, 2
      %s270 = smul.addr %s269, 2
      %s271 = scalar_lea.vmem %s3, %s270
      %p272 = pneg %p108
      %p273 = pneg %p105
      %p274 = pneg %p129
      %p275 = pneg %p126
      %p276 = pneg %p150
      %p277 = pneg %p147
      %p278 = pneg %p176
      %p279 = pneg %p173
      %p280 = scmp.lt.s32.totalorder %s19, 1
      %s281 = scalar_select %p280, %s19, 1
      %s282 = smul.addr %s281, 8
      %s283 = smul.addr %s282, 4
      %s284 = scalar_lea.vmem %s6, %s283
      %p285 = pneg %p202
      %p286 = pneg %p199
      %p287 = scmp.lt.s32.totalorder %s19, 1
      %s288 = scalar_select %p287, %s19, 1
      %s289 = smul.addr %s288, 8
      %s290 = scalar_lea.vmem %s7, %s289
      %p291 = scmp.lt.s32.totalorder %s19, 1
      %s292 = scalar_select %p291, %s19, 1
      %s293 = smul.addr %s292, 2
      %s294 = smul.addr %s293, 2
      %s295 = scalar_lea.vmem %s0, %s294
      %p296 = scmp.lt.s32.totalorder %s19, 1
      %s297 = scalar_select %p296, %s19, 1
      %s298 = smul.addr %s297, 2
      %s299 = smul.addr %s298, 2
      %s300 = scalar_lea.vmem %s3, %s299
      %p301 = scmp.lt.s32.totalorder %s19, 1
      %s302 = scalar_select %p301, %s19, 1
      %s303 = smul.addr %s302, 8
      %s304 = smul.addr %s303, 4
      %s305 = scalar_lea.vmem %s6, %s304
      %p306 = scmp.lt.s32.totalorder %s19, 1
      %s307 = scalar_select %p306, %s19, 1
      %s308 = smul.addr %s307, 8
      %s309 = scalar_lea.vmem %s7, %s308
      %v311 = vld [vmem:[%s295] sm:$0xf]
      %v312 = vunpack.c.l.bf16 %v311
      %v313 = vld [vmem:[%s1] sm:$0xf]
      %315 = vset.pattern.permute.xlu0 0
      %316 = vperm.xlu0 %315, %v313
      %v317 = vpop.permute.xlu0 %316
      %v319 = vunpack.c.l.s4 839922192
      %v320 = vunpack.c.0.s8 %v319
      %v321 = vlaneseq
      %v322 = vshrl.u32 %v321, 7
      %v323 = vsub.s32 %v320, %v322
      %v324 = vrot.slane %v317, %v323
      %v326 = vmul.f32 %v312, %v324
      %v327 = vld [vmem:[%s2] sm:$0xf]
      %329 = vset.pattern.permute.xlu0 0
      %330 = vperm.xlu0 %329, %v327
      %v331 = vpop.permute.xlu0 %330
      %v333 = vunpack.c.l.s4 839922192
      %v334 = vunpack.c.0.s8 %v333
      %v335 = vlaneseq
      %v336 = vshrl.u32 %v335, 7
      %v337 = vsub.s32 %v334, %v336
      %v338 = vrot.slane %v331, %v337
      %v340 = vadd.f32 %v326, %v338
      %v341 = vld [vmem:[%s300] sm:$0xf]
      %v342 = vunpack.c.l.bf16 %v341
      %v343 = vadd.f32 %v340, %v342
      %v344 = vmax.f32 %v343, 0.0
      %v346 = vcombine.high %v344, %v344
      %348 = vrot.lane.b32.xlu0 %v344, 17
      %v349 = vpop.permute.xlu0 %348
      %350 = vrot.lane.b32.xlu0 %v346, 17
      %v351 = vpop.permute.xlu0 %350
      %v352 = vlaneseq
      %v353 = vand.u32 %v352, 127
      %vm354 = vcmp.lt.s32.totalorder %v353, 17
      %v355 = vsel %vm354, %v349, %v351
      %v356 = vsel %vm354, %v351, %v349
      %v357 = vld [vmem:[%s4] ss:$8 sm:$0x3]
      %v359 = vlaneseq
      %v360 = vshrl.u32 %v359, 7
      %v361 = vsub.s32 0, %v360
      %v362 = vrot.slane %v357, %v361
      %v363 = vlaneseq
      %v364 = vshrl.u32 %v363, 7
      %v365 = vsub.s32 1, %v364
      %v366 = vrot.slane %v357, %v365
      %v369 = vmul.f32 %v356, %v362
      %v370 = vmul.f32 %v355, %v366
      %v371 = vpack.c.bf16 %v369, %v369
      %v372 = vpack.c.bf16 %v370, %v370
      %373 = vrot.lane.b32.xlu0 %v344, 16
      %v374 = vpop.permute.xlu0 %373
      %375 = vrot.lane.b32.xlu0 %v346, 16
      %v376 = vpop.permute.xlu0 %375
      %vm377 = vcmp.lt.s32.totalorder %v353, 16
      %v378 = vsel %vm377, %v374, %v376
      %v379 = vsel %vm377, %v376, %v374
      %s380 = scalar_lea.vmem %s4, 1
      %v381 = vld [vmem:[%s380] ss:$8 sm:$0x3]
      %v383 = vlaneseq
      %v384 = vshrl.u32 %v383, 7
      %v385 = vsub.s32 0, %v384
      %v386 = vrot.slane %v381, %v385
      %v387 = vlaneseq
      %v388 = vshrl.u32 %v387, 7
      %v389 = vsub.s32 1, %v388
      %v390 = vrot.slane %v381, %v389
      %v393 = vmul.f32 %v379, %v386
      %v394 = vmul.f32 %v378, %v390
      %v395 = vpack.c.bf16 %v393, %v393
      %v396 = vpack.c.bf16 %v394, %v394
      %397 = vrot.lane.b32.xlu0 %v344, 15
      %v398 = vpop.permute.xlu0 %397
      %399 = vrot.lane.b32.xlu0 %v346, 15
      %v400 = vpop.permute.xlu0 %399
      %vm401 = vcmp.lt.s32.totalorder %v353, 15
      %v402 = vsel %vm401, %v398, %v400
      %v403 = vsel %vm401, %v400, %v398
      %s404 = scalar_lea.vmem %s4, 2
      %v405 = vld [vmem:[%s404] ss:$8 sm:$0x3]
      %v407 = vlaneseq
      %v408 = vshrl.u32 %v407, 7
      %v409 = vsub.s32 0, %v408
      %v410 = vrot.slane %v405, %v409
      %v411 = vlaneseq
      %v412 = vshrl.u32 %v411, 7
      %v413 = vsub.s32 1, %v412
      %v414 = vrot.slane %v405, %v413
      %v417 = vmul.f32 %v403, %v410
      %v418 = vmul.f32 %v402, %v414
      %v419 = vpack.c.bf16 %v417, %v417
      %v420 = vpack.c.bf16 %v418, %v418
      %421 = vrot.lane.b32.xlu0 %v344, 1
      %v422 = vpop.permute.xlu0 %421
      %423 = vrot.lane.b32.xlu0 %v346, 1
      %v424 = vpop.permute.xlu0 %423
      %vm425 = vcmp.lt.s32.totalorder %v353, 1
      %v426 = vsel %vm425, %v422, %v424
      %v427 = vsel %vm425, %v424, %v422
      %s428 = scalar_lea.vmem %s4, 3
      %v429 = vld [vmem:[%s428] ss:$8 sm:$0x3]
      %v431 = vlaneseq
      %v432 = vshrl.u32 %v431, 7
      %v433 = vsub.s32 0, %v432
      %v434 = vrot.slane %v429, %v433
      %v435 = vlaneseq
      %v436 = vshrl.u32 %v435, 7
      %v437 = vsub.s32 1, %v436
      %v438 = vrot.slane %v429, %v437
      %v441 = vmul.f32 %v427, %v434
      %v442 = vmul.f32 %v426, %v438
      %v443 = vpack.c.bf16 %v441, %v441
      %v444 = vpack.c.bf16 %v442, %v442
      %s445 = scalar_lea.vmem %s4, 4
      %v446 = vld [vmem:[%s445] ss:$8 sm:$0x3]
      %v448 = vlaneseq
      %v449 = vshrl.u32 %v448, 7
      %v450 = vsub.s32 0, %v449
      %v451 = vrot.slane %v446, %v450
      %v452 = vlaneseq
      %v453 = vshrl.u32 %v452, 7
      %v454 = vsub.s32 1, %v453
      %v455 = vrot.slane %v446, %v454
      %v456 = vcombine.low %v451, %v455
      %v458 = vmul.f32 %v344, %v456
      %v460 = vcombine.high %v458, %v458
      %v462 = vpack.c.bf16 %v458, %v458
      %v463 = vpack.c.bf16 %v460, %v460
      %464 = vrot.lane.b32.xlu0 %v344, 127
      %v465 = vpop.permute.xlu0 %464
      %466 = vrot.lane.b32.xlu0 %v346, 127
      %v467 = vpop.permute.xlu0 %466
      %vm468 = vcmp.lt.s32.totalorder %v353, 127
      %v469 = vsel %vm468, %v465, %v467
      %v470 = vsel %vm468, %v467, %v465
      %s471 = scalar_lea.vmem %s4, 5
      %v472 = vld [vmem:[%s471] ss:$8 sm:$0x3]
      %v474 = vlaneseq
      %v475 = vshrl.u32 %v474, 7
      %v476 = vsub.s32 0, %v475
      %v477 = vrot.slane %v472, %v476
      %v478 = vlaneseq
      %v479 = vshrl.u32 %v478, 7
      %v480 = vsub.s32 1, %v479
      %v481 = vrot.slane %v472, %v480
      %v484 = vmul.f32 %v469, %v477
      %v485 = vmul.f32 %v470, %v481
      %v486 = vpack.c.bf16 %v484, %v484
      %v487 = vpack.c.bf16 %v485, %v485
      %488 = vrot.lane.b32.xlu0 %v344, 113
      %v489 = vpop.permute.xlu0 %488
      %490 = vrot.lane.b32.xlu0 %v346, 113
      %v491 = vpop.permute.xlu0 %490
      %vm492 = vcmp.lt.s32.totalorder %v353, 113
      %v493 = vsel %vm492, %v489, %v491
      %v494 = vsel %vm492, %v491, %v489
      %s495 = scalar_lea.vmem %s4, 6
      %v496 = vld [vmem:[%s495] ss:$8 sm:$0x3]
      %v498 = vlaneseq
      %v499 = vshrl.u32 %v498, 7
      %v500 = vsub.s32 0, %v499
      %v501 = vrot.slane %v496, %v500
      %v502 = vlaneseq
      %v503 = vshrl.u32 %v502, 7
      %v504 = vsub.s32 1, %v503
      %v505 = vrot.slane %v496, %v504
      %v508 = vmul.f32 %v493, %v501
      %v509 = vmul.f32 %v494, %v505
      %v510 = vpack.c.bf16 %v508, %v508
      %v511 = vpack.c.bf16 %v509, %v509
      %512 = vrot.lane.b32.xlu0 %v344, 112
      %v513 = vpop.permute.xlu0 %512
      %514 = vrot.lane.b32.xlu0 %v346, 112
      %v515 = vpop.permute.xlu0 %514
      %vm516 = vcmp.lt.s32.totalorder %v353, 112
      %v517 = vsel %vm516, %v513, %v515
      %v518 = vsel %vm516, %v515, %v513
      %s519 = scalar_lea.vmem %s4, 7
      %v520 = vld [vmem:[%s519] ss:$8 sm:$0x3]
      %v522 = vlaneseq
      %v523 = vshrl.u32 %v522, 7
      %v524 = vsub.s32 0, %v523
      %v525 = vrot.slane %v520, %v524
      %v526 = vlaneseq
      %v527 = vshrl.u32 %v526, 7
      %v528 = vsub.s32 1, %v527
      %v529 = vrot.slane %v520, %v528
      %v532 = vmul.f32 %v517, %v525
      %v533 = vmul.f32 %v518, %v529
      %v534 = vpack.c.bf16 %v532, %v532
      %v535 = vpack.c.bf16 %v533, %v533
      %536 = vrot.lane.b32.xlu0 %v344, 111
      %v537 = vpop.permute.xlu0 %536
      %538 = vrot.lane.b32.xlu0 %v346, 111
      %v539 = vpop.permute.xlu0 %538
      %vm540 = vcmp.lt.s32.totalorder %v353, 111
      %v541 = vsel %vm540, %v537, %v539
      %v542 = vsel %vm540, %v539, %v537
      %s543 = scalar_lea.vmem %s4, 16
      %v544 = vld [vmem:[%s543] ss:$8 sm:$0x3]
      %v546 = vlaneseq
      %v547 = vshrl.u32 %v546, 7
      %v548 = vsub.s32 0, %v547
      %v549 = vrot.slane %v544, %v548
      %v550 = vlaneseq
      %v551 = vshrl.u32 %v550, 7
      %v552 = vsub.s32 1, %v551
      %v553 = vrot.slane %v544, %v552
      %v556 = vmul.f32 %v541, %v549
      %v557 = vmul.f32 %v542, %v553
      %v558 = vpack.c.bf16 %v556, %v556
      %v559 = vpack.c.bf16 %v557, %v557
      %v562 = vrot.slane %v395, 6
      %v563 = vrot.slane %v396, 6
      %v566 = vrot.slane %v419, 4
      %v567 = vrot.slane %v420, 4
      %v570 = vrot.slane %v443, 2
      %v571 = vrot.slane %v444, 2
      %v574 = vrot.slane %v486, 6
      %v575 = vrot.slane %v487, 6
      %v578 = vrot.slane %v510, 4
      %v579 = vrot.slane %v511, 4
      %v582 = vrot.slane %v534, 2
      %v583 = vrot.slane %v535, 2
      %vm584 = vcmask 1041408
      %v587 = vsel %vm584, %v371, %v562
      %v590 = vsel %vm584, %v372, %v563
      %vm591 = vcmask 1043456
      %v593 = vsel %vm591, %v587, %v566
      %v595 = vsel %vm591, %v590, %v567
      %vm596 = vcmask 1045504
      %v598 = vsel %vm596, %v593, %v570
      %v601 = vsel %vm596, %v595, %v571
      %v605 = vsel %vm584, %v462, %v574
      %v608 = vsel %vm584, %v463, %v575
      %v610 = vsel %vm591, %v605, %v578
      %v612 = vsel %vm591, %v608, %v579
      %v614 = vsel %vm596, %v610, %v582
      %v617 = vsel %vm596, %v612, %v583
      %v619 = vld [vmem:[%s5] sm:$0xf]
      %vm620 = vcmask 293888
      %v622 = vsel %vm620, %v619, 0
      %v625 = vsel %vm584, %v558, 0
      %v628 = vsel %vm584, %v559, 0
      %630 = vmatprep.subr.bf16.mxu0 %v601
      %631 = vmatpush1.bf16.msra.mxu0 %v598
      %632 = vmatprep.subr.bf16.mxu0 %v617
      %633 = vmatpush1.bf16.msra.mxu0 %v614
      %634 = vmatprep.subr.bf16.mxu0 %v628
      %635 = vmatpush1.bf16.msra.mxu0 %v625
      %636 = vmatprep.subr.bf16.mxu0 0
      %637 = vmatpush1.bf16.msra.mxu0 0
      %638 = vmatprep.subr.bf16.mxu0 0
      %639 = vmatpush1.bf16.msra.mxu0 0
      %640 = vmatprep.subr.bf16.mxu0 0
      %641 = vmatpush1.bf16.msra.mxu0 0
      %642 = vmatprep.subr.bf16.mxu0 0
      %643 = vmatpush1.bf16.msra.mxu0 0
      %644 = vmatprep.subr.bf16.mxu0 0
      %645 = vmatpush1.bf16.msra.mxu0 0
      %646 = vmatprep.subr.bf16.mxu0 0
      %647 = vmatpush1.bf16.msra.mxu0 0
      %648 = vmatprep.subr.bf16.mxu0 0
      %649 = vmatpush1.bf16.msra.mxu0 0
      %650 = vmatprep.subr.bf16.mxu0 0
      %651 = vmatpush1.bf16.msra.mxu0 0
      %652 = vmatprep.subr.bf16.mxu0 0
      %653 = vmatpush1.bf16.msra.mxu0 0
      %654 = vmatprep.subr.bf16.mxu0 0
      %655 = vmatpush1.bf16.msra.mxu0 0
      %656 = vmatprep.subr.bf16.mxu0 0
      %657 = vmatpush1.bf16.msra.mxu0 0
      %658 = vmatprep.subr.bf16.mxu0 0
      %659 = vmatpush1.bf16.msra.mxu0 0
      %660 = vmatprep.subr.bf16.mxu0 0
      %661 = vmatpush1.bf16.msra.mxu0 0
      %662 = vmatprep.mubr.bf16.mxu0 0
      %663 = vmatmul.mubr.bf16.gmra.mrb[0].mxu0 %v622
      %v664 = vpop.f32.mrb[0].mxu0
      %v665 = vadd.f32 0.0, %v664
      %v666 = vpop.f32.mrb[0].mxu0
      %v667 = vadd.f32 0.0, %v666
      %v668 = vpop.f32.mrb[0].mxu0
      %v669 = vpop.f32.mrb[0].mxu0
      %670 = vdwg.mxu0
      %v671 = vpack.c.bf16 %v665, %v665
      %v672 = vpack.c.bf16 %v667, %v667
      %v675 = vunpack.c.l.b16 %v671
      %v676 = vunpack.c.l.b16 %v672
      %v677 = vpack.c.b16 %v676, %v675
      %679 = vst [vmem:[%s305] sm:$0xff] %v677
      %v680 = vadd.f32 %v665, %v667
      %681 = vadd.xlane.f32.xlu0 %v680
      %v682 = vpop.xlane.xlu0 %681
      %v683 = vadd.f32 %v682, 0.0
      %v684 = vmul.f32 %v665, %v665
      %v685 = vmul.f32 %v667, %v667
      %v686 = vadd.f32 %v684, %v685
      %687 = vadd.xlane.f32.xlu0 %v686
      %v688 = vpop.xlane.xlu0 %687
      %v689 = vadd.f32 %v688, 0.0
      %s690 = scalar_lea.vmem %s5, 4
      %v691 = vld [vmem:[%s690] sm:$0xf]
      %v693 = vsel %vm620, %v691, 0
      %695 = vmatprep.subr.bf16.mxu0 %v601
      %696 = vmatpush1.bf16.msra.mxu0 %v598
      %697 = vmatprep.subr.bf16.mxu0 %v617
      %698 = vmatpush1.bf16.msra.mxu0 %v614
      %699 = vmatprep.subr.bf16.mxu0 %v628
      %700 = vmatpush1.bf16.msra.mxu0 %v625
      %701 = vmatprep.subr.bf16.mxu0 0
      %702 = vmatpush1.bf16.msra.mxu0 0
      %703 = vmatprep.subr.bf16.mxu0 0
      %704 = vmatpush1.bf16.msra.mxu0 0
      %705 = vmatprep.subr.bf16.mxu0 0
      %706 = vmatpush1.bf16.msra.mxu0 0
      %707 = vmatprep.subr.bf16.mxu0 0
      %708 = vmatpush1.bf16.msra.mxu0 0
      %709 = vmatprep.subr.bf16.mxu0 0
      %710 = vmatpush1.bf16.msra.mxu0 0
      %711 = vmatprep.subr.bf16.mxu0 0
      %712 = vmatpush1.bf16.msra.mxu0 0
      %713 = vmatprep.subr.bf16.mxu0 0
      %714 = vmatpush1.bf16.msra.mxu0 0
      %715 = vmatprep.subr.bf16.mxu0 0
      %716 = vmatpush1.bf16.msra.mxu0 0
      %717 = vmatprep.subr.bf16.mxu0 0
      %718 = vmatpush1.bf16.msra.mxu0 0
      %719 = vmatprep.subr.bf16.mxu0 0
      %720 = vmatpush1.bf16.msra.mxu0 0
      %721 = vmatprep.subr.bf16.mxu0 0
      %722 = vmatpush1.bf16.msra.mxu0 0
      %723 = vmatprep.subr.bf16.mxu0 0
      %724 = vmatpush1.bf16.msra.mxu0 0
      %725 = vmatprep.subr.bf16.mxu0 0
      %726 = vmatpush1.bf16.msra.mxu0 0
      %727 = vmatprep.mubr.bf16.mxu0 0
      %728 = vmatmul.mubr.bf16.gmra.mrb[0].mxu0 %v693
      %v729 = vpop.f32.mrb[0].mxu0
      %v730 = vadd.f32 0.0, %v729
      %v731 = vpop.f32.mrb[0].mxu0
      %v732 = vadd.f32 0.0, %v731
      %v733 = vpop.f32.mrb[0].mxu0
      %v734 = vpop.f32.mrb[0].mxu0
      %735 = vdwg.mxu0
      %v736 = vpack.c.bf16 %v730, %v730
      %v737 = vpack.c.bf16 %v732, %v732
      %v740 = vunpack.c.l.b16 %v736
      %v741 = vunpack.c.l.b16 %v737
      %v742 = vpack.c.b16 %v741, %v740
      %s744 = scalar_lea.vmem %s305, 8
      %745 = vst [vmem:[%s744] sm:$0xff] %v742
      %v746 = vadd.f32 %v730, %v732
      %747 = vadd.xlane.f32.xlu0 %v746
      %v748 = vpop.xlane.xlu0 %747
      %v749 = vadd.f32 %v683, %v748
      %v750 = vmul.f32 %v730, %v730
      %v751 = vmul.f32 %v732, %v732
      %v752 = vadd.f32 %v750, %v751
      %753 = vadd.xlane.f32.xlu0 %v752
      %v754 = vpop.xlane.xlu0 %753
      %v755 = vadd.f32 %v689, %v754
      %s756 = scalar_lea.vmem %s5, 8
      %v757 = vld [vmem:[%s756] sm:$0xf]
      %v759 = vsel %vm620, %v757, 0
      %761 = vmatprep.subr.bf16.mxu0 %v601
      %762 = vmatpush1.bf16.msra.mxu0 %v598
      %763 = vmatprep.subr.bf16.mxu0 %v617
      %764 = vmatpush1.bf16.msra.mxu0 %v614
      %765 = vmatprep.subr.bf16.mxu0 %v628
      %766 = vmatpush1.bf16.msra.mxu0 %v625
      %767 = vmatprep.subr.bf16.mxu0 0
      %768 = vmatpush1.bf16.msra.mxu0 0
      %769 = vmatprep.subr.bf16.mxu0 0
      %770 = vmatpush1.bf16.msra.mxu0 0
      %771 = vmatprep.subr.bf16.mxu0 0
      %772 = vmatpush1.bf16.msra.mxu0 0
      %773 = vmatprep.subr.bf16.mxu0 0
      %774 = vmatpush1.bf16.msra.mxu0 0
      %775 = vmatprep.subr.bf16.mxu0 0
      %776 = vmatpush1.bf16.msra.mxu0 0
      %777 = vmatprep.subr.bf16.mxu0 0
      %778 = vmatpush1.bf16.msra.mxu0 0
      %779 = vmatprep.subr.bf16.mxu0 0
      %780 = vmatpush1.bf16.msra.mxu0 0
      %781 = vmatprep.subr.bf16.mxu0 0
      %782 = vmatpush1.bf16.msra.mxu0 0
      %783 = vmatprep.subr.bf16.mxu0 0
      %784 = vmatpush1.bf16.msra.mxu0 0
      %785 = vmatprep.subr.bf16.mxu0 0
      %786 = vmatpush1.bf16.msra.mxu0 0
      %787 = vmatprep.subr.bf16.mxu0 0
      %788 = vmatpush1.bf16.msra.mxu0 0
      %789 = vmatprep.subr.bf16.mxu0 0
      %790 = vmatpush1.bf16.msra.mxu0 0
      %791 = vmatprep.subr.bf16.mxu0 0
      %792 = vmatpush1.bf16.msra.mxu0 0
      %793 = vmatprep.mubr.bf16.mxu0 0
      %794 = vmatmul.mubr.bf16.gmra.mrb[0].mxu0 %v759
      %v795 = vpop.f32.mrb[0].mxu0
      %v796 = vadd.f32 0.0, %v795
      %v797 = vpop.f32.mrb[0].mxu0
      %v798 = vadd.f32 0.0, %v797
      %v799 = vpop.f32.mrb[0].mxu0
      %v800 = vpop.f32.mrb[0].mxu0
      %801 = vdwg.mxu0
      %v802 = vpack.c.bf16 %v796, %v796
      %v803 = vpack.c.bf16 %v798, %v798
      %v806 = vunpack.c.l.b16 %v802
      %v807 = vunpack.c.l.b16 %v803
      %v808 = vpack.c.b16 %v807, %v806
      %s810 = scalar_lea.vmem %s305, 16
      %811 = vst [vmem:[%s810] sm:$0xff] %v808
      %v812 = vadd.f32 %v796, %v798
      %813 = vadd.xlane.f32.xlu0 %v812
      %v814 = vpop.xlane.xlu0 %813
      %v815 = vadd.f32 %v749, %v814
      %v816 = vmul.f32 %v796, %v796
      %v817 = vmul.f32 %v798, %v798
      %v818 = vadd.f32 %v816, %v817
      %819 = vadd.xlane.f32.xlu0 %v818
      %v820 = vpop.xlane.xlu0 %819
      %v821 = vadd.f32 %v755, %v820
      %s822 = scalar_lea.vmem %s5, 12
      %v823 = vld [vmem:[%s822] sm:$0xf]
      %v825 = vsel %vm620, %v823, 0
      %827 = vmatprep.subr.bf16.mxu0 %v601
      %828 = vmatpush1.bf16.msra.mxu0 %v598
      %829 = vmatprep.subr.bf16.mxu0 %v617
      %830 = vmatpush1.bf16.msra.mxu0 %v614
      %831 = vmatprep.subr.bf16.mxu0 %v628
      %832 = vmatpush1.bf16.msra.mxu0 %v625
      %833 = vmatprep.subr.bf16.mxu0 0
      %834 = vmatpush1.bf16.msra.mxu0 0
      %835 = vmatprep.subr.bf16.mxu0 0
      %836 = vmatpush1.bf16.msra.mxu0 0
      %837 = vmatprep.subr.bf16.mxu0 0
      %838 = vmatpush1.bf16.msra.mxu0 0
      %839 = vmatprep.subr.bf16.mxu0 0
      %840 = vmatpush1.bf16.msra.mxu0 0
      %841 = vmatprep.subr.bf16.mxu0 0
      %842 = vmatpush1.bf16.msra.mxu0 0
      %843 = vmatprep.subr.bf16.mxu0 0
      %844 = vmatpush1.bf16.msra.mxu0 0
      %845 = vmatprep.subr.bf16.mxu0 0
      %846 = vmatpush1.bf16.msra.mxu0 0
      %847 = vmatprep.subr.bf16.mxu0 0
      %848 = vmatpush1.bf16.msra.mxu0 0
      %849 = vmatprep.subr.bf16.mxu0 0
      %850 = vmatpush1.bf16.msra.mxu0 0
      %851 = vmatprep.subr.bf16.mxu0 0
      %852 = vmatpush1.bf16.msra.mxu0 0
      %853 = vmatprep.subr.bf16.mxu0 0
      %854 = vmatpush1.bf16.msra.mxu0 0
      %855 = vmatprep.subr.bf16.mxu0 0
      %856 = vmatpush1.bf16.msra.mxu0 0
      %857 = vmatprep.subr.bf16.mxu0 0
      %858 = vmatpush1.bf16.msra.mxu0 0
      %859 = vmatprep.mubr.bf16.mxu0 0
      %860 = vmatmul.mubr.bf16.gmra.mrb[0].mxu0 %v825
      %v861 = vpop.f32.mrb[0].mxu0
      %v862 = vadd.f32 0.0, %v861
      %v863 = vpop.f32.mrb[0].mxu0
      %v864 = vadd.f32 0.0, %v863
      %v865 = vpop.f32.mrb[0].mxu0
      %v866 = vpop.f32.mrb[0].mxu0
      %867 = vdwg.mxu0
      %v868 = vpack.c.bf16 %v862, %v862
      %v869 = vpack.c.bf16 %v864, %v864
      %v872 = vunpack.c.l.b16 %v868
      %v873 = vunpack.c.l.b16 %v869
      %v874 = vpack.c.b16 %v873, %v872
      %s876 = scalar_lea.vmem %s305, 24
      %877 = vst [vmem:[%s876] sm:$0xff] %v874
      %v878 = vadd.f32 %v862, %v864
      %879 = vadd.xlane.f32.xlu0 %v878
      %v880 = vpop.xlane.xlu0 %879
      %v881 = vadd.f32 %v815, %v880
      %v882 = vmul.f32 %v862, %v862
      %v883 = vmul.f32 %v864, %v864
      %v884 = vadd.f32 %v882, %v883
      %885 = vadd.xlane.f32.xlu0 %v884
      %v886 = vpop.xlane.xlu0 %885
      %v887 = vadd.f32 %v821, %v886
      %vm888 = vcmask 7168
      %889 = vst.msk [vmem:[%s309] sm:$0xff] %vm888, %v881
      %vm890 = vcmask 15368
      %891 = vst.msk [vmem:[%s309] sm:$0xff] %vm890, %v887
      %p892 = scmp.lt.s32.totalorder %s19, 1
      %s893 = scalar_select %p892, %s19, 1
      %s894 = smul.addr %s893, 8
      %s895 = smul.addr %s894, 4
      %s896 = scalar_lea.vmem %s6, %s895
      %p897 = scmp.lt.s32.totalorder %s19, 1
      %s898 = scalar_select %p897, %s19, 1
      %s899 = smul.addr %s898, 8
      %s900 = scalar_lea.vmem %s7, %s899
      // Predicated region
      $region45: #{up_layer_forward.6} parent=43 // pred_check
        %p901 = pneg %p173
      $region46: #{up_layer_forward.6} parent=43 // pred_check_branch
        %903 = sbr.rel (%p901) target = $region48
      $region47: #{up_layer_forward.6} parent=43 // pred_region
        _
      $region48: #{up_layer_forward.6} parent=43 // pred_fallthru
        _
      // Predicated region
      $region49: #{up_layer_forward.6} parent=43 // pred_check
        %p904 = pneg %p199
      $region50: #{up_layer_forward.6} parent=43 // pred_check_branch
        %906 = sbr.rel (%p904) target = $region52
      $region51: #{up_layer_forward.6} parent=43 // pred_region
        _
      $region52: #{up_layer_forward.6} parent=43 // pred_fallthru
        _
    $region44: #{up_layer_forward.6} parent=5 // pred_fallthru
      _
    %p907 = scmp.le.s32.totalorder 2, %s14
    // Predicated region
    $region53: #{up_layer_forward.6} parent=5 // pred_check
      %p908 = pneg %p907
    $region54: #{up_layer_forward.6} parent=5 // pred_check_branch
      %910 = sbr.rel (%p908) target = $region56
    $region55: #{up_layer_forward.6} parent=5 // pred_region
      %s911 = ssub.s32 %s14, 2
      // Predicated region
      $region57: #{up_layer_forward.6} parent=55 // pred_check
        %p912 = pneg %p179
      $region58: #{up_layer_forward.6} parent=55 // pred_check_branch
        %914 = sbr.rel (%p912) target = $region60
      $region59: #{up_layer_forward.6} parent=55 // pred_region
        %p915 = scmp.lt.s32.totalorder %s20, 1
        %s916 = scalar_select %p915, %s20, 1
        %s917 = smul.addr %s916, 8
        %s918 = smul.addr %s917, 4
        %s919 = scalar_lea.vmem %s6, %s918
      $region60: #{up_layer_forward.6} parent=55 // pred_fallthru
        _
      // Predicated region
      $region61: #{up_layer_forward.6} parent=55 // pred_check
        %p920 = pneg %p205
      $region62: #{up_layer_forward.6} parent=55 // pred_check_branch
        %922 = sbr.rel (%p920) target = $region64
      $region63: #{up_layer_forward.6} parent=55 // pred_region
        %p923 = scmp.lt.s32.totalorder %s20, 1
        %s924 = scalar_select %p923, %s20, 1
        %s925 = smul.addr %s924, 8
        %s926 = scalar_lea.vmem %s7, %s925
      $region64: #{up_layer_forward.6} parent=55 // pred_fallthru
        _
    $region56: #{up_layer_forward.6} parent=5 // pred_fallthru
      _
  $region6: #{up_layer_forward.6} parent=0 // loop_footer
    %s18 = sadd.s32 1, %s14
  $region7: #{up_layer_forward.6} parent=0 // loop_footer_branch
    %13 = sbr.rel target = $region3
  $region8: #{up_layer_forward.6} parent=0 // loop_exit
    _

</llo_original>
